<compile_context>
chip_gen: v7x
topology: tpu7x:2x2x1
jax: 0.10.0
libtpu: 0.0.40
codegen_flags: <defaults>
</compile_context>

<pallas_src>
import jax
import jax.numpy as jnp
import numpy as np
from jax.experimental import pallas as pl
from jax.experimental.pallas import tpu as pltpu

NUM_LAYERS = 2
SUBLANE = 8
LANE = 128

# Column-block order of the fused 6H gate axis: [r_f, r_b, z_f, z_b, n_f, n_b]
_BLOCKS = [(g, d) for g in range(3) for d in range(2)]


# ----------------------------- fused Pallas kernel -----------------------------

def fused_bigru_kernel(x_ref,        # (T*B, Fp)   time-major input (lane-padded)
                       mask_ref,     # (T, B, 2H)  [valid(t=s) | valid(t=T-1-s)]
                       fsel_ref,     # (B, 6H)     1.0 on forward-direction gate columns
                       w0_ref,       # (Fp, 6H)    layer-0 input weights, both dirs, interleaved
                       b0_ref,       # (1, 6H)
                       whh0_ref,     # (2H, 6H)    layer-0 recurrent weights, block-diagonal
                       bhh0_ref,     # (1, 6H)
                       w1f_ref,      # (H, 6H)     layer-1 input weights acting on y0_fwd
                       w1b_ref,      # (H, 6H)     layer-1 input weights acting on y0_bwd
                       b1_ref,       # (1, 6H)
                       whh1_ref,     # (2H, 6H)
                       bhh1_ref,     # (1, 6H)
                       whead_ref,    # (2H, 1)     fc2 o dropout(id) o fc1, folded
                       bhead_ref,    # (1, 1)
                       inv_len_ref,  # (1,) SMEM   1 / max(lengths)
                       o_ref,        # (B, 1)
                       gi0_ref,      # VMEM scratch (T*B, 6H)  layer-0 gate inputs
                       gi1_ref,      # VMEM scratch (T*B, 6H)  layer-1 gate inputs
                       y0f_ref,      # VMEM scratch (T*B, H)   layer-0 forward outputs
                       y0b_ref):     # VMEM scratch (T*B, H)   layer-0 backward outputs
    T, B, H2 = mask_ref.shape
    H = H2 // 2
    f32 = jnp.float32

    # Hoisted out of both time loops (feedback: no per-step broadcast/compare rebuilds).
    fsel = fsel_ref[...] > 0.5                                   # (B, 6H) bool

    def cell(h, gi, whh_ref, bhh_ref, m):
        # ONE fused MXU matmul for both directions and all 3 gates (PyTorch order r, z, n).
        gh = jnp.dot(h, whh_ref[...], preferred_element_type=f32) + bhh_ref[...]
        r = jax.nn.sigmoid(gi[:, 0:H2] + gh[:, 0:H2])            # 128-lane-aligned slices
        z = jax.nn.sigmoid(gi[:, H2:2 * H2] + gh[:, H2:2 * H2])
        n = jnp.tanh(gi[:, 2 * H2:3 * H2] + r * gh[:, 2 * H2:3 * H2])
        h_new = (1.0 - z) * n + z * h
        # packed-sequence semantics: h only advances on valid steps, padded outputs are zero.
        return h + m * (h_new - h), m * h_new

    def gi_at(gi_ref, s):
        # Forward gates take the projection of input time s, backward gates of time T-1-s.
        tb = T - 1 - s
        return jnp.where(fsel,
                         gi_ref[s * B:(s + 1) * B, :],
                         gi_ref[tb * B:(tb + 1) * B, :])

    # ---------------- layer-0 input projection: ONE (T*B,Fp)x(Fp,6H) slab matmul ----------------
    gi0_ref[...] = jnp.dot(x_ref[...], w0_ref[...], preferred_element_type=f32) + b0_ref[...]

    # ---------------- layer 0: fused bidirectional recurrence ----------------
    h = jnp.zeros((B, H2), f32)
    for s in range(T):
        tb = T - 1 - s
        h, y = cell(h, gi_at(gi0_ref, s), whh0_ref, bhh0_ref, mask_ref[s])
        y0f_ref[s * B:(s + 1) * B, :] = y[:, 0:H]                # forward output is time s
        y0b_ref[tb * B:(tb + 1) * B, :] = y[:, H:H2]             # backward output is time T-1-s

    # ---------- layer-1 input projection: TWO (T*B,H)x(H,6H) slab matmuls ----------
    gi1_ref[...] = (jnp.dot(y0f_ref[...], w1f_ref[...], preferred_element_type=f32)
                    + jnp.dot(y0b_ref[...], w1b_ref[...], preferred_element_type=f32)
                    + b1_ref[...])

    # ---------- layer 1: fused bidirectional recurrence + mean-pool accumulation ----------
    h = jnp.zeros((B, H2), f32)
    acc = jnp.zeros((B, H2), f32)
    for s in range(T):
        h, y = cell(h, gi_at(gi1_ref, s), whh1_ref, bhh1_ref, mask_ref[s])
        acc = acc + y

    # ---------- head: mean over time (divide by max(lengths)), fc1+dropout(id)+fc2 folded ----------
    pooled = acc * inv_len_ref[0]                                # (B, 2H), lane-dense
    o_ref[...] = jnp.dot(pooled, whead_ref[...], preferred_element_type=f32) + bhead_ref[...]


# ----------------------------- wrapper -----------------------------

def gru_model_forward(x, lengths, packed):
    B, T, F = x.shape
    H2, H6 = packed["whh0"].shape
    H = H2 // 2

    # Pad batch to a sublane multiple so every per-step slab row-slice is (8,128)-tile aligned.
    Bp = ((B + SUBLANE - 1) // SUBLANE) * SUBLANE
    if Bp != B:
        x = jnp.pad(x, ((0, Bp - B), (0, 0), (0, 0)))
        lengths_p = jnp.concatenate([lengths, jnp.zeros((Bp - B,), lengths.dtype)])
    else:
        lengths_p = lengths

    # Time-major input slab; pad features to a lane multiple (zeros contribute nothing).
    Fp = ((F + LANE - 1) // LANE) * LANE
    x_tm = jnp.transpose(x, (1, 0, 2)).reshape(T * Bp, F)
    x_tm = jnp.pad(x_tm, ((0, 0), (0, Fp - F)))
    w0 = jnp.pad(packed["w0"], ((0, Fp - F), (0, 0)))

    # Hoisted validity masks: mask[s,:, :H] = (s < len)   (forward step s)
    #                         mask[s,:, H:] = (T-1-s < len) (backward step s)
    t_idx = jnp.arange(T, dtype=jnp.int32)
    lens = lengths_p.astype(jnp.int32)
    m_f = (t_idx[:, None] < lens[None, :]).astype(jnp.float32)
    m_b = ((T - 1 - t_idx)[:, None] < lens[None, :]).astype(jnp.float32)
    mask = jnp.concatenate(
        [jnp.broadcast_to(m_f[:, :, None], (T, Bp, H)),
         jnp.broadcast_to(m_b[:, :, None], (T, Bp, H))], axis=-1)

    # Forward-direction column selector over the gate-interleaved 6H layout (even blocks = fwd).
    blk = jnp.arange(H6, dtype=jnp.int32) // H
    fsel = jnp.broadcast_to(((blk % 2) == 0).astype(jnp.float32)[None, :], (Bp, H6))

    inv_len = jnp.reshape(1.0 / jnp.max(lengths).astype(jnp.float32), (1,))

    vmem = pl.BlockSpec(memory_space=pltpu.MemorySpace.VMEM)
    smem = pl.BlockSpec(memory_space=pltpu.MemorySpace.SMEM)

    out = pl.pallas_call(
        fused_bigru_kernel,
        out_shape=jax.ShapeDtypeStruct((Bp, 1), jnp.float32),
        in_specs=[vmem] * 14 + [smem],
        out_specs=vmem,
        scratch_shapes=[
            pltpu.VMEM((T * Bp, H6), jnp.float32),   # layer-0 gate inputs
            pltpu.VMEM((T * Bp, H6), jnp.float32),   # layer-1 gate inputs
            pltpu.VMEM((T * Bp, H), jnp.float32),    # layer-0 forward outputs
            pltpu.VMEM((T * Bp, H), jnp.float32),    # layer-0 backward outputs
        ],
        compiler_params=pltpu.CompilerParams(vmem_limit_bytes=32 * 1024 * 1024),
    )(x_tm, mask, fsel,
      w0, packed["b0"], packed["whh0"], packed["bhh0"],
      packed["w1f"], packed["w1b"], packed["b1"], packed["whh1"], packed["bhh1"],
      packed["whead"], packed["bhead"], inv_len)
    return out[:B]


# ----------------------------- parameter init & packing -----------------------------

def _uniform(key, shape, scale):
    return jax.random.uniform(key, shape, jnp.float32, -scale, scale)


def init_params(key, input_size, hidden):
    """Raw parameters in PyTorch layout (nn.GRU + fc1 + fc2)."""
    keys = iter(jax.random.split(key, 40))
    k = 1.0 / np.sqrt(hidden)
    gru = []
    for layer in range(NUM_LAYERS):
        in_dim = input_size if layer == 0 else 2 * hidden
        dirs = []
        for _ in range(2):                                     # forward, backward
            dirs.append(dict(
                wih=_uniform(next(keys), (3 * hidden, in_dim), k),
                whh=_uniform(next(keys), (3 * hidden, hidden), k),
                bih=_uniform(next(keys), (3 * hidden,), k),
                bhh=_uniform(next(keys), (3 * hidden,), k)))
        gru.append(dirs)
    k1 = 1.0 / np.sqrt(2 * hidden)
    fc1_w = _uniform(next(keys), (hidden, 2 * hidden), k1)
    fc1_b = _uniform(next(keys), (hidden,), k1)
    k2 = 1.0 / np.sqrt(hidden)
    fc2_w = _uniform(next(keys), (1, hidden), k2)
    fc2_b = _uniform(next(keys), (1,), k2)
    return dict(gru=gru, fc1_w=fc1_w, fc1_b=fc1_b, fc2_w=fc2_w, fc2_b=fc2_b)


def pack_params(raw, H):
    """Fold PyTorch-layout params into the fused, gate-interleaved kernel layout."""
    def gate(w, g):                                            # (3H, K) -> rows of gate g
        return w[g * H:(g + 1) * H, :]

    def gate_b(b, g):
        return b[g * H:(g + 1) * H]

    g0, g1 = raw["gru"]
    packed = {}

    # Layer-0 input projection (acts on x), both directions side by side.
    packed["w0"] = jnp.concatenate([gate(g0[d]["wih"], g).T for g, d in _BLOCKS], axis=1)
    packed["b0"] = jnp.concatenate([gate_b(g0[d]["bih"], g) for g, d in _BLOCKS]).reshape(1, 6 * H)

    # Layer-1 input projection, split by which half of the layer-0 output it consumes.
    packed["w1f"] = jnp.concatenate([gate(g1[d]["wih"], g)[:, :H].T for g, d in _BLOCKS], axis=1)
    packed["w1b"] = jnp.concatenate([gate(g1[d]["wih"], g)[:, H:].T for g, d in _BLOCKS], axis=1)
    packed["b1"] = jnp.concatenate([gate_b(g1[d]["bih"], g) for g, d in _BLOCKS]).reshape(1, 6 * H)

    # Block-diagonal recurrent weights: rows [0:H] act on h_fwd, rows [H:2H] on h_bwd.
    def whh_bd(layer):
        cols = []
        zero = jnp.zeros((H, H), jnp.float32)
        for g, d in _BLOCKS:
            w = gate(layer[d]["whh"], g).T                     # (H, H)
            cols.append(jnp.concatenate([w, zero] if d == 0 else [zero, w], axis=0))
        return jnp.concatenate(cols, axis=1)                   # (2H, 6H)

    def bhh_cat(layer):
        return jnp.concatenate([gate_b(layer[d]["bhh"], g) for g, d in _BLOCKS]).reshape(1, 6 * H)

    packed["whh0"] = whh_bd(g0)
    packed["bhh0"] = bhh_cat(g0)
    packed["whh1"] = whh_bd(g1)
    packed["bhh1"] = bhh_cat(g1)

    # fc2 o dropout(identity) o fc1 folded into a single affine map (no nonlinearity between).
    packed["whead"] = raw["fc1_w"].T @ raw["fc2_w"].T                         # (2H, 1)
    packed["bhead"] = (raw["fc1_b"] @ raw["fc2_w"].T + raw["fc2_b"]).reshape(1, 1)
    return packed


# ----------------------------- pure-JAX reference (for validation) -----------------------------

def _gru_direction_ref(x_tm, mask_tm, p):
    H = p["whh"].shape[1]

    def step(h, inp):
        x_t, m_t = inp
        gi = x_t @ p["wih"].T + p["bih"]
        gh = h @ p["whh"].T + p["bhh"]
        r = jax.nn.sigmoid(gi[:, :H] + gh[:, :H])
        z = jax.nn.sigmoid(gi[:, H:2 * H] + gh[:, H:2 * H])
        n = jnp.tanh(gi[:, 2 * H:] + r * gh[:, 2 * H:])
        h_new = (1.0 - z) * n + z * h
        return m_t * h_new + (1.0 - m_t) * h, m_t * h_new

    h0 = jnp.zeros((x_tm.shape[1], H), jnp.float32)
    _, ys = jax.lax.scan(step, h0, (x_tm, mask_tm))
    return ys


def _reverse_padded(x_btf, lengths):
    T = x_btf.shape[1]
    t = jnp.arange(T)[None, :]
    lens = lengths[:, None]
    idx = jnp.where(t < lens, lens - 1 - t, t)
    return jnp.take_along_axis(x_btf, idx[:, :, None], axis=1)


def _bigru_layer_ref(x_btf, lengths, layer):
    T = x_btf.shape[1]
    mask = (jnp.arange(T)[:, None] < lengths[None, :]).astype(jnp.float32)[:, :, None]
    x_tm = jnp.transpose(x_btf, (1, 0, 2))
    y_f = _gru_direction_ref(x_tm, mask, layer[0])
    x_rev_tm = jnp.transpose(_reverse_padded(x_btf, lengths), (1, 0, 2))
    y_b_rev = _gru_direction_ref(x_rev_tm, mask, layer[1])
    y_b = _reverse_padded(jnp.transpose(y_b_rev, (1, 0, 2)), lengths)
    return jnp.concatenate([jnp.transpose(y_f, (1, 0, 2)), y_b], axis=-1)


def gru_model_forward_ref(x, lengths, raw):
    h = x
    for layer in range(NUM_LAYERS):
        h = _bigru_layer_ref(h, lengths, raw["gru"][layer])
    max_len = jnp.max(lengths).astype(jnp.float32)
    pooled = jnp.sum(h, axis=1) / max_len
    h1 = pooled @ raw["fc1_w"].T + raw["fc1_b"]
    return h1 @ raw["fc2_w"].T + raw["fc2_b"]


# ----------------------------- main -----------------------------

if __name__ == "__main__":
    # H = 64 (module default) so 2H = 128 (lane-dense); B = 8 (sublane-dense).
    B, T, F, H = 8, 8, 16, 64
    key = jax.random.PRNGKey(0)
    kx, kp = jax.random.split(key)
    x = jax.random.normal(kx, (B, T, F), dtype=jnp.float32)
    lengths = jnp.array([8, 5, 3, 6, 8, 2, 7, 4], dtype=jnp.int32)   # max(lengths) == T

    raw = init_params(kp, F, H)
    packed = pack_params(raw, H)

    fwd = jax.jit(gru_model_forward)
    out = jax.block_until_ready(fwd(x, lengths, packed))

    ref = jax.block_until_ready(gru_model_forward_ref(x, lengths, raw))
    np.testing.assert_allclose(np.asarray(out), np.asarray(ref), rtol=1e-3, atol=1e-4)
    assert out.shape == (B, 1)
    print("KERNEL_OK")
</pallas_src>

<mosaic_0001>
module attributes {stable_mosaic.version = 11 : i64} {
  func.func @fused_bigru_kernel(%arg0: memref<64x128xf32, #tpu.memory_space<vmem>>, %arg1: memref<8x8x128xf32, #tpu.memory_space<vmem>>, %arg2: memref<8x384xf32, #tpu.memory_space<vmem>>, %arg3: memref<128x384xf32, #tpu.memory_space<vmem>>, %arg4: memref<1x384xf32, #tpu.memory_space<vmem>>, %arg5: memref<128x384xf32, #tpu.memory_space<vmem>>, %arg6: memref<1x384xf32, #tpu.memory_space<vmem>>, %arg7: memref<64x384xf32, #tpu.memory_space<vmem>>, %arg8: memref<64x384xf32, #tpu.memory_space<vmem>>, %arg9: memref<1x384xf32, #tpu.memory_space<vmem>>, %arg10: memref<128x384xf32, #tpu.memory_space<vmem>>, %arg11: memref<1x384xf32, #tpu.memory_space<vmem>>, %arg12: memref<128x1xf32, #tpu.memory_space<vmem>>, %arg13: memref<1x1xf32, #tpu.memory_space<vmem>>, %arg14: memref<1xf32, #tpu.memory_space<smem>>, %arg15: memref<8x1xf32, #tpu.memory_space<vmem>>, %arg16: memref<64x384xf32, #tpu.memory_space<vmem>>, %arg17: memref<64x384xf32, #tpu.memory_space<vmem>>, %arg18: memref<64x64xf32, #tpu.memory_space<vmem>>, %arg19: memref<64x64xf32, #tpu.memory_space<vmem>>) attributes {dimension_semantics = [], scalar_prefetch = 0 : i64, scratch_operands = 4 : i64, tpu.core_type = #tpu.core_type<tc>} {
    %c0 = arith.constant 0 : index
    %c0_0 = arith.constant 0 : index
    %0 = vector.load %arg2[%c0, %c0_0] : memref<8x384xf32, #tpu.memory_space<vmem>>, vector<8x384xf32>
    %cst = arith.constant 5.000000e-01 : f32
    %1 = vector.broadcast %cst : f32 to vector<8x384xf32>
    %2 = arith.cmpf ogt, %0, %1 : vector<8x384xf32>
    %c0_1 = arith.constant 0 : index
    %c0_2 = arith.constant 0 : index
    %3 = vector.load %arg0[%c0_1, %c0_2] : memref<64x128xf32, #tpu.memory_space<vmem>>, vector<64x128xf32>
    %c0_3 = arith.constant 0 : index
    %c0_4 = arith.constant 0 : index
    %4 = vector.load %arg3[%c0_3, %c0_4] : memref<128x384xf32, #tpu.memory_space<vmem>>, vector<128x384xf32>
    %cst_5 = arith.constant dense<0.000000e+00> : vector<64x384xf32>
    %5 = tpu.matmul %3, %4, %cst_5 {dimension_numbers = #tpu.dot_dimension_numbers<[1], [0], [0], [1], [0, 0, 1, 1], [], []>} : vector<64x128xf32>, vector<128x384xf32>, vector<64x384xf32> -> vector<64x384xf32>
    %c0_6 = arith.constant 0 : index
    %c0_7 = arith.constant 0 : index
    %6 = vector.load %arg4[%c0_6, %c0_7] : memref<1x384xf32, #tpu.memory_space<vmem>>, vector<1x384xf32>
    %7 = vector.broadcast %6 : vector<1x384xf32> to vector<64x384xf32>
    %8 = arith.addf %5, %7 : vector<64x384xf32>
    %c0_8 = arith.constant 0 : index
    %c0_9 = arith.constant 0 : index
    %9 = vector.load %arg16[%c0_8, %c0_9] : memref<64x384xf32, #tpu.memory_space<vmem>>, vector<64x384xf32>
    tpu.vector_store %arg16[%c0_8, %c0_9], %8 {strides = array<i32>} : memref<64x384xf32, #tpu.memory_space<vmem>>, vector<64x384xf32>,
    %cst_10 = arith.constant 0.000000e+00 : f32
    %10 = vector.broadcast %cst_10 : f32 to vector<8x128xf32>
    %c0_11 = arith.constant 0 : index
    %c0_12 = arith.constant 0 : index
    %11 = vector.load %arg16[%c0_11, %c0_12] : memref<64x384xf32, #tpu.memory_space<vmem>>, vector<8x384xf32>
    %c56 = arith.constant 56 : index
    %c0_13 = arith.constant 0 : index
    %12 = vector.load %arg16[%c56, %c0_13] : memref<64x384xf32, #tpu.memory_space<vmem>>, vector<8x384xf32>
    %13 = arith.select %2, %11, %12 : vector<8x384xi1>, vector<8x384xf32>
    %c0_14 = arith.constant 0 : index
    %c0_15 = arith.constant 0 : index
    %c0_16 = arith.constant 0 : index
    %14 = vector.load %arg1[%c0_14, %c0_15, %c0_16] : memref<8x8x128xf32, #tpu.memory_space<vmem>>, vector<1x8x128xf32>
    %15 = vector.shape_cast %14 : vector<1x8x128xf32> to vector<8x128xf32>
    %c0_17 = arith.constant 0 : index
    %c0_18 = arith.constant 0 : index
    %16 = vector.load %arg5[%c0_17, %c0_18] : memref<128x384xf32, #tpu.memory_space<vmem>>, vector<128x384xf32>
    %cst_19 = arith.constant dense<0.000000e+00> : vector<8x384xf32>
    %17 = tpu.matmul %10, %16, %cst_19 {dimension_numbers = #tpu.dot_dimension_numbers<[1], [0], [0], [1], [0, 0, 1, 1], [], []>} : vector<8x128xf32>, vector<128x384xf32>, vector<8x384xf32> -> vector<8x384xf32>
    %c0_20 = arith.constant 0 : index
    %c0_21 = arith.constant 0 : index
    %18 = vector.load %arg6[%c0_20, %c0_21] : memref<1x384xf32, #tpu.memory_space<vmem>>, vector<1x384xf32>
    %19 = vector.broadcast %18 : vector<1x384xf32> to vector<8x384xf32>
    %20 = arith.addf %17, %19 : vector<8x384xf32>
    %21 = vector.extract_strided_slice %13 {offsets = [0, 0], sizes = [8, 128], strides = [1, 1]} : vector<8x384xf32> to vector<8x128xf32>
    %22 = vector.extract_strided_slice %20 {offsets = [0, 0], sizes = [8, 128], strides = [1, 1]} : vector<8x384xf32> to vector<8x128xf32>
    %23 = arith.addf %21, %22 : vector<8x128xf32>
    %24 = arith.negf %23 : vector<8x128xf32>
    %25 = math.exp %24 : vector<8x128xf32>
    %cst_22 = arith.constant 1.000000e+00 : f32
    %26 = vector.broadcast %cst_22 : f32 to vector<8x128xf32>
    %27 = arith.addf %26, %25 : vector<8x128xf32>
    %28 = arith.divf %26, %27 : vector<8x128xf32>
    %29 = vector.extract_strided_slice %13 {offsets = [0, 128], sizes = [8, 128], strides = [1, 1]} : vector<8x384xf32> to vector<8x128xf32>
    %30 = vector.extract_strided_slice %20 {offsets = [0, 128], sizes = [8, 128], strides = [1, 1]} : vector<8x384xf32> to vector<8x128xf32>
    %31 = arith.addf %29, %30 : vector<8x128xf32>
    %32 = arith.negf %31 : vector<8x128xf32>
    %33 = math.exp %32 : vector<8x128xf32>
    %cst_23 = arith.constant 1.000000e+00 : f32
    %34 = vector.broadcast %cst_23 : f32 to vector<8x128xf32>
    %35 = arith.addf %34, %33 : vector<8x128xf32>
    %36 = arith.divf %34, %35 : vector<8x128xf32>
    %37 = vector.extract_strided_slice %13 {offsets = [0, 256], sizes = [8, 128], strides = [1, 1]} : vector<8x384xf32> to vector<8x128xf32>
    %38 = vector.extract_strided_slice %20 {offsets = [0, 256], sizes = [8, 128], strides = [1, 1]} : vector<8x384xf32> to vector<8x128xf32>
    %39 = arith.mulf %28, %38 : vector<8x128xf32>
    %40 = arith.addf %37, %39 : vector<8x128xf32>
    %41 = math.tanh %40 : vector<8x128xf32>
    %cst_24 = arith.constant 1.000000e+00 : f32
    %42 = vector.broadcast %cst_24 : f32 to vector<8x128xf32>
    %43 = arith.subf %42, %36 : vector<8x128xf32>
    %44 = arith.mulf %43, %41 : vector<8x128xf32>
    %45 = arith.mulf %36, %10 : vector<8x128xf32>
    %46 = arith.addf %44, %45 : vector<8x128xf32>
    %47 = arith.subf %46, %10 : vector<8x128xf32>
    %48 = arith.mulf %15, %47 : vector<8x128xf32>
    %49 = arith.addf %10, %48 : vector<8x128xf32>
    %50 = arith.mulf %15, %46 : vector<8x128xf32>
    %51 = vector.extract_strided_slice %50 {offsets = [0, 0], sizes = [8, 64], strides = [1, 1]} : vector<8x128xf32> to vector<8x64xf32>
    %c0_25 = arith.constant 0 : index
    %c0_26 = arith.constant 0 : index
    %52 = vector.load %arg18[%c0_25, %c0_26] : memref<64x64xf32, #tpu.memory_space<vmem>>, vector<8x64xf32>
    tpu.vector_store %arg18[%c0_25, %c0_26], %51 {strides = array<i32>} : memref<64x64xf32, #tpu.memory_space<vmem>>, vector<8x64xf32>,
    %53 = vector.extract_strided_slice %50 {offsets = [0, 64], sizes = [8, 64], strides = [1, 1]} : vector<8x128xf32> to vector<8x64xf32>
    %c56_27 = arith.constant 56 : index
    %c0_28 = arith.constant 0 : index
    %54 = vector.load %arg19[%c56_27, %c0_28] : memref<64x64xf32, #tpu.memory_space<vmem>>, vector<8x64xf32>
    tpu.vector_store %arg19[%c56_27, %c0_28], %53 {strides = array<i32>} : memref<64x64xf32, #tpu.memory_space<vmem>>, vector<8x64xf32>,
    %c8 = arith.constant 8 : index
    %c0_29 = arith.constant 0 : index
    %55 = vector.load %arg16[%c8, %c0_29] : memref<64x384xf32, #tpu.memory_space<vmem>>, vector<8x384xf32>
    %c48 = arith.constant 48 : index
    %c0_30 = arith.constant 0 : index
    %56 = vector.load %arg16[%c48, %c0_30] : memref<64x384xf32, #tpu.memory_space<vmem>>, vector<8x384xf32>
    %57 = arith.select %2, %55, %56 : vector<8x384xi1>, vector<8x384xf32>
    %c1 = arith.constant 1 : index
    %c0_31 = arith.constant 0 : index
    %c0_32 = arith.constant 0 : index
    %58 = vector.load %arg1[%c1, %c0_31, %c0_32] : memref<8x8x128xf32, #tpu.memory_space<vmem>>, vector<1x8x128xf32>
    %59 = vector.shape_cast %58 : vector<1x8x128xf32> to vector<8x128xf32>
    %c0_33 = arith.constant 0 : index
    %c0_34 = arith.constant 0 : index
    %60 = vector.load %arg5[%c0_33, %c0_34] : memref<128x384xf32, #tpu.memory_space<vmem>>, vector<128x384xf32>
    %cst_35 = arith.constant dense<0.000000e+00> : vector<8x384xf32>
    %61 = tpu.matmul %49, %60, %cst_35 {dimension_numbers = #tpu.dot_dimension_numbers<[1], [0], [0], [1], [0, 0, 1, 1], [], []>} : vector<8x128xf32>, vector<128x384xf32>, vector<8x384xf32> -> vector<8x384xf32>
    %c0_36 = arith.constant 0 : index
    %c0_37 = arith.constant 0 : index
    %62 = vector.load %arg6[%c0_36, %c0_37] : memref<1x384xf32, #tpu.memory_space<vmem>>, vector<1x384xf32>
    %63 = vector.broadcast %62 : vector<1x384xf32> to vector<8x384xf32>
    %64 = arith.addf %61, %63 : vector<8x384xf32>
    %65 = vector.extract_strided_slice %57 {offsets = [0, 0], sizes = [8, 128], strides = [1, 1]} : vector<8x384xf32> to vector<8x128xf32>
    %66 = vector.extract_strided_slice %64 {offsets = [0, 0], sizes = [8, 128], strides = [1, 1]} : vector<8x384xf32> to vector<8x128xf32>
    %67 = arith.addf %65, %66 : vector<8x128xf32>
    %68 = arith.negf %67 : vector<8x128xf32>
    %69 = math.exp %68 : vector<8x128xf32>
    %cst_38 = arith.constant 1.000000e+00 : f32
    %70 = vector.broadcast %cst_38 : f32 to vector<8x128xf32>
    %71 = arith.addf %70, %69 : vector<8x128xf32>
    %72 = arith.divf %70, %71 : vector<8x128xf32>
    %73 = vector.extract_strided_slice %57 {offsets = [0, 128], sizes = [8, 128], strides = [1, 1]} : vector<8x384xf32> to vector<8x128xf32>
    %74 = vector.extract_strided_slice %64 {offsets = [0, 128], sizes = [8, 128], strides = [1, 1]} : vector<8x384xf32> to vector<8x128xf32>
    %75 = arith.addf %73, %74 : vector<8x128xf32>
    %76 = arith.negf %75 : vector<8x128xf32>
    %77 = math.exp %76 : vector<8x128xf32>
    %cst_39 = arith.constant 1.000000e+00 : f32
    %78 = vector.broadcast %cst_39 : f32 to vector<8x128xf32>
    %79 = arith.addf %78, %77 : vector<8x128xf32>
    %80 = arith.divf %78, %79 : vector<8x128xf32>
    %81 = vector.extract_strided_slice %57 {offsets = [0, 256], sizes = [8, 128], strides = [1, 1]} : vector<8x384xf32> to vector<8x128xf32>
    %82 = vector.extract_strided_slice %64 {offsets = [0, 256], sizes = [8, 128], strides = [1, 1]} : vector<8x384xf32> to vector<8x128xf32>
    %83 = arith.mulf %72, %82 : vector<8x128xf32>
    %84 = arith.addf %81, %83 : vector<8x128xf32>
    %85 = math.tanh %84 : vector<8x128xf32>
    %cst_40 = arith.constant 1.000000e+00 : f32
    %86 = vector.broadcast %cst_40 : f32 to vector<8x128xf32>
    %87 = arith.subf %86, %80 : vector<8x128xf32>
    %88 = arith.mulf %87, %85 : vector<8x128xf32>
    %89 = arith.mulf %80, %49 : vector<8x128xf32>
    %90 = arith.addf %88, %89 : vector<8x128xf32>
    %91 = arith.subf %90, %49 : vector<8x128xf32>
    %92 = arith.mulf %59, %91 : vector<8x128xf32>
    %93 = arith.addf %49, %92 : vector<8x128xf32>
    %94 = arith.mulf %59, %90 : vector<8x128xf32>
    %95 = vector.extract_strided_slice %94 {offsets = [0, 0], sizes = [8, 64], strides = [1, 1]} : vector<8x128xf32> to vector<8x64xf32>
    %c8_41 = arith.constant 8 : index
    %c0_42 = arith.constant 0 : index
    %96 = vector.load %arg18[%c8_41, %c0_42] : memref<64x64xf32, #tpu.memory_space<vmem>>, vector<8x64xf32>
    tpu.vector_store %arg18[%c8_41, %c0_42], %95 {strides = array<i32>} : memref<64x64xf32, #tpu.memory_space<vmem>>, vector<8x64xf32>,
    %97 = vector.extract_strided_slice %94 {offsets = [0, 64], sizes = [8, 64], strides = [1, 1]} : vector<8x128xf32> to vector<8x64xf32>
    %c48_43 = arith.constant 48 : index
    %c0_44 = arith.constant 0 : index
    %98 = vector.load %arg19[%c48_43, %c0_44] : memref<64x64xf32, #tpu.memory_space<vmem>>, vector<8x64xf32>
    tpu.vector_store %arg19[%c48_43, %c0_44], %97 {strides = array<i32>} : memref<64x64xf32, #tpu.memory_space<vmem>>, vector<8x64xf32>,
    %c16 = arith.constant 16 : index
    %c0_45 = arith.constant 0 : index
    %99 = vector.load %arg16[%c16, %c0_45] : memref<64x384xf32, #tpu.memory_space<vmem>>, vector<8x384xf32>
    %c40 = arith.constant 40 : index
    %c0_46 = arith.constant 0 : index
    %100 = vector.load %arg16[%c40, %c0_46] : memref<64x384xf32, #tpu.memory_space<vmem>>, vector<8x384xf32>
    %101 = arith.select %2, %99, %100 : vector<8x384xi1>, vector<8x384xf32>
    %c2 = arith.constant 2 : index
    %c0_47 = arith.constant 0 : index
    %c0_48 = arith.constant 0 : index
    %102 = vector.load %arg1[%c2, %c0_47, %c0_48] : memref<8x8x128xf32, #tpu.memory_space<vmem>>, vector<1x8x128xf32>
    %103 = vector.shape_cast %102 : vector<1x8x128xf32> to vector<8x128xf32>
    %c0_49 = arith.constant 0 : index
    %c0_50 = arith.constant 0 : index
    %104 = vector.load %arg5[%c0_49, %c0_50] : memref<128x384xf32, #tpu.memory_space<vmem>>, vector<128x384xf32>
    %cst_51 = arith.constant dense<0.000000e+00> : vector<8x384xf32>
    %105 = tpu.matmul %93, %104, %cst_51 {dimension_numbers = #tpu.dot_dimension_numbers<[1], [0], [0], [1], [0, 0, 1, 1], [], []>} : vector<8x128xf32>, vector<128x384xf32>, vector<8x384xf32> -> vector<8x384xf32>
    %c0_52 = arith.constant 0 : index
    %c0_53 = arith.constant 0 : index
    %106 = vector.load %arg6[%c0_52, %c0_53] : memref<1x384xf32, #tpu.memory_space<vmem>>, vector<1x384xf32>
    %107 = vector.broadcast %106 : vector<1x384xf32> to vector<8x384xf32>
    %108 = arith.addf %105, %107 : vector<8x384xf32>
    %109 = vector.extract_strided_slice %101 {offsets = [0, 0], sizes = [8, 128], strides = [1, 1]} : vector<8x384xf32> to vector<8x128xf32>
    %110 = vector.extract_strided_slice %108 {offsets = [0, 0], sizes = [8, 128], strides = [1, 1]} : vector<8x384xf32> to vector<8x128xf32>
    %111 = arith.addf %109, %110 : vector<8x128xf32>
    %112 = arith.negf %111 : vector<8x128xf32>
    %113 = math.exp %112 : vector<8x128xf32>
    %cst_54 = arith.constant 1.000000e+00 : f32
    %114 = vector.broadcast %cst_54 : f32 to vector<8x128xf32>
    %115 = arith.addf %114, %113 : vector<8x128xf32>
    %116 = arith.divf %114, %115 : vector<8x128xf32>
    %117 = vector.extract_strided_slice %101 {offsets = [0, 128], sizes = [8, 128], strides = [1, 1]} : vector<8x384xf32> to vector<8x128xf32>
    %118 = vector.extract_strided_slice %108 {offsets = [0, 128], sizes = [8, 128], strides = [1, 1]} : vector<8x384xf32> to vector<8x128xf32>
    %119 = arith.addf %117, %118 : vector<8x128xf32>
    %120 = arith.negf %119 : vector<8x128xf32>
    %121 = math.exp %120 : vector<8x128xf32>
    %cst_55 = arith.constant 1.000000e+00 : f32
    %122 = vector.broadcast %cst_55 : f32 to vector<8x128xf32>
    %123 = arith.addf %122, %121 : vector<8x128xf32>
    %124 = arith.divf %122, %123 : vector<8x128xf32>
    %125 = vector.extract_strided_slice %101 {offsets = [0, 256], sizes = [8, 128], strides = [1, 1]} : vector<8x384xf32> to vector<8x128xf32>
    %126 = vector.extract_strided_slice %108 {offsets = [0, 256], sizes = [8, 128], strides = [1, 1]} : vector<8x384xf32> to vector<8x128xf32>
    %127 = arith.mulf %116, %126 : vector<8x128xf32>
    %128 = arith.addf %125, %127 : vector<8x128xf32>
    %129 = math.tanh %128 : vector<8x128xf32>
    %cst_56 = arith.constant 1.000000e+00 : f32
    %130 = vector.broadcast %cst_56 : f32 to vector<8x128xf32>
    %131 = arith.subf %130, %124 : vector<8x128xf32>
    %132 = arith.mulf %131, %129 : vector<8x128xf32>
    %133 = arith.mulf %124, %93 : vector<8x128xf32>
    %134 = arith.addf %132, %133 : vector<8x128xf32>
    %135 = arith.subf %134, %93 : vector<8x128xf32>
    %136 = arith.mulf %103, %135 : vector<8x128xf32>
    %137 = arith.addf %93, %136 : vector<8x128xf32>
    %138 = arith.mulf %103, %134 : vector<8x128xf32>
    %139 = vector.extract_strided_slice %138 {offsets = [0, 0], sizes = [8, 64], strides = [1, 1]} : vector<8x128xf32> to vector<8x64xf32>
    %c16_57 = arith.constant 16 : index
    %c0_58 = arith.constant 0 : index
    %140 = vector.load %arg18[%c16_57, %c0_58] : memref<64x64xf32, #tpu.memory_space<vmem>>, vector<8x64xf32>
    tpu.vector_store %arg18[%c16_57, %c0_58], %139 {strides = array<i32>} : memref<64x64xf32, #tpu.memory_space<vmem>>, vector<8x64xf32>,
    %141 = vector.extract_strided_slice %138 {offsets = [0, 64], sizes = [8, 64], strides = [1, 1]} : vector<8x128xf32> to vector<8x64xf32>
    %c40_59 = arith.constant 40 : index
    %c0_60 = arith.constant 0 : index
    %142 = vector.load %arg19[%c40_59, %c0_60] : memref<64x64xf32, #tpu.memory_space<vmem>>, vector<8x64xf32>
    tpu.vector_store %arg19[%c40_59, %c0_60], %141 {strides = array<i32>} : memref<64x64xf32, #tpu.memory_space<vmem>>, vector<8x64xf32>,
    %c24 = arith.constant 24 : index
    %c0_61 = arith.constant 0 : index
    %143 = vector.load %arg16[%c24, %c0_61] : memref<64x384xf32, #tpu.memory_space<vmem>>, vector<8x384xf32>
    %c32 = arith.constant 32 : index
    %c0_62 = arith.constant 0 : index
    %144 = vector.load %arg16[%c32, %c0_62] : memref<64x384xf32, #tpu.memory_space<vmem>>, vector<8x384xf32>
    %145 = arith.select %2, %143, %144 : vector<8x384xi1>, vector<8x384xf32>
    %c3 = arith.constant 3 : index
    %c0_63 = arith.constant 0 : index
    %c0_64 = arith.constant 0 : index
    %146 = vector.load %arg1[%c3, %c0_63, %c0_64] : memref<8x8x128xf32, #tpu.memory_space<vmem>>, vector<1x8x128xf32>
    %147 = vector.shape_cast %146 : vector<1x8x128xf32> to vector<8x128xf32>
    %c0_65 = arith.constant 0 : index
    %c0_66 = arith.constant 0 : index
    %148 = vector.load %arg5[%c0_65, %c0_66] : memref<128x384xf32, #tpu.memory_space<vmem>>, vector<128x384xf32>
    %cst_67 = arith.constant dense<0.000000e+00> : vector<8x384xf32>
    %149 = tpu.matmul %137, %148, %cst_67 {dimension_numbers = #tpu.dot_dimension_numbers<[1], [0], [0], [1], [0, 0, 1, 1], [], []>} : vector<8x128xf32>, vector<128x384xf32>, vector<8x384xf32> -> vector<8x384xf32>
    %c0_68 = arith.constant 0 : index
    %c0_69 = arith.constant 0 : index
    %150 = vector.load %arg6[%c0_68, %c0_69] : memref<1x384xf32, #tpu.memory_space<vmem>>, vector<1x384xf32>
    %151 = vector.broadcast %150 : vector<1x384xf32> to vector<8x384xf32>
    %152 = arith.addf %149, %151 : vector<8x384xf32>
    %153 = vector.extract_strided_slice %145 {offsets = [0, 0], sizes = [8, 128], strides = [1, 1]} : vector<8x384xf32> to vector<8x128xf32>
    %154 = vector.extract_strided_slice %152 {offsets = [0, 0], sizes = [8, 128], strides = [1, 1]} : vector<8x384xf32> to vector<8x128xf32>
    %155 = arith.addf %153, %154 : vector<8x128xf32>
    %156 = arith.negf %155 : vector<8x128xf32>
    %157 = math.exp %156 : vector<8x128xf32>
    %cst_70 = arith.constant 1.000000e+00 : f32
    %158 = vector.broadcast %cst_70 : f32 to vector<8x128xf32>
    %159 = arith.addf %158, %157 : vector<8x128xf32>
    %160 = arith.divf %158, %159 : vector<8x128xf32>
    %161 = vector.extract_strided_slice %145 {offsets = [0, 128], sizes = [8, 128], strides = [1, 1]} : vector<8x384xf32> to vector<8x128xf32>
    %162 = vector.extract_strided_slice %152 {offsets = [0, 128], sizes = [8, 128], strides = [1, 1]} : vector<8x384xf32> to vector<8x128xf32>
    %163 = arith.addf %161, %162 : vector<8x128xf32>
    %164 = arith.negf %163 : vector<8x128xf32>
    %165 = math.exp %164 : vector<8x128xf32>
    %cst_71 = arith.constant 1.000000e+00 : f32
    %166 = vector.broadcast %cst_71 : f32 to vector<8x128xf32>
    %167 = arith.addf %166, %165 : vector<8x128xf32>
    %168 = arith.divf %166, %167 : vector<8x128xf32>
    %169 = vector.extract_strided_slice %145 {offsets = [0, 256], sizes = [8, 128], strides = [1, 1]} : vector<8x384xf32> to vector<8x128xf32>
    %170 = vector.extract_strided_slice %152 {offsets = [0, 256], sizes = [8, 128], strides = [1, 1]} : vector<8x384xf32> to vector<8x128xf32>
    %171 = arith.mulf %160, %170 : vector<8x128xf32>
    %172 = arith.addf %169, %171 : vector<8x128xf32>
    %173 = math.tanh %172 : vector<8x128xf32>
    %cst_72 = arith.constant 1.000000e+00 : f32
    %174 = vector.broadcast %cst_72 : f32 to vector<8x128xf32>
    %175 = arith.subf %174, %168 : vector<8x128xf32>
    %176 = arith.mulf %175, %173 : vector<8x128xf32>
    %177 = arith.mulf %168, %137 : vector<8x128xf32>
    %178 = arith.addf %176, %177 : vector<8x128xf32>
    %179 = arith.subf %178, %137 : vector<8x128xf32>
    %180 = arith.mulf %147, %179 : vector<8x128xf32>
    %181 = arith.addf %137, %180 : vector<8x128xf32>
    %182 = arith.mulf %147, %178 : vector<8x128xf32>
    %183 = vector.extract_strided_slice %182 {offsets = [0, 0], sizes = [8, 64], strides = [1, 1]} : vector<8x128xf32> to vector<8x64xf32>
    %c24_73 = arith.constant 24 : index
    %c0_74 = arith.constant 0 : index
    %184 = vector.load %arg18[%c24_73, %c0_74] : memref<64x64xf32, #tpu.memory_space<vmem>>, vector<8x64xf32>
    tpu.vector_store %arg18[%c24_73, %c0_74], %183 {strides = array<i32>} : memref<64x64xf32, #tpu.memory_space<vmem>>, vector<8x64xf32>,
    %185 = vector.extract_strided_slice %182 {offsets = [0, 64], sizes = [8, 64], strides = [1, 1]} : vector<8x128xf32> to vector<8x64xf32>
    %c32_75 = arith.constant 32 : index
    %c0_76 = arith.constant 0 : index
    %186 = vector.load %arg19[%c32_75, %c0_76] : memref<64x64xf32, #tpu.memory_space<vmem>>, vector<8x64xf32>
    tpu.vector_store %arg19[%c32_75, %c0_76], %185 {strides = array<i32>} : memref<64x64xf32, #tpu.memory_space<vmem>>, vector<8x64xf32>,
    %c32_77 = arith.constant 32 : index
    %c0_78 = arith.constant 0 : index
    %187 = vector.load %arg16[%c32_77, %c0_78] : memref<64x384xf32, #tpu.memory_space<vmem>>, vector<8x384xf32>
    %c24_79 = arith.constant 24 : index
    %c0_80 = arith.constant 0 : index
    %188 = vector.load %arg16[%c24_79, %c0_80] : memref<64x384xf32, #tpu.memory_space<vmem>>, vector<8x384xf32>
    %189 = arith.select %2, %187, %188 : vector<8x384xi1>, vector<8x384xf32>
    %c4 = arith.constant 4 : index
    %c0_81 = arith.constant 0 : index
    %c0_82 = arith.constant 0 : index
    %190 = vector.load %arg1[%c4, %c0_81, %c0_82] : memref<8x8x128xf32, #tpu.memory_space<vmem>>, vector<1x8x128xf32>
    %191 = vector.shape_cast %190 : vector<1x8x128xf32> to vector<8x128xf32>
    %c0_83 = arith.constant 0 : index
    %c0_84 = arith.constant 0 : index
    %192 = vector.load %arg5[%c0_83, %c0_84] : memref<128x384xf32, #tpu.memory_space<vmem>>, vector<128x384xf32>
    %cst_85 = arith.constant dense<0.000000e+00> : vector<8x384xf32>
    %193 = tpu.matmul %181, %192, %cst_85 {dimension_numbers = #tpu.dot_dimension_numbers<[1], [0], [0], [1], [0, 0, 1, 1], [], []>} : vector<8x128xf32>, vector<128x384xf32>, vector<8x384xf32> -> vector<8x384xf32>
    %c0_86 = arith.constant 0 : index
    %c0_87 = arith.constant 0 : index
    %194 = vector.load %arg6[%c0_86, %c0_87] : memref<1x384xf32, #tpu.memory_space<vmem>>, vector<1x384xf32>
    %195 = vector.broadcast %194 : vector<1x384xf32> to vector<8x384xf32>
    %196 = arith.addf %193, %195 : vector<8x384xf32>
    %197 = vector.extract_strided_slice %189 {offsets = [0, 0], sizes = [8, 128], strides = [1, 1]} : vector<8x384xf32> to vector<8x128xf32>
    %198 = vector.extract_strided_slice %196 {offsets = [0, 0], sizes = [8, 128], strides = [1, 1]} : vector<8x384xf32> to vector<8x128xf32>
    %199 = arith.addf %197, %198 : vector<8x128xf32>
    %200 = arith.negf %199 : vector<8x128xf32>
    %201 = math.exp %200 : vector<8x128xf32>
    %cst_88 = arith.constant 1.000000e+00 : f32
    %202 = vector.broadcast %cst_88 : f32 to vector<8x128xf32>
    %203 = arith.addf %202, %201 : vector<8x128xf32>
    %204 = arith.divf %202, %203 : vector<8x128xf32>
    %205 = vector.extract_strided_slice %189 {offsets = [0, 128], sizes = [8, 128], strides = [1, 1]} : vector<8x384xf32> to vector<8x128xf32>
    %206 = vector.extract_strided_slice %196 {offsets = [0, 128], sizes = [8, 128], strides = [1, 1]} : vector<8x384xf32> to vector<8x128xf32>
    %207 = arith.addf %205, %206 : vector<8x128xf32>
    %208 = arith.negf %207 : vector<8x128xf32>
    %209 = math.exp %208 : vector<8x128xf32>
    %cst_89 = arith.constant 1.000000e+00 : f32
    %210 = vector.broadcast %cst_89 : f32 to vector<8x128xf32>
    %211 = arith.addf %210, %209 : vector<8x128xf32>
    %212 = arith.divf %210, %211 : vector<8x128xf32>
    %213 = vector.extract_strided_slice %189 {offsets = [0, 256], sizes = [8, 128], strides = [1, 1]} : vector<8x384xf32> to vector<8x128xf32>
    %214 = vector.extract_strided_slice %196 {offsets = [0, 256], sizes = [8, 128], strides = [1, 1]} : vector<8x384xf32> to vector<8x128xf32>
    %215 = arith.mulf %204, %214 : vector<8x128xf32>
    %216 = arith.addf %213, %215 : vector<8x128xf32>
    %217 = math.tanh %216 : vector<8x128xf32>
    %cst_90 = arith.constant 1.000000e+00 : f32
    %218 = vector.broadcast %cst_90 : f32 to vector<8x128xf32>
    %219 = arith.subf %218, %212 : vector<8x128xf32>
    %220 = arith.mulf %219, %217 : vector<8x128xf32>
    %221 = arith.mulf %212, %181 : vector<8x128xf32>
    %222 = arith.addf %220, %221 : vector<8x128xf32>
    %223 = arith.subf %222, %181 : vector<8x128xf32>
    %224 = arith.mulf %191, %223 : vector<8x128xf32>
    %225 = arith.addf %181, %224 : vector<8x128xf32>
    %226 = arith.mulf %191, %222 : vector<8x128xf32>
    %227 = vector.extract_strided_slice %226 {offsets = [0, 0], sizes = [8, 64], strides = [1, 1]} : vector<8x128xf32> to vector<8x64xf32>
    %c32_91 = arith.constant 32 : index
    %c0_92 = arith.constant 0 : index
    %228 = vector.load %arg18[%c32_91, %c0_92] : memref<64x64xf32, #tpu.memory_space<vmem>>, vector<8x64xf32>
    tpu.vector_store %arg18[%c32_91, %c0_92], %227 {strides = array<i32>} : memref<64x64xf32, #tpu.memory_space<vmem>>, vector<8x64xf32>,
    %229 = vector.extract_strided_slice %226 {offsets = [0, 64], sizes = [8, 64], strides = [1, 1]} : vector<8x128xf32> to vector<8x64xf32>
    %c24_93 = arith.constant 24 : index
    %c0_94 = arith.constant 0 : index
    %230 = vector.load %arg19[%c24_93, %c0_94] : memref<64x64xf32, #tpu.memory_space<vmem>>, vector<8x64xf32>
    tpu.vector_store %arg19[%c24_93, %c0_94], %229 {strides = array<i32>} : memref<64x64xf32, #tpu.memory_space<vmem>>, vector<8x64xf32>,
    %c40_95 = arith.constant 40 : index
    %c0_96 = arith.constant 0 : index
    %231 = vector.load %arg16[%c40_95, %c0_96] : memref<64x384xf32, #tpu.memory_space<vmem>>, vector<8x384xf32>
    %c16_97 = arith.constant 16 : index
    %c0_98 = arith.constant 0 : index
    %232 = vector.load %arg16[%c16_97, %c0_98] : memref<64x384xf32, #tpu.memory_space<vmem>>, vector<8x384xf32>
    %233 = arith.select %2, %231, %232 : vector<8x384xi1>, vector<8x384xf32>
    %c5 = arith.constant 5 : index
    %c0_99 = arith.constant 0 : index
    %c0_100 = arith.constant 0 : index
    %234 = vector.load %arg1[%c5, %c0_99, %c0_100] : memref<8x8x128xf32, #tpu.memory_space<vmem>>, vector<1x8x128xf32>
    %235 = vector.shape_cast %234 : vector<1x8x128xf32> to vector<8x128xf32>
    %c0_101 = arith.constant 0 : index
    %c0_102 = arith.constant 0 : index
    %236 = vector.load %arg5[%c0_101, %c0_102] : memref<128x384xf32, #tpu.memory_space<vmem>>, vector<128x384xf32>
    %cst_103 = arith.constant dense<0.000000e+00> : vector<8x384xf32>
    %237 = tpu.matmul %225, %236, %cst_103 {dimension_numbers = #tpu.dot_dimension_numbers<[1], [0], [0], [1], [0, 0, 1, 1], [], []>} : vector<8x128xf32>, vector<128x384xf32>, vector<8x384xf32> -> vector<8x384xf32>
    %c0_104 = arith.constant 0 : index
    %c0_105 = arith.constant 0 : index
    %238 = vector.load %arg6[%c0_104, %c0_105] : memref<1x384xf32, #tpu.memory_space<vmem>>, vector<1x384xf32>
    %239 = vector.broadcast %238 : vector<1x384xf32> to vector<8x384xf32>
    %240 = arith.addf %237, %239 : vector<8x384xf32>
    %241 = vector.extract_strided_slice %233 {offsets = [0, 0], sizes = [8, 128], strides = [1, 1]} : vector<8x384xf32> to vector<8x128xf32>
    %242 = vector.extract_strided_slice %240 {offsets = [0, 0], sizes = [8, 128], strides = [1, 1]} : vector<8x384xf32> to vector<8x128xf32>
    %243 = arith.addf %241, %242 : vector<8x128xf32>
    %244 = arith.negf %243 : vector<8x128xf32>
    %245 = math.exp %244 : vector<8x128xf32>
    %cst_106 = arith.constant 1.000000e+00 : f32
    %246 = vector.broadcast %cst_106 : f32 to vector<8x128xf32>
    %247 = arith.addf %246, %245 : vector<8x128xf32>
    %248 = arith.divf %246, %247 : vector<8x128xf32>
    %249 = vector.extract_strided_slice %233 {offsets = [0, 128], sizes = [8, 128], strides = [1, 1]} : vector<8x384xf32> to vector<8x128xf32>
    %250 = vector.extract_strided_slice %240 {offsets = [0, 128], sizes = [8, 128], strides = [1, 1]} : vector<8x384xf32> to vector<8x128xf32>
    %251 = arith.addf %249, %250 : vector<8x128xf32>
    %252 = arith.negf %251 : vector<8x128xf32>
    %253 = math.exp %252 : vector<8x128xf32>
    %cst_107 = arith.constant 1.000000e+00 : f32
    %254 = vector.broadcast %cst_107 : f32 to vector<8x128xf32>
    %255 = arith.addf %254, %253 : vector<8x128xf32>
    %256 = arith.divf %254, %255 : vector<8x128xf32>
    %257 = vector.extract_strided_slice %233 {offsets = [0, 256], sizes = [8, 128], strides = [1, 1]} : vector<8x384xf32> to vector<8x128xf32>
    %258 = vector.extract_strided_slice %240 {offsets = [0, 256], sizes = [8, 128], strides = [1, 1]} : vector<8x384xf32> to vector<8x128xf32>
    %259 = arith.mulf %248, %258 : vector<8x128xf32>
    %260 = arith.addf %257, %259 : vector<8x128xf32>
    %261 = math.tanh %260 : vector<8x128xf32>
    %cst_108 = arith.constant 1.000000e+00 : f32
    %262 = vector.broadcast %cst_108 : f32 to vector<8x128xf32>
    %263 = arith.subf %262, %256 : vector<8x128xf32>
    %264 = arith.mulf %263, %261 : vector<8x128xf32>
    %265 = arith.mulf %256, %225 : vector<8x128xf32>
    %266 = arith.addf %264, %265 : vector<8x128xf32>
    %267 = arith.subf %266, %225 : vector<8x128xf32>
    %268 = arith.mulf %235, %267 : vector<8x128xf32>
    %269 = arith.addf %225, %268 : vector<8x128xf32>
    %270 = arith.mulf %235, %266 : vector<8x128xf32>
    %271 = vector.extract_strided_slice %270 {offsets = [0, 0], sizes = [8, 64], strides = [1, 1]} : vector<8x128xf32> to vector<8x64xf32>
    %c40_109 = arith.constant 40 : index
    %c0_110 = arith.constant 0 : index
    %272 = vector.load %arg18[%c40_109, %c0_110] : memref<64x64xf32, #tpu.memory_space<vmem>>, vector<8x64xf32>
    tpu.vector_store %arg18[%c40_109, %c0_110], %271 {strides = array<i32>} : memref<64x64xf32, #tpu.memory_space<vmem>>, vector<8x64xf32>,
    %273 = vector.extract_strided_slice %270 {offsets = [0, 64], sizes = [8, 64], strides = [1, 1]} : vector<8x128xf32> to vector<8x64xf32>
    %c16_111 = arith.constant 16 : index
    %c0_112 = arith.constant 0 : index
    %274 = vector.load %arg19[%c16_111, %c0_112] : memref<64x64xf32, #tpu.memory_space<vmem>>, vector<8x64xf32>
    tpu.vector_store %arg19[%c16_111, %c0_112], %273 {strides = array<i32>} : memref<64x64xf32, #tpu.memory_space<vmem>>, vector<8x64xf32>,
    %c48_113 = arith.constant 48 : index
    %c0_114 = arith.constant 0 : index
    %275 = vector.load %arg16[%c48_113, %c0_114] : memref<64x384xf32, #tpu.memory_space<vmem>>, vector<8x384xf32>
    %c8_115 = arith.constant 8 : index
    %c0_116 = arith.constant 0 : index
    %276 = vector.load %arg16[%c8_115, %c0_116] : memref<64x384xf32, #tpu.memory_space<vmem>>, vector<8x384xf32>
    %277 = arith.select %2, %275, %276 : vector<8x384xi1>, vector<8x384xf32>
    %c6 = arith.constant 6 : index
    %c0_117 = arith.constant 0 : index
    %c0_118 = arith.constant 0 : index
    %278 = vector.load %arg1[%c6, %c0_117, %c0_118] : memref<8x8x128xf32, #tpu.memory_space<vmem>>, vector<1x8x128xf32>
    %279 = vector.shape_cast %278 : vector<1x8x128xf32> to vector<8x128xf32>
    %c0_119 = arith.constant 0 : index
    %c0_120 = arith.constant 0 : index
    %280 = vector.load %arg5[%c0_119, %c0_120] : memref<128x384xf32, #tpu.memory_space<vmem>>, vector<128x384xf32>
    %cst_121 = arith.constant dense<0.000000e+00> : vector<8x384xf32>
    %281 = tpu.matmul %269, %280, %cst_121 {dimension_numbers = #tpu.dot_dimension_numbers<[1], [0], [0], [1], [0, 0, 1, 1], [], []>} : vector<8x128xf32>, vector<128x384xf32>, vector<8x384xf32> -> vector<8x384xf32>
    %c0_122 = arith.constant 0 : index
    %c0_123 = arith.constant 0 : index
    %282 = vector.load %arg6[%c0_122, %c0_123] : memref<1x384xf32, #tpu.memory_space<vmem>>, vector<1x384xf32>
    %283 = vector.broadcast %282 : vector<1x384xf32> to vector<8x384xf32>
    %284 = arith.addf %281, %283 : vector<8x384xf32>
    %285 = vector.extract_strided_slice %277 {offsets = [0, 0], sizes = [8, 128], strides = [1, 1]} : vector<8x384xf32> to vector<8x128xf32>
    %286 = vector.extract_strided_slice %284 {offsets = [0, 0], sizes = [8, 128], strides = [1, 1]} : vector<8x384xf32> to vector<8x128xf32>
    %287 = arith.addf %285, %286 : vector<8x128xf32>
    %288 = arith.negf %287 : vector<8x128xf32>
    %289 = math.exp %288 : vector<8x128xf32>
    %cst_124 = arith.constant 1.000000e+00 : f32
    %290 = vector.broadcast %cst_124 : f32 to vector<8x128xf32>
    %291 = arith.addf %290, %289 : vector<8x128xf32>
    %292 = arith.divf %290, %291 : vector<8x128xf32>
    %293 = vector.extract_strided_slice %277 {offsets = [0, 128], sizes = [8, 128], strides = [1, 1]} : vector<8x384xf32> to vector<8x128xf32>
    %294 = vector.extract_strided_slice %284 {offsets = [0, 128], sizes = [8, 128], strides = [1, 1]} : vector<8x384xf32> to vector<8x128xf32>
    %295 = arith.addf %293, %294 : vector<8x128xf32>
    %296 = arith.negf %295 : vector<8x128xf32>
    %297 = math.exp %296 : vector<8x128xf32>
    %cst_125 = arith.constant 1.000000e+00 : f32
    %298 = vector.broadcast %cst_125 : f32 to vector<8x128xf32>
    %299 = arith.addf %298, %297 : vector<8x128xf32>
    %300 = arith.divf %298, %299 : vector<8x128xf32>
    %301 = vector.extract_strided_slice %277 {offsets = [0, 256], sizes = [8, 128], strides = [1, 1]} : vector<8x384xf32> to vector<8x128xf32>
    %302 = vector.extract_strided_slice %284 {offsets = [0, 256], sizes = [8, 128], strides = [1, 1]} : vector<8x384xf32> to vector<8x128xf32>
    %303 = arith.mulf %292, %302 : vector<8x128xf32>
    %304 = arith.addf %301, %303 : vector<8x128xf32>
    %305 = math.tanh %304 : vector<8x128xf32>
    %cst_126 = arith.constant 1.000000e+00 : f32
    %306 = vector.broadcast %cst_126 : f32 to vector<8x128xf32>
    %307 = arith.subf %306, %300 : vector<8x128xf32>
    %308 = arith.mulf %307, %305 : vector<8x128xf32>
    %309 = arith.mulf %300, %269 : vector<8x128xf32>
    %310 = arith.addf %308, %309 : vector<8x128xf32>
    %311 = arith.subf %310, %269 : vector<8x128xf32>
    %312 = arith.mulf %279, %311 : vector<8x128xf32>
    %313 = arith.addf %269, %312 : vector<8x128xf32>
    %314 = arith.mulf %279, %310 : vector<8x128xf32>
    %315 = vector.extract_strided_slice %314 {offsets = [0, 0], sizes = [8, 64], strides = [1, 1]} : vector<8x128xf32> to vector<8x64xf32>
    %c48_127 = arith.constant 48 : index
    %c0_128 = arith.constant 0 : index
    %316 = vector.load %arg18[%c48_127, %c0_128] : memref<64x64xf32, #tpu.memory_space<vmem>>, vector<8x64xf32>
    tpu.vector_store %arg18[%c48_127, %c0_128], %315 {strides = array<i32>} : memref<64x64xf32, #tpu.memory_space<vmem>>, vector<8x64xf32>,
    %317 = vector.extract_strided_slice %314 {offsets = [0, 64], sizes = [8, 64], strides = [1, 1]} : vector<8x128xf32> to vector<8x64xf32>
    %c8_129 = arith.constant 8 : index
    %c0_130 = arith.constant 0 : index
    %318 = vector.load %arg19[%c8_129, %c0_130] : memref<64x64xf32, #tpu.memory_space<vmem>>, vector<8x64xf32>
    tpu.vector_store %arg19[%c8_129, %c0_130], %317 {strides = array<i32>} : memref<64x64xf32, #tpu.memory_space<vmem>>, vector<8x64xf32>,
    %c56_131 = arith.constant 56 : index
    %c0_132 = arith.constant 0 : index
    %319 = vector.load %arg16[%c56_131, %c0_132] : memref<64x384xf32, #tpu.memory_space<vmem>>, vector<8x384xf32>
    %c0_133 = arith.constant 0 : index
    %c0_134 = arith.constant 0 : index
    %320 = vector.load %arg16[%c0_133, %c0_134] : memref<64x384xf32, #tpu.memory_space<vmem>>, vector<8x384xf32>
    %321 = arith.select %2, %319, %320 : vector<8x384xi1>, vector<8x384xf32>
    %c7 = arith.constant 7 : index
    %c0_135 = arith.constant 0 : index
    %c0_136 = arith.constant 0 : index
    %322 = vector.load %arg1[%c7, %c0_135, %c0_136] : memref<8x8x128xf32, #tpu.memory_space<vmem>>, vector<1x8x128xf32>
    %323 = vector.shape_cast %322 : vector<1x8x128xf32> to vector<8x128xf32>
    %c0_137 = arith.constant 0 : index
    %c0_138 = arith.constant 0 : index
    %324 = vector.load %arg5[%c0_137, %c0_138] : memref<128x384xf32, #tpu.memory_space<vmem>>, vector<128x384xf32>
    %cst_139 = arith.constant dense<0.000000e+00> : vector<8x384xf32>
    %325 = tpu.matmul %313, %324, %cst_139 {dimension_numbers = #tpu.dot_dimension_numbers<[1], [0], [0], [1], [0, 0, 1, 1], [], []>} : vector<8x128xf32>, vector<128x384xf32>, vector<8x384xf32> -> vector<8x384xf32>
    %c0_140 = arith.constant 0 : index
    %c0_141 = arith.constant 0 : index
    %326 = vector.load %arg6[%c0_140, %c0_141] : memref<1x384xf32, #tpu.memory_space<vmem>>, vector<1x384xf32>
    %327 = vector.broadcast %326 : vector<1x384xf32> to vector<8x384xf32>
    %328 = arith.addf %325, %327 : vector<8x384xf32>
    %329 = vector.extract_strided_slice %321 {offsets = [0, 0], sizes = [8, 128], strides = [1, 1]} : vector<8x384xf32> to vector<8x128xf32>
    %330 = vector.extract_strided_slice %328 {offsets = [0, 0], sizes = [8, 128], strides = [1, 1]} : vector<8x384xf32> to vector<8x128xf32>
    %331 = arith.addf %329, %330 : vector<8x128xf32>
    %332 = arith.negf %331 : vector<8x128xf32>
    %333 = math.exp %332 : vector<8x128xf32>
    %cst_142 = arith.constant 1.000000e+00 : f32
    %334 = vector.broadcast %cst_142 : f32 to vector<8x128xf32>
    %335 = arith.addf %334, %333 : vector<8x128xf32>
    %336 = arith.divf %334, %335 : vector<8x128xf32>
    %337 = vector.extract_strided_slice %321 {offsets = [0, 128], sizes = [8, 128], strides = [1, 1]} : vector<8x384xf32> to vector<8x128xf32>
    %338 = vector.extract_strided_slice %328 {offsets = [0, 128], sizes = [8, 128], strides = [1, 1]} : vector<8x384xf32> to vector<8x128xf32>
    %339 = arith.addf %337, %338 : vector<8x128xf32>
    %340 = arith.negf %339 : vector<8x128xf32>
    %341 = math.exp %340 : vector<8x128xf32>
    %cst_143 = arith.constant 1.000000e+00 : f32
    %342 = vector.broadcast %cst_143 : f32 to vector<8x128xf32>
    %343 = arith.addf %342, %341 : vector<8x128xf32>
    %344 = arith.divf %342, %343 : vector<8x128xf32>
    %345 = vector.extract_strided_slice %321 {offsets = [0, 256], sizes = [8, 128], strides = [1, 1]} : vector<8x384xf32> to vector<8x128xf32>
    %346 = vector.extract_strided_slice %328 {offsets = [0, 256], sizes = [8, 128], strides = [1, 1]} : vector<8x384xf32> to vector<8x128xf32>
    %347 = arith.mulf %336, %346 : vector<8x128xf32>
    %348 = arith.addf %345, %347 : vector<8x128xf32>
    %349 = math.tanh %348 : vector<8x128xf32>
    %cst_144 = arith.constant 1.000000e+00 : f32
    %350 = vector.broadcast %cst_144 : f32 to vector<8x128xf32>
    %351 = arith.subf %350, %344 : vector<8x128xf32>
    %352 = arith.mulf %351, %349 : vector<8x128xf32>
    %353 = arith.mulf %344, %313 : vector<8x128xf32>
    %354 = arith.addf %352, %353 : vector<8x128xf32>
    %355 = arith.mulf %323, %354 : vector<8x128xf32>
    %356 = vector.extract_strided_slice %355 {offsets = [0, 0], sizes = [8, 64], strides = [1, 1]} : vector<8x128xf32> to vector<8x64xf32>
    %c56_145 = arith.constant 56 : index
    %c0_146 = arith.constant 0 : index
    %357 = vector.load %arg18[%c56_145, %c0_146] : memref<64x64xf32, #tpu.memory_space<vmem>>, vector<8x64xf32>
    tpu.vector_store %arg18[%c56_145, %c0_146], %356 {strides = array<i32>} : memref<64x64xf32, #tpu.memory_space<vmem>>, vector<8x64xf32>,
    %358 = vector.extract_strided_slice %355 {offsets = [0, 64], sizes = [8, 64], strides = [1, 1]} : vector<8x128xf32> to vector<8x64xf32>
    %c0_147 = arith.constant 0 : index
    %c0_148 = arith.constant 0 : index
    %359 = vector.load %arg19[%c0_147, %c0_148] : memref<64x64xf32, #tpu.memory_space<vmem>>, vector<8x64xf32>
    tpu.vector_store %arg19[%c0_147, %c0_148], %358 {strides = array<i32>} : memref<64x64xf32, #tpu.memory_space<vmem>>, vector<8x64xf32>,
    %c0_149 = arith.constant 0 : index
    %c0_150 = arith.constant 0 : index
    %360 = vector.load %arg18[%c0_149, %c0_150] : memref<64x64xf32, #tpu.memory_space<vmem>>, vector<64x64xf32>
    %c0_151 = arith.constant 0 : index
    %c0_152 = arith.constant 0 : index
    %361 = vector.load %arg7[%c0_151, %c0_152] : memref<64x384xf32, #tpu.memory_space<vmem>>, vector<64x384xf32>
    %cst_153 = arith.constant dense<0.000000e+00> : vector<64x384xf32>
    %362 = tpu.matmul %360, %361, %cst_153 {dimension_numbers = #tpu.dot_dimension_numbers<[1], [0], [0], [1], [0, 0, 1, 1], [], []>} : vector<64x64xf32>, vector<64x384xf32>, vector<64x384xf32> -> vector<64x384xf32>
    %c0_154 = arith.constant 0 : index
    %c0_155 = arith.constant 0 : index
    %363 = vector.load %arg19[%c0_154, %c0_155] : memref<64x64xf32, #tpu.memory_space<vmem>>, vector<64x64xf32>
    %c0_156 = arith.constant 0 : index
    %c0_157 = arith.constant 0 : index
    %364 = vector.load %arg8[%c0_156, %c0_157] : memref<64x384xf32, #tpu.memory_space<vmem>>, vector<64x384xf32>
    %cst_158 = arith.constant dense<0.000000e+00> : vector<64x384xf32>
    %365 = tpu.matmul %363, %364, %cst_158 {dimension_numbers = #tpu.dot_dimension_numbers<[1], [0], [0], [1], [0, 0, 1, 1], [], []>} : vector<64x64xf32>, vector<64x384xf32>, vector<64x384xf32> -> vector<64x384xf32>
    %366 = arith.addf %362, %365 : vector<64x384xf32>
    %c0_159 = arith.constant 0 : index
    %c0_160 = arith.constant 0 : index
    %367 = vector.load %arg9[%c0_159, %c0_160] : memref<1x384xf32, #tpu.memory_space<vmem>>, vector<1x384xf32>
    %368 = vector.broadcast %367 : vector<1x384xf32> to vector<64x384xf32>
    %369 = arith.addf %366, %368 : vector<64x384xf32>
    %c0_161 = arith.constant 0 : index
    %c0_162 = arith.constant 0 : index
    %370 = vector.load %arg17[%c0_161, %c0_162] : memref<64x384xf32, #tpu.memory_space<vmem>>, vector<64x384xf32>
    tpu.vector_store %arg17[%c0_161, %c0_162], %369 {strides = array<i32>} : memref<64x384xf32, #tpu.memory_space<vmem>>, vector<64x384xf32>,
    %cst_163 = arith.constant 0.000000e+00 : f32
    %371 = vector.broadcast %cst_163 : f32 to vector<8x128xf32>
    %cst_164 = arith.constant 0.000000e+00 : f32
    %372 = vector.broadcast %cst_164 : f32 to vector<8x128xf32>
    %c0_165 = arith.constant 0 : index
    %c0_166 = arith.constant 0 : index
    %373 = vector.load %arg17[%c0_165, %c0_166] : memref<64x384xf32, #tpu.memory_space<vmem>>, vector<8x384xf32>
    %c56_167 = arith.constant 56 : index
    %c0_168 = arith.constant 0 : index
    %374 = vector.load %arg17[%c56_167, %c0_168] : memref<64x384xf32, #tpu.memory_space<vmem>>, vector<8x384xf32>
    %375 = arith.select %2, %373, %374 : vector<8x384xi1>, vector<8x384xf32>
    %c0_169 = arith.constant 0 : index
    %c0_170 = arith.constant 0 : index
    %c0_171 = arith.constant 0 : index
    %376 = vector.load %arg1[%c0_169, %c0_170, %c0_171] : memref<8x8x128xf32, #tpu.memory_space<vmem>>, vector<1x8x128xf32>
    %377 = vector.shape_cast %376 : vector<1x8x128xf32> to vector<8x128xf32>
    %c0_172 = arith.constant 0 : index
    %c0_173 = arith.constant 0 : index
    %378 = vector.load %arg10[%c0_172, %c0_173] : memref<128x384xf32, #tpu.memory_space<vmem>>, vector<128x384xf32>
    %cst_174 = arith.constant dense<0.000000e+00> : vector<8x384xf32>
    %379 = tpu.matmul %371, %378, %cst_174 {dimension_numbers = #tpu.dot_dimension_numbers<[1], [0], [0], [1], [0, 0, 1, 1], [], []>} : vector<8x128xf32>, vector<128x384xf32>, vector<8x384xf32> -> vector<8x384xf32>
    %c0_175 = arith.constant 0 : index
    %c0_176 = arith.constant 0 : index
    %380 = vector.load %arg11[%c0_175, %c0_176] : memref<1x384xf32, #tpu.memory_space<vmem>>, vector<1x384xf32>
    %381 = vector.broadcast %380 : vector<1x384xf32> to vector<8x384xf32>
    %382 = arith.addf %379, %381 : vector<8x384xf32>
    %383 = vector.extract_strided_slice %375 {offsets = [0, 0], sizes = [8, 128], strides = [1, 1]} : vector<8x384xf32> to vector<8x128xf32>
    %384 = vector.extract_strided_slice %382 {offsets = [0, 0], sizes = [8, 128], strides = [1, 1]} : vector<8x384xf32> to vector<8x128xf32>
    %385 = arith.addf %383, %384 : vector<8x128xf32>
    %386 = arith.negf %385 : vector<8x128xf32>
    %387 = math.exp %386 : vector<8x128xf32>
    %cst_177 = arith.constant 1.000000e+00 : f32
    %388 = vector.broadcast %cst_177 : f32 to vector<8x128xf32>
    %389 = arith.addf %388, %387 : vector<8x128xf32>
    %390 = arith.divf %388, %389 : vector<8x128xf32>
    %391 = vector.extract_strided_slice %375 {offsets = [0, 128], sizes = [8, 128], strides = [1, 1]} : vector<8x384xf32> to vector<8x128xf32>
    %392 = vector.extract_strided_slice %382 {offsets = [0, 128], sizes = [8, 128], strides = [1, 1]} : vector<8x384xf32> to vector<8x128xf32>
    %393 = arith.addf %391, %392 : vector<8x128xf32>
    %394 = arith.negf %393 : vector<8x128xf32>
    %395 = math.exp %394 : vector<8x128xf32>
    %cst_178 = arith.constant 1.000000e+00 : f32
    %396 = vector.broadcast %cst_178 : f32 to vector<8x128xf32>
    %397 = arith.addf %396, %395 : vector<8x128xf32>
    %398 = arith.divf %396, %397 : vector<8x128xf32>
    %399 = vector.extract_strided_slice %375 {offsets = [0, 256], sizes = [8, 128], strides = [1, 1]} : vector<8x384xf32> to vector<8x128xf32>
    %400 = vector.extract_strided_slice %382 {offsets = [0, 256], sizes = [8, 128], strides = [1, 1]} : vector<8x384xf32> to vector<8x128xf32>
    %401 = arith.mulf %390, %400 : vector<8x128xf32>
    %402 = arith.addf %399, %401 : vector<8x128xf32>
    %403 = math.tanh %402 : vector<8x128xf32>
    %cst_179 = arith.constant 1.000000e+00 : f32
    %404 = vector.broadcast %cst_179 : f32 to vector<8x128xf32>
    %405 = arith.subf %404, %398 : vector<8x128xf32>
    %406 = arith.mulf %405, %403 : vector<8x128xf32>
    %407 = arith.mulf %398, %371 : vector<8x128xf32>
    %408 = arith.addf %406, %407 : vector<8x128xf32>
    %409 = arith.subf %408, %371 : vector<8x128xf32>
    %410 = arith.mulf %377, %409 : vector<8x128xf32>
    %411 = arith.addf %371, %410 : vector<8x128xf32>
    %412 = arith.mulf %377, %408 : vector<8x128xf32>
    %413 = arith.addf %372, %412 : vector<8x128xf32>
    %c8_180 = arith.constant 8 : index
    %c0_181 = arith.constant 0 : index
    %414 = vector.load %arg17[%c8_180, %c0_181] : memref<64x384xf32, #tpu.memory_space<vmem>>, vector<8x384xf32>
    %c48_182 = arith.constant 48 : index
    %c0_183 = arith.constant 0 : index
    %415 = vector.load %arg17[%c48_182, %c0_183] : memref<64x384xf32, #tpu.memory_space<vmem>>, vector<8x384xf32>
    %416 = arith.select %2, %414, %415 : vector<8x384xi1>, vector<8x384xf32>
    %c1_184 = arith.constant 1 : index
    %c0_185 = arith.constant 0 : index
    %c0_186 = arith.constant 0 : index
    %417 = vector.load %arg1[%c1_184, %c0_185, %c0_186] : memref<8x8x128xf32, #tpu.memory_space<vmem>>, vector<1x8x128xf32>
    %418 = vector.shape_cast %417 : vector<1x8x128xf32> to vector<8x128xf32>
    %c0_187 = arith.constant 0 : index
    %c0_188 = arith.constant 0 : index
    %419 = vector.load %arg10[%c0_187, %c0_188] : memref<128x384xf32, #tpu.memory_space<vmem>>, vector<128x384xf32>
    %cst_189 = arith.constant dense<0.000000e+00> : vector<8x384xf32>
    %420 = tpu.matmul %411, %419, %cst_189 {dimension_numbers = #tpu.dot_dimension_numbers<[1], [0], [0], [1], [0, 0, 1, 1], [], []>} : vector<8x128xf32>, vector<128x384xf32>, vector<8x384xf32> -> vector<8x384xf32>
    %c0_190 = arith.constant 0 : index
    %c0_191 = arith.constant 0 : index
    %421 = vector.load %arg11[%c0_190, %c0_191] : memref<1x384xf32, #tpu.memory_space<vmem>>, vector<1x384xf32>
    %422 = vector.broadcast %421 : vector<1x384xf32> to vector<8x384xf32>
    %423 = arith.addf %420, %422 : vector<8x384xf32>
    %424 = vector.extract_strided_slice %416 {offsets = [0, 0], sizes = [8, 128], strides = [1, 1]} : vector<8x384xf32> to vector<8x128xf32>
    %425 = vector.extract_strided_slice %423 {offsets = [0, 0], sizes = [8, 128], strides = [1, 1]} : vector<8x384xf32> to vector<8x128xf32>
    %426 = arith.addf %424, %425 : vector<8x128xf32>
    %427 = arith.negf %426 : vector<8x128xf32>
    %428 = math.exp %427 : vector<8x128xf32>
    %cst_192 = arith.constant 1.000000e+00 : f32
    %429 = vector.broadcast %cst_192 : f32 to vector<8x128xf32>
    %430 = arith.addf %429, %428 : vector<8x128xf32>
    %431 = arith.divf %429, %430 : vector<8x128xf32>
    %432 = vector.extract_strided_slice %416 {offsets = [0, 128], sizes = [8, 128], strides = [1, 1]} : vector<8x384xf32> to vector<8x128xf32>
    %433 = vector.extract_strided_slice %423 {offsets = [0, 128], sizes = [8, 128], strides = [1, 1]} : vector<8x384xf32> to vector<8x128xf32>
    %434 = arith.addf %432, %433 : vector<8x128xf32>
    %435 = arith.negf %434 : vector<8x128xf32>
    %436 = math.exp %435 : vector<8x128xf32>
    %cst_193 = arith.constant 1.000000e+00 : f32
    %437 = vector.broadcast %cst_193 : f32 to vector<8x128xf32>
    %438 = arith.addf %437, %436 : vector<8x128xf32>
    %439 = arith.divf %437, %438 : vector<8x128xf32>
    %440 = vector.extract_strided_slice %416 {offsets = [0, 256], sizes = [8, 128], strides = [1, 1]} : vector<8x384xf32> to vector<8x128xf32>
    %441 = vector.extract_strided_slice %423 {offsets = [0, 256], sizes = [8, 128], strides = [1, 1]} : vector<8x384xf32> to vector<8x128xf32>
    %442 = arith.mulf %431, %441 : vector<8x128xf32>
    %443 = arith.addf %440, %442 : vector<8x128xf32>
    %444 = math.tanh %443 : vector<8x128xf32>
    %cst_194 = arith.constant 1.000000e+00 : f32
    %445 = vector.broadcast %cst_194 : f32 to vector<8x128xf32>
    %446 = arith.subf %445, %439 : vector<8x128xf32>
    %447 = arith.mulf %446, %444 : vector<8x128xf32>
    %448 = arith.mulf %439, %411 : vector<8x128xf32>
    %449 = arith.addf %447, %448 : vector<8x128xf32>
    %450 = arith.subf %449, %411 : vector<8x128xf32>
    %451 = arith.mulf %418, %450 : vector<8x128xf32>
    %452 = arith.addf %411, %451 : vector<8x128xf32>
    %453 = arith.mulf %418, %449 : vector<8x128xf32>
    %454 = arith.addf %413, %453 : vector<8x128xf32>
    %c16_195 = arith.constant 16 : index
    %c0_196 = arith.constant 0 : index
    %455 = vector.load %arg17[%c16_195, %c0_196] : memref<64x384xf32, #tpu.memory_space<vmem>>, vector<8x384xf32>
    %c40_197 = arith.constant 40 : index
    %c0_198 = arith.constant 0 : index
    %456 = vector.load %arg17[%c40_197, %c0_198] : memref<64x384xf32, #tpu.memory_space<vmem>>, vector<8x384xf32>
    %457 = arith.select %2, %455, %456 : vector<8x384xi1>, vector<8x384xf32>
    %c2_199 = arith.constant 2 : index
    %c0_200 = arith.constant 0 : index
    %c0_201 = arith.constant 0 : index
    %458 = vector.load %arg1[%c2_199, %c0_200, %c0_201] : memref<8x8x128xf32, #tpu.memory_space<vmem>>, vector<1x8x128xf32>
    %459 = vector.shape_cast %458 : vector<1x8x128xf32> to vector<8x128xf32>
    %c0_202 = arith.constant 0 : index
    %c0_203 = arith.constant 0 : index
    %460 = vector.load %arg10[%c0_202, %c0_203] : memref<128x384xf32, #tpu.memory_space<vmem>>, vector<128x384xf32>
    %cst_204 = arith.constant dense<0.000000e+00> : vector<8x384xf32>
    %461 = tpu.matmul %452, %460, %cst_204 {dimension_numbers = #tpu.dot_dimension_numbers<[1], [0], [0], [1], [0, 0, 1, 1], [], []>} : vector<8x128xf32>, vector<128x384xf32>, vector<8x384xf32> -> vector<8x384xf32>
    %c0_205 = arith.constant 0 : index
    %c0_206 = arith.constant 0 : index
    %462 = vector.load %arg11[%c0_205, %c0_206] : memref<1x384xf32, #tpu.memory_space<vmem>>, vector<1x384xf32>
    %463 = vector.broadcast %462 : vector<1x384xf32> to vector<8x384xf32>
    %464 = arith.addf %461, %463 : vector<8x384xf32>
    %465 = vector.extract_strided_slice %457 {offsets = [0, 0], sizes = [8, 128], strides = [1, 1]} : vector<8x384xf32> to vector<8x128xf32>
    %466 = vector.extract_strided_slice %464 {offsets = [0, 0], sizes = [8, 128], strides = [1, 1]} : vector<8x384xf32> to vector<8x128xf32>
    %467 = arith.addf %465, %466 : vector<8x128xf32>
    %468 = arith.negf %467 : vector<8x128xf32>
    %469 = math.exp %468 : vector<8x128xf32>
    %cst_207 = arith.constant 1.000000e+00 : f32
    %470 = vector.broadcast %cst_207 : f32 to vector<8x128xf32>
    %471 = arith.addf %470, %469 : vector<8x128xf32>
    %472 = arith.divf %470, %471 : vector<8x128xf32>
    %473 = vector.extract_strided_slice %457 {offsets = [0, 128], sizes = [8, 128], strides = [1, 1]} : vector<8x384xf32> to vector<8x128xf32>
    %474 = vector.extract_strided_slice %464 {offsets = [0, 128], sizes = [8, 128], strides = [1, 1]} : vector<8x384xf32> to vector<8x128xf32>
    %475 = arith.addf %473, %474 : vector<8x128xf32>
    %476 = arith.negf %475 : vector<8x128xf32>
    %477 = math.exp %476 : vector<8x128xf32>
    %cst_208 = arith.constant 1.000000e+00 : f32
    %478 = vector.broadcast %cst_208 : f32 to vector<8x128xf32>
    %479 = arith.addf %478, %477 : vector<8x128xf32>
    %480 = arith.divf %478, %479 : vector<8x128xf32>
    %481 = vector.extract_strided_slice %457 {offsets = [0, 256], sizes = [8, 128], strides = [1, 1]} : vector<8x384xf32> to vector<8x128xf32>
    %482 = vector.extract_strided_slice %464 {offsets = [0, 256], sizes = [8, 128], strides = [1, 1]} : vector<8x384xf32> to vector<8x128xf32>
    %483 = arith.mulf %472, %482 : vector<8x128xf32>
    %484 = arith.addf %481, %483 : vector<8x128xf32>
    %485 = math.tanh %484 : vector<8x128xf32>
    %cst_209 = arith.constant 1.000000e+00 : f32
    %486 = vector.broadcast %cst_209 : f32 to vector<8x128xf32>
    %487 = arith.subf %486, %480 : vector<8x128xf32>
    %488 = arith.mulf %487, %485 : vector<8x128xf32>
    %489 = arith.mulf %480, %452 : vector<8x128xf32>
    %490 = arith.addf %488, %489 : vector<8x128xf32>
    %491 = arith.subf %490, %452 : vector<8x128xf32>
    %492 = arith.mulf %459, %491 : vector<8x128xf32>
    %493 = arith.addf %452, %492 : vector<8x128xf32>
    %494 = arith.mulf %459, %490 : vector<8x128xf32>
    %495 = arith.addf %454, %494 : vector<8x128xf32>
    %c24_210 = arith.constant 24 : index
    %c0_211 = arith.constant 0 : index
    %496 = vector.load %arg17[%c24_210, %c0_211] : memref<64x384xf32, #tpu.memory_space<vmem>>, vector<8x384xf32>
    %c32_212 = arith.constant 32 : index
    %c0_213 = arith.constant 0 : index
    %497 = vector.load %arg17[%c32_212, %c0_213] : memref<64x384xf32, #tpu.memory_space<vmem>>, vector<8x384xf32>
    %498 = arith.select %2, %496, %497 : vector<8x384xi1>, vector<8x384xf32>
    %c3_214 = arith.constant 3 : index
    %c0_215 = arith.constant 0 : index
    %c0_216 = arith.constant 0 : index
    %499 = vector.load %arg1[%c3_214, %c0_215, %c0_216] : memref<8x8x128xf32, #tpu.memory_space<vmem>>, vector<1x8x128xf32>
    %500 = vector.shape_cast %499 : vector<1x8x128xf32> to vector<8x128xf32>
    %c0_217 = arith.constant 0 : index
    %c0_218 = arith.constant 0 : index
    %501 = vector.load %arg10[%c0_217, %c0_218] : memref<128x384xf32, #tpu.memory_space<vmem>>, vector<128x384xf32>
    %cst_219 = arith.constant dense<0.000000e+00> : vector<8x384xf32>
    %502 = tpu.matmul %493, %501, %cst_219 {dimension_numbers = #tpu.dot_dimension_numbers<[1], [0], [0], [1], [0, 0, 1, 1], [], []>} : vector<8x128xf32>, vector<128x384xf32>, vector<8x384xf32> -> vector<8x384xf32>
    %c0_220 = arith.constant 0 : index
    %c0_221 = arith.constant 0 : index
    %503 = vector.load %arg11[%c0_220, %c0_221] : memref<1x384xf32, #tpu.memory_space<vmem>>, vector<1x384xf32>
    %504 = vector.broadcast %503 : vector<1x384xf32> to vector<8x384xf32>
    %505 = arith.addf %502, %504 : vector<8x384xf32>
    %506 = vector.extract_strided_slice %498 {offsets = [0, 0], sizes = [8, 128], strides = [1, 1]} : vector<8x384xf32> to vector<8x128xf32>
    %507 = vector.extract_strided_slice %505 {offsets = [0, 0], sizes = [8, 128], strides = [1, 1]} : vector<8x384xf32> to vector<8x128xf32>
    %508 = arith.addf %506, %507 : vector<8x128xf32>
    %509 = arith.negf %508 : vector<8x128xf32>
    %510 = math.exp %509 : vector<8x128xf32>
    %cst_222 = arith.constant 1.000000e+00 : f32
    %511 = vector.broadcast %cst_222 : f32 to vector<8x128xf32>
    %512 = arith.addf %511, %510 : vector<8x128xf32>
    %513 = arith.divf %511, %512 : vector<8x128xf32>
    %514 = vector.extract_strided_slice %498 {offsets = [0, 128], sizes = [8, 128], strides = [1, 1]} : vector<8x384xf32> to vector<8x128xf32>
    %515 = vector.extract_strided_slice %505 {offsets = [0, 128], sizes = [8, 128], strides = [1, 1]} : vector<8x384xf32> to vector<8x128xf32>
    %516 = arith.addf %514, %515 : vector<8x128xf32>
    %517 = arith.negf %516 : vector<8x128xf32>
    %518 = math.exp %517 : vector<8x128xf32>
    %cst_223 = arith.constant 1.000000e+00 : f32
    %519 = vector.broadcast %cst_223 : f32 to vector<8x128xf32>
    %520 = arith.addf %519, %518 : vector<8x128xf32>
    %521 = arith.divf %519, %520 : vector<8x128xf32>
    %522 = vector.extract_strided_slice %498 {offsets = [0, 256], sizes = [8, 128], strides = [1, 1]} : vector<8x384xf32> to vector<8x128xf32>
    %523 = vector.extract_strided_slice %505 {offsets = [0, 256], sizes = [8, 128], strides = [1, 1]} : vector<8x384xf32> to vector<8x128xf32>
    %524 = arith.mulf %513, %523 : vector<8x128xf32>
    %525 = arith.addf %522, %524 : vector<8x128xf32>
    %526 = math.tanh %525 : vector<8x128xf32>
    %cst_224 = arith.constant 1.000000e+00 : f32
    %527 = vector.broadcast %cst_224 : f32 to vector<8x128xf32>
    %528 = arith.subf %527, %521 : vector<8x128xf32>
    %529 = arith.mulf %528, %526 : vector<8x128xf32>
    %530 = arith.mulf %521, %493 : vector<8x128xf32>
    %531 = arith.addf %529, %530 : vector<8x128xf32>
    %532 = arith.subf %531, %493 : vector<8x128xf32>
    %533 = arith.mulf %500, %532 : vector<8x128xf32>
    %534 = arith.addf %493, %533 : vector<8x128xf32>
    %535 = arith.mulf %500, %531 : vector<8x128xf32>
    %536 = arith.addf %495, %535 : vector<8x128xf32>
    %c32_225 = arith.constant 32 : index
    %c0_226 = arith.constant 0 : index
    %537 = vector.load %arg17[%c32_225, %c0_226] : memref<64x384xf32, #tpu.memory_space<vmem>>, vector<8x384xf32>
    %c24_227 = arith.constant 24 : index
    %c0_228 = arith.constant 0 : index
    %538 = vector.load %arg17[%c24_227, %c0_228] : memref<64x384xf32, #tpu.memory_space<vmem>>, vector<8x384xf32>
    %539 = arith.select %2, %537, %538 : vector<8x384xi1>, vector<8x384xf32>
    %c4_229 = arith.constant 4 : index
    %c0_230 = arith.constant 0 : index
    %c0_231 = arith.constant 0 : index
    %540 = vector.load %arg1[%c4_229, %c0_230, %c0_231] : memref<8x8x128xf32, #tpu.memory_space<vmem>>, vector<1x8x128xf32>
    %541 = vector.shape_cast %540 : vector<1x8x128xf32> to vector<8x128xf32>
    %c0_232 = arith.constant 0 : index
    %c0_233 = arith.constant 0 : index
    %542 = vector.load %arg10[%c0_232, %c0_233] : memref<128x384xf32, #tpu.memory_space<vmem>>, vector<128x384xf32>
    %cst_234 = arith.constant dense<0.000000e+00> : vector<8x384xf32>
    %543 = tpu.matmul %534, %542, %cst_234 {dimension_numbers = #tpu.dot_dimension_numbers<[1], [0], [0], [1], [0, 0, 1, 1], [], []>} : vector<8x128xf32>, vector<128x384xf32>, vector<8x384xf32> -> vector<8x384xf32>
    %c0_235 = arith.constant 0 : index
    %c0_236 = arith.constant 0 : index
    %544 = vector.load %arg11[%c0_235, %c0_236] : memref<1x384xf32, #tpu.memory_space<vmem>>, vector<1x384xf32>
    %545 = vector.broadcast %544 : vector<1x384xf32> to vector<8x384xf32>
    %546 = arith.addf %543, %545 : vector<8x384xf32>
    %547 = vector.extract_strided_slice %539 {offsets = [0, 0], sizes = [8, 128], strides = [1, 1]} : vector<8x384xf32> to vector<8x128xf32>
    %548 = vector.extract_strided_slice %546 {offsets = [0, 0], sizes = [8, 128], strides = [1, 1]} : vector<8x384xf32> to vector<8x128xf32>
    %549 = arith.addf %547, %548 : vector<8x128xf32>
    %550 = arith.negf %549 : vector<8x128xf32>
    %551 = math.exp %550 : vector<8x128xf32>
    %cst_237 = arith.constant 1.000000e+00 : f32
    %552 = vector.broadcast %cst_237 : f32 to vector<8x128xf32>
    %553 = arith.addf %552, %551 : vector<8x128xf32>
    %554 = arith.divf %552, %553 : vector<8x128xf32>
    %555 = vector.extract_strided_slice %539 {offsets = [0, 128], sizes = [8, 128], strides = [1, 1]} : vector<8x384xf32> to vector<8x128xf32>
    %556 = vector.extract_strided_slice %546 {offsets = [0, 128], sizes = [8, 128], strides = [1, 1]} : vector<8x384xf32> to vector<8x128xf32>
    %557 = arith.addf %555, %556 : vector<8x128xf32>
    %558 = arith.negf %557 : vector<8x128xf32>
    %559 = math.exp %558 : vector<8x128xf32>
    %cst_238 = arith.constant 1.000000e+00 : f32
    %560 = vector.broadcast %cst_238 : f32 to vector<8x128xf32>
    %561 = arith.addf %560, %559 : vector<8x128xf32>
    %562 = arith.divf %560, %561 : vector<8x128xf32>
    %563 = vector.extract_strided_slice %539 {offsets = [0, 256], sizes = [8, 128], strides = [1, 1]} : vector<8x384xf32> to vector<8x128xf32>
    %564 = vector.extract_strided_slice %546 {offsets = [0, 256], sizes = [8, 128], strides = [1, 1]} : vector<8x384xf32> to vector<8x128xf32>
    %565 = arith.mulf %554, %564 : vector<8x128xf32>
    %566 = arith.addf %563, %565 : vector<8x128xf32>
    %567 = math.tanh %566 : vector<8x128xf32>
    %cst_239 = arith.constant 1.000000e+00 : f32
    %568 = vector.broadcast %cst_239 : f32 to vector<8x128xf32>
    %569 = arith.subf %568, %562 : vector<8x128xf32>
    %570 = arith.mulf %569, %567 : vector<8x128xf32>
    %571 = arith.mulf %562, %534 : vector<8x128xf32>
    %572 = arith.addf %570, %571 : vector<8x128xf32>
    %573 = arith.subf %572, %534 : vector<8x128xf32>
    %574 = arith.mulf %541, %573 : vector<8x128xf32>
    %575 = arith.addf %534, %574 : vector<8x128xf32>
    %576 = arith.mulf %541, %572 : vector<8x128xf32>
    %577 = arith.addf %536, %576 : vector<8x128xf32>
    %c40_240 = arith.constant 40 : index
    %c0_241 = arith.constant 0 : index
    %578 = vector.load %arg17[%c40_240, %c0_241] : memref<64x384xf32, #tpu.memory_space<vmem>>, vector<8x384xf32>
    %c16_242 = arith.constant 16 : index
    %c0_243 = arith.constant 0 : index
    %579 = vector.load %arg17[%c16_242, %c0_243] : memref<64x384xf32, #tpu.memory_space<vmem>>, vector<8x384xf32>
    %580 = arith.select %2, %578, %579 : vector<8x384xi1>, vector<8x384xf32>
    %c5_244 = arith.constant 5 : index
    %c0_245 = arith.constant 0 : index
    %c0_246 = arith.constant 0 : index
    %581 = vector.load %arg1[%c5_244, %c0_245, %c0_246] : memref<8x8x128xf32, #tpu.memory_space<vmem>>, vector<1x8x128xf32>
    %582 = vector.shape_cast %581 : vector<1x8x128xf32> to vector<8x128xf32>
    %c0_247 = arith.constant 0 : index
    %c0_248 = arith.constant 0 : index
    %583 = vector.load %arg10[%c0_247, %c0_248] : memref<128x384xf32, #tpu.memory_space<vmem>>, vector<128x384xf32>
    %cst_249 = arith.constant dense<0.000000e+00> : vector<8x384xf32>
    %584 = tpu.matmul %575, %583, %cst_249 {dimension_numbers = #tpu.dot_dimension_numbers<[1], [0], [0], [1], [0, 0, 1, 1], [], []>} : vector<8x128xf32>, vector<128x384xf32>, vector<8x384xf32> -> vector<8x384xf32>
    %c0_250 = arith.constant 0 : index
    %c0_251 = arith.constant 0 : index
    %585 = vector.load %arg11[%c0_250, %c0_251] : memref<1x384xf32, #tpu.memory_space<vmem>>, vector<1x384xf32>
    %586 = vector.broadcast %585 : vector<1x384xf32> to vector<8x384xf32>
    %587 = arith.addf %584, %586 : vector<8x384xf32>
    %588 = vector.extract_strided_slice %580 {offsets = [0, 0], sizes = [8, 128], strides = [1, 1]} : vector<8x384xf32> to vector<8x128xf32>
    %589 = vector.extract_strided_slice %587 {offsets = [0, 0], sizes = [8, 128], strides = [1, 1]} : vector<8x384xf32> to vector<8x128xf32>
    %590 = arith.addf %588, %589 : vector<8x128xf32>
    %591 = arith.negf %590 : vector<8x128xf32>
    %592 = math.exp %591 : vector<8x128xf32>
    %cst_252 = arith.constant 1.000000e+00 : f32
    %593 = vector.broadcast %cst_252 : f32 to vector<8x128xf32>
    %594 = arith.addf %593, %592 : vector<8x128xf32>
    %595 = arith.divf %593, %594 : vector<8x128xf32>
    %596 = vector.extract_strided_slice %580 {offsets = [0, 128], sizes = [8, 128], strides = [1, 1]} : vector<8x384xf32> to vector<8x128xf32>
    %597 = vector.extract_strided_slice %587 {offsets = [0, 128], sizes = [8, 128], strides = [1, 1]} : vector<8x384xf32> to vector<8x128xf32>
    %598 = arith.addf %596, %597 : vector<8x128xf32>
    %599 = arith.negf %598 : vector<8x128xf32>
    %600 = math.exp %599 : vector<8x128xf32>
    %cst_253 = arith.constant 1.000000e+00 : f32
    %601 = vector.broadcast %cst_253 : f32 to vector<8x128xf32>
    %602 = arith.addf %601, %600 : vector<8x128xf32>
    %603 = arith.divf %601, %602 : vector<8x128xf32>
    %604 = vector.extract_strided_slice %580 {offsets = [0, 256], sizes = [8, 128], strides = [1, 1]} : vector<8x384xf32> to vector<8x128xf32>
    %605 = vector.extract_strided_slice %587 {offsets = [0, 256], sizes = [8, 128], strides = [1, 1]} : vector<8x384xf32> to vector<8x128xf32>
    %606 = arith.mulf %595, %605 : vector<8x128xf32>
    %607 = arith.addf %604, %606 : vector<8x128xf32>
    %608 = math.tanh %607 : vector<8x128xf32>
    %cst_254 = arith.constant 1.000000e+00 : f32
    %609 = vector.broadcast %cst_254 : f32 to vector<8x128xf32>
    %610 = arith.subf %609, %603 : vector<8x128xf32>
    %611 = arith.mulf %610, %608 : vector<8x128xf32>
    %612 = arith.mulf %603, %575 : vector<8x128xf32>
    %613 = arith.addf %611, %612 : vector<8x128xf32>
    %614 = arith.subf %613, %575 : vector<8x128xf32>
    %615 = arith.mulf %582, %614 : vector<8x128xf32>
    %616 = arith.addf %575, %615 : vector<8x128xf32>
    %617 = arith.mulf %582, %613 : vector<8x128xf32>
    %618 = arith.addf %577, %617 : vector<8x128xf32>
    %c48_255 = arith.constant 48 : index
    %c0_256 = arith.constant 0 : index
    %619 = vector.load %arg17[%c48_255, %c0_256] : memref<64x384xf32, #tpu.memory_space<vmem>>, vector<8x384xf32>
    %c8_257 = arith.constant 8 : index
    %c0_258 = arith.constant 0 : index
    %620 = vector.load %arg17[%c8_257, %c0_258] : memref<64x384xf32, #tpu.memory_space<vmem>>, vector<8x384xf32>
    %621 = arith.select %2, %619, %620 : vector<8x384xi1>, vector<8x384xf32>
    %c6_259 = arith.constant 6 : index
    %c0_260 = arith.constant 0 : index
    %c0_261 = arith.constant 0 : index
    %622 = vector.load %arg1[%c6_259, %c0_260, %c0_261] : memref<8x8x128xf32, #tpu.memory_space<vmem>>, vector<1x8x128xf32>
    %623 = vector.shape_cast %622 : vector<1x8x128xf32> to vector<8x128xf32>
    %c0_262 = arith.constant 0 : index
    %c0_263 = arith.constant 0 : index
    %624 = vector.load %arg10[%c0_262, %c0_263] : memref<128x384xf32, #tpu.memory_space<vmem>>, vector<128x384xf32>
    %cst_264 = arith.constant dense<0.000000e+00> : vector<8x384xf32>
    %625 = tpu.matmul %616, %624, %cst_264 {dimension_numbers = #tpu.dot_dimension_numbers<[1], [0], [0], [1], [0, 0, 1, 1], [], []>} : vector<8x128xf32>, vector<128x384xf32>, vector<8x384xf32> -> vector<8x384xf32>
    %c0_265 = arith.constant 0 : index
    %c0_266 = arith.constant 0 : index
    %626 = vector.load %arg11[%c0_265, %c0_266] : memref<1x384xf32, #tpu.memory_space<vmem>>, vector<1x384xf32>
    %627 = vector.broadcast %626 : vector<1x384xf32> to vector<8x384xf32>
    %628 = arith.addf %625, %627 : vector<8x384xf32>
    %629 = vector.extract_strided_slice %621 {offsets = [0, 0], sizes = [8, 128], strides = [1, 1]} : vector<8x384xf32> to vector<8x128xf32>
    %630 = vector.extract_strided_slice %628 {offsets = [0, 0], sizes = [8, 128], strides = [1, 1]} : vector<8x384xf32> to vector<8x128xf32>
    %631 = arith.addf %629, %630 : vector<8x128xf32>
    %632 = arith.negf %631 : vector<8x128xf32>
    %633 = math.exp %632 : vector<8x128xf32>
    %cst_267 = arith.constant 1.000000e+00 : f32
    %634 = vector.broadcast %cst_267 : f32 to vector<8x128xf32>
    %635 = arith.addf %634, %633 : vector<8x128xf32>
    %636 = arith.divf %634, %635 : vector<8x128xf32>
    %637 = vector.extract_strided_slice %621 {offsets = [0, 128], sizes = [8, 128], strides = [1, 1]} : vector<8x384xf32> to vector<8x128xf32>
    %638 = vector.extract_strided_slice %628 {offsets = [0, 128], sizes = [8, 128], strides = [1, 1]} : vector<8x384xf32> to vector<8x128xf32>
    %639 = arith.addf %637, %638 : vector<8x128xf32>
    %640 = arith.negf %639 : vector<8x128xf32>
    %641 = math.exp %640 : vector<8x128xf32>
    %cst_268 = arith.constant 1.000000e+00 : f32
    %642 = vector.broadcast %cst_268 : f32 to vector<8x128xf32>
    %643 = arith.addf %642, %641 : vector<8x128xf32>
    %644 = arith.divf %642, %643 : vector<8x128xf32>
    %645 = vector.extract_strided_slice %621 {offsets = [0, 256], sizes = [8, 128], strides = [1, 1]} : vector<8x384xf32> to vector<8x128xf32>
    %646 = vector.extract_strided_slice %628 {offsets = [0, 256], sizes = [8, 128], strides = [1, 1]} : vector<8x384xf32> to vector<8x128xf32>
    %647 = arith.mulf %636, %646 : vector<8x128xf32>
    %648 = arith.addf %645, %647 : vector<8x128xf32>
    %649 = math.tanh %648 : vector<8x128xf32>
    %cst_269 = arith.constant 1.000000e+00 : f32
    %650 = vector.broadcast %cst_269 : f32 to vector<8x128xf32>
    %651 = arith.subf %650, %644 : vector<8x128xf32>
    %652 = arith.mulf %651, %649 : vector<8x128xf32>
    %653 = arith.mulf %644, %616 : vector<8x128xf32>
    %654 = arith.addf %652, %653 : vector<8x128xf32>
    %655 = arith.subf %654, %616 : vector<8x128xf32>
    %656 = arith.mulf %623, %655 : vector<8x128xf32>
    %657 = arith.addf %616, %656 : vector<8x128xf32>
    %658 = arith.mulf %623, %654 : vector<8x128xf32>
    %659 = arith.addf %618, %658 : vector<8x128xf32>
    %c56_270 = arith.constant 56 : index
    %c0_271 = arith.constant 0 : index
    %660 = vector.load %arg17[%c56_270, %c0_271] : memref<64x384xf32, #tpu.memory_space<vmem>>, vector<8x384xf32>
    %c0_272 = arith.constant 0 : index
    %c0_273 = arith.constant 0 : index
    %661 = vector.load %arg17[%c0_272, %c0_273] : memref<64x384xf32, #tpu.memory_space<vmem>>, vector<8x384xf32>
    %662 = arith.select %2, %660, %661 : vector<8x384xi1>, vector<8x384xf32>
    %c7_274 = arith.constant 7 : index
    %c0_275 = arith.constant 0 : index
    %c0_276 = arith.constant 0 : index
    %663 = vector.load %arg1[%c7_274, %c0_275, %c0_276] : memref<8x8x128xf32, #tpu.memory_space<vmem>>, vector<1x8x128xf32>
    %664 = vector.shape_cast %663 : vector<1x8x128xf32> to vector<8x128xf32>
    %c0_277 = arith.constant 0 : index
    %c0_278 = arith.constant 0 : index
    %665 = vector.load %arg10[%c0_277, %c0_278] : memref<128x384xf32, #tpu.memory_space<vmem>>, vector<128x384xf32>
    %cst_279 = arith.constant dense<0.000000e+00> : vector<8x384xf32>
    %666 = tpu.matmul %657, %665, %cst_279 {dimension_numbers = #tpu.dot_dimension_numbers<[1], [0], [0], [1], [0, 0, 1, 1], [], []>} : vector<8x128xf32>, vector<128x384xf32>, vector<8x384xf32> -> vector<8x384xf32>
    %c0_280 = arith.constant 0 : index
    %c0_281 = arith.constant 0 : index
    %667 = vector.load %arg11[%c0_280, %c0_281] : memref<1x384xf32, #tpu.memory_space<vmem>>, vector<1x384xf32>
    %668 = vector.broadcast %667 : vector<1x384xf32> to vector<8x384xf32>
    %669 = arith.addf %666, %668 : vector<8x384xf32>
    %670 = vector.extract_strided_slice %662 {offsets = [0, 0], sizes = [8, 128], strides = [1, 1]} : vector<8x384xf32> to vector<8x128xf32>
    %671 = vector.extract_strided_slice %669 {offsets = [0, 0], sizes = [8, 128], strides = [1, 1]} : vector<8x384xf32> to vector<8x128xf32>
    %672 = arith.addf %670, %671 : vector<8x128xf32>
    %673 = arith.negf %672 : vector<8x128xf32>
    %674 = math.exp %673 : vector<8x128xf32>
    %cst_282 = arith.constant 1.000000e+00 : f32
    %675 = vector.broadcast %cst_282 : f32 to vector<8x128xf32>
    %676 = arith.addf %675, %674 : vector<8x128xf32>
    %677 = arith.divf %675, %676 : vector<8x128xf32>
    %678 = vector.extract_strided_slice %662 {offsets = [0, 128], sizes = [8, 128], strides = [1, 1]} : vector<8x384xf32> to vector<8x128xf32>
    %679 = vector.extract_strided_slice %669 {offsets = [0, 128], sizes = [8, 128], strides = [1, 1]} : vector<8x384xf32> to vector<8x128xf32>
    %680 = arith.addf %678, %679 : vector<8x128xf32>
    %681 = arith.negf %680 : vector<8x128xf32>
    %682 = math.exp %681 : vector<8x128xf32>
    %cst_283 = arith.constant 1.000000e+00 : f32
    %683 = vector.broadcast %cst_283 : f32 to vector<8x128xf32>
    %684 = arith.addf %683, %682 : vector<8x128xf32>
    %685 = arith.divf %683, %684 : vector<8x128xf32>
    %686 = vector.extract_strided_slice %662 {offsets = [0, 256], sizes = [8, 128], strides = [1, 1]} : vector<8x384xf32> to vector<8x128xf32>
    %687 = vector.extract_strided_slice %669 {offsets = [0, 256], sizes = [8, 128], strides = [1, 1]} : vector<8x384xf32> to vector<8x128xf32>
    %688 = arith.mulf %677, %687 : vector<8x128xf32>
    %689 = arith.addf %686, %688 : vector<8x128xf32>
    %690 = math.tanh %689 : vector<8x128xf32>
    %cst_284 = arith.constant 1.000000e+00 : f32
    %691 = vector.broadcast %cst_284 : f32 to vector<8x128xf32>
    %692 = arith.subf %691, %685 : vector<8x128xf32>
    %693 = arith.mulf %692, %690 : vector<8x128xf32>
    %694 = arith.mulf %685, %657 : vector<8x128xf32>
    %695 = arith.addf %693, %694 : vector<8x128xf32>
    %696 = arith.mulf %664, %695 : vector<8x128xf32>
    %697 = arith.addf %659, %696 : vector<8x128xf32>
    %c0_285 = arith.constant 0 : index
    %698 = memref.load %arg14[%c0_285] : memref<1xf32, #tpu.memory_space<smem>>
    %699 = vector.broadcast %698 : f32 to vector<8x128xf32>
    %700 = arith.mulf %697, %699 : vector<8x128xf32>
    %c0_286 = arith.constant 0 : index
    %c0_287 = arith.constant 0 : index
    %701 = vector.load %arg12[%c0_286, %c0_287] : memref<128x1xf32, #tpu.memory_space<vmem>>, vector<128x1xf32>
    %cst_288 = arith.constant dense<0.000000e+00> : vector<8x1xf32>
    %702 = tpu.matmul %700, %701, %cst_288 {dimension_numbers = #tpu.dot_dimension_numbers<[1], [0], [0], [1], [0, 0, 1, 1], [], []>} : vector<8x128xf32>, vector<128x1xf32>, vector<8x1xf32> -> vector<8x1xf32>
    %c0_289 = arith.constant 0 : index
    %c0_290 = arith.constant 0 : index
    %703 = vector.load %arg13[%c0_289, %c0_290] : memref<1x1xf32, #tpu.memory_space<vmem>>, vector<1x1xf32>
    %704 = vector.broadcast %703 : vector<1x1xf32> to vector<8x1xf32>
    %705 = arith.addf %702, %704 : vector<8x1xf32>
    %c0_291 = arith.constant 0 : index
    %c0_292 = arith.constant 0 : index
    %706 = vector.load %arg15[%c0_291, %c0_292] : memref<8x1xf32, #tpu.memory_space<vmem>>, vector<8x1xf32>
    tpu.vector_store %arg15[%c0_291, %c0_292], %705 {strides = array<i32>} : memref<8x1xf32, #tpu.memory_space<vmem>>, vector<8x1xf32>,
    return
  }
}

</mosaic_0001>

<llo_original>
// kernel: gru_model_forward.1
$region0: #{gru_model_forward.1}
  #allocation0 [shape = 'u32[]', space=smem, size = 0x4, offset = 0x4, fixed_abs, tag = 'smem constant byte address 0x4 - core index']
  #allocation1 [shape = 'u32[144,128]{1,0:T(1,128)}', space=vmem, size = 0x12000, scoped, tag = 'internal scratch']
  #allocation2 [shape = 'f32[64,384]{1,0:T(8,128)}', space=vmem, size = 0x18000, scoped, tag = 'scratch operand']
  #allocation3 [shape = 'f32[64,384]{1,0:T(8,128)}', space=vmem, size = 0x18000, scoped, tag = 'scratch operand']
  #allocation4 [shape = 'f32[64,64]{1,0:T(8,128)}', space=vmem, size = 0x8000, scoped, tag = 'scratch operand']
  #allocation5 [shape = 'f32[64,64]{1,0:T(8,128)}', space=vmem, size = 0x8000, scoped, tag = 'scratch operand']
  #allocation6 [shape = 'f32[1,1]{1,0:T(1,128)S(1)}', space=vmem, size = 0x200, scoped, tag = 'scoped memory for gru_model_forward.1']
  #allocation7 [shape = 'f32[1]{0:T(128)S(6)}', space=smem, size = 0x200, scoped, tag = 'scoped memory for gru_model_forward.1']
  %s0 = inlined_call_operand.vmem [shape: f32[64,128], index: 0, kind: input, shape index: {}]
  %s1 = inlined_call_operand.vmem [shape: f32[8,8,128], index: 1, kind: input, shape index: {}]
  %s2 = inlined_call_operand.vmem [shape: f32[8,384], index: 2, kind: input, shape index: {}]
  %s3 = inlined_call_operand.vmem [shape: f32[128,384], index: 3, kind: input, shape index: {}]
  %s4 = inlined_call_operand.vmem [shape: f32[1,384], index: 4, kind: input, shape index: {}]
  %s5 = inlined_call_operand.vmem [shape: f32[128,384], index: 5, kind: input, shape index: {}]
  %s6 = inlined_call_operand.vmem [shape: f32[1,384], index: 6, kind: input, shape index: {}]
  %s7 = inlined_call_operand.vmem [shape: f32[64,384], index: 7, kind: input, shape index: {}]
  %s8 = inlined_call_operand.vmem [shape: f32[64,384], index: 8, kind: input, shape index: {}]
  %s9 = inlined_call_operand.vmem [shape: f32[1,384], index: 9, kind: input, shape index: {}]
  %s10 = inlined_call_operand.vmem [shape: f32[128,384], index: 10, kind: input, shape index: {}]
  %s11 = inlined_call_operand.vmem [shape: f32[1,384], index: 11, kind: input, shape index: {}]
  %s12 = inlined_call_operand.vmem [shape: f32[128,1], index: 12, kind: input, shape index: {}]
  %s13 = inlined_call_operand.<no memory space> [shape: f32[1,1], index: 13, kind: input, shape index: {}]
  %s14 = inlined_call_operand.<no memory space> [shape: f32[1], index: 14, kind: input, shape index: {}]
  %s15 = inlined_call_operand.vmem [shape: f32[8,1], index: 15, kind: output, shape index: {}]
  %s16 = sld [smem:[#allocation0]]
  $region70: #{gru_model_forward.1} parent=0
    _
  %s18 = ssub.s32 1, %s16
  %s19 = scalar_select 0, %s18, %s16
  %v20 = vstv %s13
  %21 = vst [vmem:[#allocation6] sm:$0x1] %v20
  %22 = sst [smem:[#allocation7]] %s14
  // Predicated region
  $region2: #{gru_model_forward.1} parent=0 // pred_check
    _
  $region3: #{gru_model_forward.1} parent=0 // pred_check_branch
    %24 = sbr.rel (0) target = $region5
  $region4: #{gru_model_forward.1} parent=0 // pred_region
    _
  $region5: #{gru_model_forward.1} parent=0 // pred_fallthru
    _
  // Predicated region
  $region6: #{gru_model_forward.1} parent=0 // pred_check
    _
  $region7: #{gru_model_forward.1} parent=0 // pred_check_branch
    %26 = sbr.rel (0) target = $region9
  $region8: #{gru_model_forward.1} parent=0 // pred_region
    _
  $region9: #{gru_model_forward.1} parent=0 // pred_fallthru
    _
  // Predicated region
  $region10: #{gru_model_forward.1} parent=0 // pred_check
    _
  $region11: #{gru_model_forward.1} parent=0 // pred_check_branch
    %28 = sbr.rel (0) target = $region13
  $region12: #{gru_model_forward.1} parent=0 // pred_region
    _
  $region13: #{gru_model_forward.1} parent=0 // pred_fallthru
    _
  // Predicated region
  $region14: #{gru_model_forward.1} parent=0 // pred_check
    _
  $region15: #{gru_model_forward.1} parent=0 // pred_check_branch
    %30 = sbr.rel (0) target = $region17
  $region16: #{gru_model_forward.1} parent=0 // pred_region
    _
  $region17: #{gru_model_forward.1} parent=0 // pred_fallthru
    _
  // Predicated region
  $region18: #{gru_model_forward.1} parent=0 // pred_check
    _
  $region19: #{gru_model_forward.1} parent=0 // pred_check_branch
    %32 = sbr.rel (0) target = $region21
  $region20: #{gru_model_forward.1} parent=0 // pred_region
    _
  $region21: #{gru_model_forward.1} parent=0 // pred_fallthru
    _
  // Predicated region
  $region22: #{gru_model_forward.1} parent=0 // pred_check
    _
  $region23: #{gru_model_forward.1} parent=0 // pred_check_branch
    %34 = sbr.rel (0) target = $region25
  $region24: #{gru_model_forward.1} parent=0 // pred_region
    _
  $region25: #{gru_model_forward.1} parent=0 // pred_fallthru
    _
  // Predicated region
  $region26: #{gru_model_forward.1} parent=0 // pred_check
    _
  $region27: #{gru_model_forward.1} parent=0 // pred_check_branch
    %36 = sbr.rel (0) target = $region29
  $region28: #{gru_model_forward.1} parent=0 // pred_region
    _
  $region29: #{gru_model_forward.1} parent=0 // pred_fallthru
    _
  // Predicated region
  $region30: #{gru_model_forward.1} parent=0 // pred_check
    _
  $region31: #{gru_model_forward.1} parent=0 // pred_check_branch
    %38 = sbr.rel (0) target = $region33
  $region32: #{gru_model_forward.1} parent=0 // pred_region
    _
  $region33: #{gru_model_forward.1} parent=0 // pred_fallthru
    _
  // Predicated region
  $region34: #{gru_model_forward.1} parent=0 // pred_check
    _
  $region35: #{gru_model_forward.1} parent=0 // pred_check_branch
    %40 = sbr.rel (0) target = $region37
  $region36: #{gru_model_forward.1} parent=0 // pred_region
    _
  $region37: #{gru_model_forward.1} parent=0 // pred_fallthru
    _
  // Predicated region
  $region38: #{gru_model_forward.1} parent=0 // pred_check
    _
  $region39: #{gru_model_forward.1} parent=0 // pred_check_branch
    %42 = sbr.rel (0) target = $region41
  $region40: #{gru_model_forward.1} parent=0 // pred_region
    _
  $region41: #{gru_model_forward.1} parent=0 // pred_fallthru
    _
  // Predicated region
  $region42: #{gru_model_forward.1} parent=0 // pred_check
    _
  $region43: #{gru_model_forward.1} parent=0 // pred_check_branch
    %44 = sbr.rel (0) target = $region45
  $region44: #{gru_model_forward.1} parent=0 // pred_region
    _
  $region45: #{gru_model_forward.1} parent=0 // pred_fallthru
    _
  // Predicated region
  $region46: #{gru_model_forward.1} parent=0 // pred_check
    _
  $region47: #{gru_model_forward.1} parent=0 // pred_check_branch
    %46 = sbr.rel (0) target = $region49
  $region48: #{gru_model_forward.1} parent=0 // pred_region
    _
  $region49: #{gru_model_forward.1} parent=0 // pred_fallthru
    _
  // Predicated region
  $region50: #{gru_model_forward.1} parent=0 // pred_check
    _
  $region51: #{gru_model_forward.1} parent=0 // pred_check_branch
    %48 = sbr.rel (0) target = $region53
  $region52: #{gru_model_forward.1} parent=0 // pred_region
    _
  $region53: #{gru_model_forward.1} parent=0 // pred_fallthru
    _
  // Predicated region
  $region54: #{gru_model_forward.1} parent=0 // pred_check
    _
  $region55: #{gru_model_forward.1} parent=0 // pred_check_branch
    %50 = sbr.rel (0) target = $region57
  $region56: #{gru_model_forward.1} parent=0 // pred_region
    _
  $region57: #{gru_model_forward.1} parent=0 // pred_fallthru
    _
  // Predicated region
  $region58: #{gru_model_forward.1} parent=0 // pred_check
    _
  $region59: #{gru_model_forward.1} parent=0 // pred_check_branch
    %52 = sbr.rel (0) target = $region61
  $region60: #{gru_model_forward.1} parent=0 // pred_region
    _
  $region61: #{gru_model_forward.1} parent=0 // pred_fallthru
    _
  %v53 = vld [vmem:[%s2] sm:$0xff]
  %v54 = vld [vmem:[%s2 + $0x8] sm:$0xff]
  %v55 = vld [vmem:[%s2 + $0x10] sm:$0xff]
  %vm56 = vcmp.gt.f32.partialorder %v53, 0.5
  %vm57 = vcmp.gt.f32.partialorder %v54, 0.5
  %vm58 = vcmp.gt.f32.partialorder %v55, 0.5
  %v59 = vld [vmem:[%s0] sm:$0xff]
  %v60 = vld [vmem:[%s0 + $0x8] sm:$0xff]
  %v61 = vld [vmem:[%s0 + $0x10] sm:$0xff]
  %v62 = vld [vmem:[%s0 + $0x18] sm:$0xff]
  %v63 = vld [vmem:[%s0 + $0x20] sm:$0xff]
  %v64 = vld [vmem:[%s0 + $0x28] sm:$0xff]
  %v65 = vld [vmem:[%s0 + $0x30] sm:$0xff]
  %v66 = vld [vmem:[%s0 + $0x38] sm:$0xff]
  %v67 = vld [vmem:[%s3] sm:$0xff]
  %v68 = vld [vmem:[%s3 + $0x8] sm:$0xff]
  %v69 = vld [vmem:[%s3 + $0x10] sm:$0xff]
  %v70 = vld [vmem:[%s3 + $0x18] sm:$0xff]
  %v71 = vld [vmem:[%s3 + $0x20] sm:$0xff]
  %v72 = vld [vmem:[%s3 + $0x28] sm:$0xff]
  %v73 = vld [vmem:[%s3 + $0x30] sm:$0xff]
  %v74 = vld [vmem:[%s3 + $0x38] sm:$0xff]
  %v75 = vld [vmem:[%s3 + $0x40] sm:$0xff]
  %v76 = vld [vmem:[%s3 + $0x48] sm:$0xff]
  %v77 = vld [vmem:[%s3 + $0x50] sm:$0xff]
  %v78 = vld [vmem:[%s3 + $0x58] sm:$0xff]
  %v79 = vld [vmem:[%s3 + $0x60] sm:$0xff]
  %v80 = vld [vmem:[%s3 + $0x68] sm:$0xff]
  %v81 = vld [vmem:[%s3 + $0x70] sm:$0xff]
  %v82 = vld [vmem:[%s3 + $0x78] sm:$0xff]
  %v83 = vld [vmem:[%s3 + $0x80] sm:$0xff]
  %v84 = vld [vmem:[%s3 + $0x88] sm:$0xff]
  %v85 = vld [vmem:[%s3 + $0x90] sm:$0xff]
  %v86 = vld [vmem:[%s3 + $0x98] sm:$0xff]
  %v87 = vld [vmem:[%s3 + $0xa0] sm:$0xff]
  %v88 = vld [vmem:[%s3 + $0xa8] sm:$0xff]
  %v89 = vld [vmem:[%s3 + $0xb0] sm:$0xff]
  %v90 = vld [vmem:[%s3 + $0xb8] sm:$0xff]
  %v91 = vld [vmem:[%s3 + $0xc0] sm:$0xff]
  %v92 = vld [vmem:[%s3 + $0xc8] sm:$0xff]
  %v93 = vld [vmem:[%s3 + $0xd0] sm:$0xff]
  %v94 = vld [vmem:[%s3 + $0xd8] sm:$0xff]
  %v95 = vld [vmem:[%s3 + $0xe0] sm:$0xff]
  %v96 = vld [vmem:[%s3 + $0xe8] sm:$0xff]
  %v97 = vld [vmem:[%s3 + $0xf0] sm:$0xff]
  %v98 = vld [vmem:[%s3 + $0xf8] sm:$0xff]
  %v99 = vld [vmem:[%s3 + $0x100] sm:$0xff]
  %v100 = vld [vmem:[%s3 + $0x108] sm:$0xff]
  %v101 = vld [vmem:[%s3 + $0x110] sm:$0xff]
  %v102 = vld [vmem:[%s3 + $0x118] sm:$0xff]
  %v103 = vld [vmem:[%s3 + $0x120] sm:$0xff]
  %v104 = vld [vmem:[%s3 + $0x128] sm:$0xff]
  %v105 = vld [vmem:[%s3 + $0x130] sm:$0xff]
  %v106 = vld [vmem:[%s3 + $0x138] sm:$0xff]
  %v107 = vld [vmem:[%s3 + $0x140] sm:$0xff]
  %v108 = vld [vmem:[%s3 + $0x148] sm:$0xff]
  %v109 = vld [vmem:[%s3 + $0x150] sm:$0xff]
  %v110 = vld [vmem:[%s3 + $0x158] sm:$0xff]
  %v111 = vld [vmem:[%s3 + $0x160] sm:$0xff]
  %v112 = vld [vmem:[%s3 + $0x168] sm:$0xff]
  %v113 = vld [vmem:[%s3 + $0x170] sm:$0xff]
  %v114 = vld [vmem:[%s3 + $0x178] sm:$0xff]
  %v115 = vld [vmem:[%s4] sm:$0x7]
  %v117 = vlaneseq
  %v118 = vshrl.u32 %v117, 7
  %v119 = vsub.s32 0, %v118
  %v120 = vrot.slane %v115, %v119
  %v121 = vlaneseq
  %v122 = vshrl.u32 %v121, 7
  %v123 = vsub.s32 1, %v122
  %v124 = vrot.slane %v115, %v123
  %v125 = vlaneseq
  %v126 = vshrl.u32 %v125, 7
  %v127 = vsub.s32 2, %v126
  %v128 = vrot.slane %v115, %v127
  %132 = vmatprep.subr.mxu0 %v68
  %133 = vmatpush1.msra.mxu0 %v67
  %134 = vmatprep.subr.mxu0 %v71
  %135 = vmatpush1.msra.mxu0 %v70
  %136 = vmatprep.subr.mxu0 %v74
  %137 = vmatpush1.msra.mxu0 %v73
  %138 = vmatprep.subr.mxu0 %v77
  %139 = vmatpush1.msra.mxu0 %v76
  %140 = vmatprep.subr.mxu0 %v80
  %141 = vmatpush1.msra.mxu0 %v79
  %142 = vmatprep.subr.mxu0 %v83
  %143 = vmatpush1.msra.mxu0 %v82
  %144 = vmatprep.subr.mxu0 %v86
  %145 = vmatpush1.msra.mxu0 %v85
  %146 = vmatprep.subr.mxu0 %v89
  %147 = vmatpush1.msra.mxu0 %v88
  %148 = vmatprep.subr.mxu0 %v92
  %149 = vmatpush1.msra.mxu0 %v91
  %150 = vmatprep.subr.mxu0 %v95
  %151 = vmatpush1.msra.mxu0 %v94
  %152 = vmatprep.subr.mxu0 %v98
  %153 = vmatpush1.msra.mxu0 %v97
  %154 = vmatprep.subr.mxu0 %v101
  %155 = vmatpush1.msra.mxu0 %v100
  %156 = vmatprep.subr.mxu0 %v104
  %157 = vmatpush1.msra.mxu0 %v103
  %158 = vmatprep.subr.mxu0 %v107
  %159 = vmatpush1.msra.mxu0 %v106
  %160 = vmatprep.subr.mxu0 %v110
  %161 = vmatpush1.msra.mxu0 %v109
  %162 = vmatprep.subr.mxu0 %v113
  %163 = vmatpush1.msra.mxu0 %v112
  %164 = vmatprep.subr.mxu0 0.0
  %165 = vmatpush1.msra.mxu0 0.0
  %166 = vmatprep.subr.mxu0 0.0
  %167 = vmatpush1.msra.mxu0 0.0
  %168 = vmatprep.subr.mxu0 0.0
  %169 = vmatpush1.msra.mxu0 0.0
  %170 = vmatprep.subr.mxu0 0.0
  %171 = vmatpush1.msra.mxu0 0.0
  %172 = vmatprep.subr.mxu0 0.0
  %173 = vmatpush1.msra.mxu0 0.0
  %174 = vmatprep.subr.mxu0 0.0
  %175 = vmatpush1.msra.mxu0 0.0
  %176 = vmatprep.subr.mxu0 0.0
  %177 = vmatpush1.msra.mxu0 0.0
  %178 = vmatprep.subr.mxu0 0.0
  %179 = vmatpush1.msra.mxu0 0.0
  %180 = vmatprep.subr.mxu0 0.0
  %181 = vmatpush1.msra.mxu0 0.0
  %182 = vmatprep.subr.mxu0 0.0
  %183 = vmatpush1.msra.mxu0 0.0
  %184 = vmatprep.subr.mxu0 0.0
  %185 = vmatpush1.msra.mxu0 0.0
  %186 = vmatprep.subr.mxu0 0.0
  %187 = vmatpush1.msra.mxu0 0.0
  %188 = vmatprep.subr.mxu0 0.0
  %189 = vmatpush1.msra.mxu0 0.0
  %190 = vmatprep.subr.mxu0 0.0
  %191 = vmatpush1.msra.mxu0 0.0
  %192 = vmatprep.subr.mxu0 0.0
  %193 = vmatpush1.msra.mxu0 0.0
  %194 = vmatprep.subr.mxu0 0.0
  %195 = vmatpush1.msra.mxu0 0.0
  %196 = vmatprep.mubr.f32.mxu0 0.0
  %197 = vmatmul.mubr.f32.gmra.mrb[0].mxu0 %v59
  %v198 = vpop.f32.mrb[0].mxu0
  %v199 = vadd.f32 %v120, %v198
  %v200 = vpop.f32.mrb[0].mxu0
  %v201 = vadd.f32 %v124, %v200
  %202 = vmatprep.mubr.f32.mxu0 0.0
  %203 = vmatmul.mubr.f32.gmra.mrb[0].mxu0 %v60
  %v204 = vpop.f32.mrb[0].mxu0
  %v205 = vadd.f32 %v120, %v204
  %v206 = vpop.f32.mrb[0].mxu0
  %v207 = vadd.f32 %v124, %v206
  %208 = vmatprep.mubr.f32.mxu0 0.0
  %209 = vmatmul.mubr.f32.gmra.mrb[0].mxu0 %v61
  %v210 = vpop.f32.mrb[0].mxu0
  %v211 = vadd.f32 %v120, %v210
  %v212 = vpop.f32.mrb[0].mxu0
  %v213 = vadd.f32 %v124, %v212
  %214 = vmatprep.mubr.f32.mxu0 0.0
  %215 = vmatmul.mubr.f32.gmra.mrb[0].mxu0 %v62
  %v216 = vpop.f32.mrb[0].mxu0
  %v217 = vadd.f32 %v120, %v216
  %v218 = vpop.f32.mrb[0].mxu0
  %v219 = vadd.f32 %v124, %v218
  %220 = vmatprep.mubr.f32.mxu0 0.0
  %221 = vmatmul.mubr.f32.gmra.mrb[0].mxu0 %v63
  %v222 = vpop.f32.mrb[0].mxu0
  %v223 = vadd.f32 %v120, %v222
  %v224 = vpop.f32.mrb[0].mxu0
  %v225 = vadd.f32 %v124, %v224
  %226 = vmatprep.mubr.f32.mxu0 0.0
  %227 = vmatmul.mubr.f32.gmra.mrb[0].mxu0 %v64
  %v228 = vpop.f32.mrb[0].mxu0
  %v229 = vadd.f32 %v120, %v228
  %v230 = vpop.f32.mrb[0].mxu0
  %v231 = vadd.f32 %v124, %v230
  %232 = vmatprep.mubr.f32.mxu0 0.0
  %233 = vmatmul.mubr.f32.gmra.mrb[0].mxu0 %v65
  %v234 = vpop.f32.mrb[0].mxu0
  %v235 = vadd.f32 %v120, %v234
  %v236 = vpop.f32.mrb[0].mxu0
  %v237 = vadd.f32 %v124, %v236
  %238 = vmatprep.mubr.f32.mxu0 0.0
  %239 = vmatmul.mubr.f32.gmra.mrb[0].mxu0 %v66
  %v240 = vpop.f32.mrb[0].mxu0
  %v241 = vadd.f32 %v120, %v240
  %v242 = vpop.f32.mrb[0].mxu0
  %v243 = vadd.f32 %v124, %v242
  %244 = vdwg.mxu0
  %245 = vmatprep.subr.mxu0 0.0
  %246 = vmatpush1.msra.mxu0 %v69
  %247 = vmatprep.subr.mxu0 0.0
  %248 = vmatpush1.msra.mxu0 %v72
  %249 = vmatprep.subr.mxu0 0.0
  %250 = vmatpush1.msra.mxu0 %v75
  %251 = vmatprep.subr.mxu0 0.0
  %252 = vmatpush1.msra.mxu0 %v78
  %253 = vmatprep.subr.mxu0 0.0
  %254 = vmatpush1.msra.mxu0 %v81
  %255 = vmatprep.subr.mxu0 0.0
  %256 = vmatpush1.msra.mxu0 %v84
  %257 = vmatprep.subr.mxu0 0.0
  %258 = vmatpush1.msra.mxu0 %v87
  %259 = vmatprep.subr.mxu0 0.0
  %260 = vmatpush1.msra.mxu0 %v90
  %261 = vmatprep.subr.mxu0 0.0
  %262 = vmatpush1.msra.mxu0 %v93
  %263 = vmatprep.subr.mxu0 0.0
  %264 = vmatpush1.msra.mxu0 %v96
  %265 = vmatprep.subr.mxu0 0.0
  %266 = vmatpush1.msra.mxu0 %v99
  %267 = vmatprep.subr.mxu0 0.0
  %268 = vmatpush1.msra.mxu0 %v102
  %269 = vmatprep.subr.mxu0 0.0
  %270 = vmatpush1.msra.mxu0 %v105
  %271 = vmatprep.subr.mxu0 0.0
  %272 = vmatpush1.msra.mxu0 %v108
  %273 = vmatprep.subr.mxu0 0.0
  %274 = vmatpush1.msra.mxu0 %v111
  %275 = vmatprep.subr.mxu0 0.0
  %276 = vmatpush1.msra.mxu0 %v114
  %277 = vmatprep.subr.mxu0 0.0
  %278 = vmatpush1.msra.mxu0 0.0
  %279 = vmatprep.subr.mxu0 0.0
  %280 = vmatpush1.msra.mxu0 0.0
  %281 = vmatprep.subr.mxu0 0.0
  %282 = vmatpush1.msra.mxu0 0.0
  %283 = vmatprep.subr.mxu0 0.0
  %284 = vmatpush1.msra.mxu0 0.0
  %285 = vmatprep.subr.mxu0 0.0
  %286 = vmatpush1.msra.mxu0 0.0
  %287 = vmatprep.subr.mxu0 0.0
  %288 = vmatpush1.msra.mxu0 0.0
  %289 = vmatprep.subr.mxu0 0.0
  %290 = vmatpush1.msra.mxu0 0.0
  %291 = vmatprep.subr.mxu0 0.0
  %292 = vmatpush1.msra.mxu0 0.0
  %293 = vmatprep.subr.mxu0 0.0
  %294 = vmatpush1.msra.mxu0 0.0
  %295 = vmatprep.subr.mxu0 0.0
  %296 = vmatpush1.msra.mxu0 0.0
  %297 = vmatprep.subr.mxu0 0.0
  %298 = vmatpush1.msra.mxu0 0.0
  %299 = vmatprep.subr.mxu0 0.0
  %300 = vmatpush1.msra.mxu0 0.0
  %301 = vmatprep.subr.mxu0 0.0
  %302 = vmatpush1.msra.mxu0 0.0
  %303 = vmatprep.subr.mxu0 0.0
  %304 = vmatpush1.msra.mxu0 0.0
  %305 = vmatprep.subr.mxu0 0.0
  %306 = vmatpush1.msra.mxu0 0.0
  %307 = vmatprep.subr.mxu0 0.0
  %308 = vmatpush1.msra.mxu0 0.0
  %309 = vmatprep.mubr.f32.mxu0 0.0
  %310 = vmatmul.mubr.f32.gmra.mrb[0].mxu0 %v59
  %v311 = vpop.f32.mrb[0].mxu0
  %v312 = vadd.f32 %v128, %v311
  %v313 = vpop.f32.mrb[0].mxu0
  %314 = vmatprep.mubr.f32.mxu0 0.0
  %315 = vmatmul.mubr.f32.gmra.mrb[0].mxu0 %v60
  %v316 = vpop.f32.mrb[0].mxu0
  %v317 = vadd.f32 %v128, %v316
  %v318 = vpop.f32.mrb[0].mxu0
  %319 = vmatprep.mubr.f32.mxu0 0.0
  %320 = vmatmul.mubr.f32.gmra.mrb[0].mxu0 %v61
  %v321 = vpop.f32.mrb[0].mxu0
  %v322 = vadd.f32 %v128, %v321
  %v323 = vpop.f32.mrb[0].mxu0
  %324 = vmatprep.mubr.f32.mxu0 0.0
  %325 = vmatmul.mubr.f32.gmra.mrb[0].mxu0 %v62
  %v326 = vpop.f32.mrb[0].mxu0
  %v327 = vadd.f32 %v128, %v326
  %v328 = vpop.f32.mrb[0].mxu0
  %329 = vmatprep.mubr.f32.mxu0 0.0
  %330 = vmatmul.mubr.f32.gmra.mrb[0].mxu0 %v63
  %v331 = vpop.f32.mrb[0].mxu0
  %v332 = vadd.f32 %v128, %v331
  %v333 = vpop.f32.mrb[0].mxu0
  %334 = vmatprep.mubr.f32.mxu0 0.0
  %335 = vmatmul.mubr.f32.gmra.mrb[0].mxu0 %v64
  %v336 = vpop.f32.mrb[0].mxu0
  %v337 = vadd.f32 %v128, %v336
  %v338 = vpop.f32.mrb[0].mxu0
  %339 = vmatprep.mubr.f32.mxu0 0.0
  %340 = vmatmul.mubr.f32.gmra.mrb[0].mxu0 %v65
  %v341 = vpop.f32.mrb[0].mxu0
  %v342 = vadd.f32 %v128, %v341
  %v343 = vpop.f32.mrb[0].mxu0
  %344 = vmatprep.mubr.f32.mxu0 0.0
  %345 = vmatmul.mubr.f32.gmra.mrb[0].mxu0 %v66
  %v346 = vpop.f32.mrb[0].mxu0
  %v347 = vadd.f32 %v128, %v346
  %v348 = vpop.f32.mrb[0].mxu0
  %349 = vdwg.mxu0
  %350 = vst [vmem:[#allocation2] sm:$0xff] %v199
  %351 = vst [vmem:[#allocation2 + $0x8] sm:$0xff] %v201
  %352 = vst [vmem:[#allocation2 + $0x10] sm:$0xff] %v312
  %353 = vst [vmem:[#allocation2 + $0x18] sm:$0xff] %v205
  %354 = vst [vmem:[#allocation2 + $0x20] sm:$0xff] %v207
  %355 = vst [vmem:[#allocation2 + $0x28] sm:$0xff] %v317
  %356 = vst [vmem:[#allocation2 + $0x30] sm:$0xff] %v211
  %357 = vst [vmem:[#allocation2 + $0x38] sm:$0xff] %v213
  %358 = vst [vmem:[#allocation2 + $0x40] sm:$0xff] %v322
  %359 = vst [vmem:[#allocation2 + $0x48] sm:$0xff] %v217
  %360 = vst [vmem:[#allocation2 + $0x50] sm:$0xff] %v219
  %361 = vst [vmem:[#allocation2 + $0x58] sm:$0xff] %v327
  %362 = vst [vmem:[#allocation2 + $0x60] sm:$0xff] %v223
  %363 = vst [vmem:[#allocation2 + $0x68] sm:$0xff] %v225
  %364 = vst [vmem:[#allocation2 + $0x70] sm:$0xff] %v332
  %365 = vst [vmem:[#allocation2 + $0x78] sm:$0xff] %v229
  %366 = vst [vmem:[#allocation2 + $0x80] sm:$0xff] %v231
  %367 = vst [vmem:[#allocation2 + $0x88] sm:$0xff] %v337
  %368 = vst [vmem:[#allocation2 + $0x90] sm:$0xff] %v235
  %369 = vst [vmem:[#allocation2 + $0x98] sm:$0xff] %v237
  %370 = vst [vmem:[#allocation2 + $0xa0] sm:$0xff] %v342
  %371 = vst [vmem:[#allocation2 + $0xa8] sm:$0xff] %v241
  %372 = vst [vmem:[#allocation2 + $0xb0] sm:$0xff] %v243
  %373 = vst [vmem:[#allocation2 + $0xb8] sm:$0xff] %v347
  %v374 = vld [vmem:[#allocation2] sm:$0xff]
  %v375 = vld [vmem:[#allocation2 + $0x8] sm:$0xff]
  %v376 = vld [vmem:[#allocation2 + $0x10] sm:$0xff]
  %v377 = vld [vmem:[#allocation2 + $0xa8] sm:$0xff]
  %v378 = vld [vmem:[#allocation2 + $0xb0] sm:$0xff]
  %v379 = vld [vmem:[#allocation2 + $0xb8] sm:$0xff]
  %v380 = vsel %vm56, %v374, %v377
  %v381 = vsel %vm57, %v375, %v378
  %v382 = vsel %vm58, %v376, %v379
  %v383 = vld [vmem:[%s1] sm:$0xff]
  %v384 = vld [vmem:[%s5] sm:$0xff]
  %v385 = vld [vmem:[%s5 + $0x8] sm:$0xff]
  %v386 = vld [vmem:[%s5 + $0x10] sm:$0xff]
  %v387 = vld [vmem:[%s5 + $0x18] sm:$0xff]
  %v388 = vld [vmem:[%s5 + $0x20] sm:$0xff]
  %v389 = vld [vmem:[%s5 + $0x28] sm:$0xff]
  %v390 = vld [vmem:[%s5 + $0x30] sm:$0xff]
  %v391 = vld [vmem:[%s5 + $0x38] sm:$0xff]
  %v392 = vld [vmem:[%s5 + $0x40] sm:$0xff]
  %v393 = vld [vmem:[%s5 + $0x48] sm:$0xff]
  %v394 = vld [vmem:[%s5 + $0x50] sm:$0xff]
  %v395 = vld [vmem:[%s5 + $0x58] sm:$0xff]
  %v396 = vld [vmem:[%s5 + $0x60] sm:$0xff]
  %v397 = vld [vmem:[%s5 + $0x68] sm:$0xff]
  %v398 = vld [vmem:[%s5 + $0x70] sm:$0xff]
  %v399 = vld [vmem:[%s5 + $0x78] sm:$0xff]
  %v400 = vld [vmem:[%s5 + $0x80] sm:$0xff]
  %v401 = vld [vmem:[%s5 + $0x88] sm:$0xff]
  %v402 = vld [vmem:[%s5 + $0x90] sm:$0xff]
  %v403 = vld [vmem:[%s5 + $0x98] sm:$0xff]
  %v404 = vld [vmem:[%s5 + $0xa0] sm:$0xff]
  %v405 = vld [vmem:[%s5 + $0xa8] sm:$0xff]
  %v406 = vld [vmem:[%s5 + $0xb0] sm:$0xff]
  %v407 = vld [vmem:[%s5 + $0xb8] sm:$0xff]
  %v408 = vld [vmem:[%s5 + $0xc0] sm:$0xff]
  %v409 = vld [vmem:[%s5 + $0xc8] sm:$0xff]
  %v410 = vld [vmem:[%s5 + $0xd0] sm:$0xff]
  %v411 = vld [vmem:[%s5 + $0xd8] sm:$0xff]
  %v412 = vld [vmem:[%s5 + $0xe0] sm:$0xff]
  %v413 = vld [vmem:[%s5 + $0xe8] sm:$0xff]
  %v414 = vld [vmem:[%s5 + $0xf0] sm:$0xff]
  %v415 = vld [vmem:[%s5 + $0xf8] sm:$0xff]
  %v416 = vld [vmem:[%s5 + $0x100] sm:$0xff]
  %v417 = vld [vmem:[%s5 + $0x108] sm:$0xff]
  %v418 = vld [vmem:[%s5 + $0x110] sm:$0xff]
  %v419 = vld [vmem:[%s5 + $0x118] sm:$0xff]
  %v420 = vld [vmem:[%s5 + $0x120] sm:$0xff]
  %v421 = vld [vmem:[%s5 + $0x128] sm:$0xff]
  %v422 = vld [vmem:[%s5 + $0x130] sm:$0xff]
  %v423 = vld [vmem:[%s5 + $0x138] sm:$0xff]
  %v424 = vld [vmem:[%s5 + $0x140] sm:$0xff]
  %v425 = vld [vmem:[%s5 + $0x148] sm:$0xff]
  %v426 = vld [vmem:[%s5 + $0x150] sm:$0xff]
  %v427 = vld [vmem:[%s5 + $0x158] sm:$0xff]
  %v428 = vld [vmem:[%s5 + $0x160] sm:$0xff]
  %v429 = vld [vmem:[%s5 + $0x168] sm:$0xff]
  %v430 = vld [vmem:[%s5 + $0x170] sm:$0xff]
  %v431 = vld [vmem:[%s5 + $0x178] sm:$0xff]
  %v432 = vld [vmem:[%s6] sm:$0x7]
  %v434 = vlaneseq
  %v435 = vshrl.u32 %v434, 7
  %v436 = vsub.s32 0, %v435
  %v437 = vrot.slane %v432, %v436
  %v438 = vlaneseq
  %v439 = vshrl.u32 %v438, 7
  %v440 = vsub.s32 1, %v439
  %v441 = vrot.slane %v432, %v440
  %v442 = vlaneseq
  %v443 = vshrl.u32 %v442, 7
  %v444 = vsub.s32 2, %v443
  %v445 = vrot.slane %v432, %v444
  %449 = vmatprep.subr.mxu0 %v385
  %450 = vmatpush1.msra.mxu0 %v384
  %451 = vmatprep.subr.mxu0 %v388
  %452 = vmatpush1.msra.mxu0 %v387
  %453 = vmatprep.subr.mxu0 %v391
  %454 = vmatpush1.msra.mxu0 %v390
  %455 = vmatprep.subr.mxu0 %v394
  %456 = vmatpush1.msra.mxu0 %v393
  %457 = vmatprep.subr.mxu0 %v397
  %458 = vmatpush1.msra.mxu0 %v396
  %459 = vmatprep.subr.mxu0 %v400
  %460 = vmatpush1.msra.mxu0 %v399
  %461 = vmatprep.subr.mxu0 %v403
  %462 = vmatpush1.msra.mxu0 %v402
  %463 = vmatprep.subr.mxu0 %v406
  %464 = vmatpush1.msra.mxu0 %v405
  %465 = vmatprep.subr.mxu0 %v409
  %466 = vmatpush1.msra.mxu0 %v408
  %467 = vmatprep.subr.mxu0 %v412
  %468 = vmatpush1.msra.mxu0 %v411
  %469 = vmatprep.subr.mxu0 %v415
  %470 = vmatpush1.msra.mxu0 %v414
  %471 = vmatprep.subr.mxu0 %v418
  %472 = vmatpush1.msra.mxu0 %v417
  %473 = vmatprep.subr.mxu0 %v421
  %474 = vmatpush1.msra.mxu0 %v420
  %475 = vmatprep.subr.mxu0 %v424
  %476 = vmatpush1.msra.mxu0 %v423
  %477 = vmatprep.subr.mxu0 %v427
  %478 = vmatpush1.msra.mxu0 %v426
  %479 = vmatprep.subr.mxu0 %v430
  %480 = vmatpush1.msra.mxu0 %v429
  %481 = vmatprep.subr.mxu0 0.0
  %482 = vmatpush1.msra.mxu0 0.0
  %483 = vmatprep.subr.mxu0 0.0
  %484 = vmatpush1.msra.mxu0 0.0
  %485 = vmatprep.subr.mxu0 0.0
  %486 = vmatpush1.msra.mxu0 0.0
  %487 = vmatprep.subr.mxu0 0.0
  %488 = vmatpush1.msra.mxu0 0.0
  %489 = vmatprep.subr.mxu0 0.0
  %490 = vmatpush1.msra.mxu0 0.0
  %491 = vmatprep.subr.mxu0 0.0
  %492 = vmatpush1.msra.mxu0 0.0
  %493 = vmatprep.subr.mxu0 0.0
  %494 = vmatpush1.msra.mxu0 0.0
  %495 = vmatprep.subr.mxu0 0.0
  %496 = vmatpush1.msra.mxu0 0.0
  %497 = vmatprep.subr.mxu0 0.0
  %498 = vmatpush1.msra.mxu0 0.0
  %499 = vmatprep.subr.mxu0 0.0
  %500 = vmatpush1.msra.mxu0 0.0
  %501 = vmatprep.subr.mxu0 0.0
  %502 = vmatpush1.msra.mxu0 0.0
  %503 = vmatprep.subr.mxu0 0.0
  %504 = vmatpush1.msra.mxu0 0.0
  %505 = vmatprep.subr.mxu0 0.0
  %506 = vmatpush1.msra.mxu0 0.0
  %507 = vmatprep.subr.mxu0 0.0
  %508 = vmatpush1.msra.mxu0 0.0
  %509 = vmatprep.subr.mxu0 0.0
  %510 = vmatpush1.msra.mxu0 0.0
  %511 = vmatprep.subr.mxu0 0.0
  %512 = vmatpush1.msra.mxu0 0.0
  %513 = vmatprep.mubr.f32.mxu0 0.0
  %514 = vmatmul.mubr.f32.gmra.mrb[0].mxu0 0.0
  %v515 = vpop.f32.mrb[0].mxu0
  %v516 = vadd.f32 %v437, %v515
  %v517 = vpop.f32.mrb[0].mxu0
  %v518 = vadd.f32 %v441, %v517
  %519 = vdwg.mxu0
  %520 = vmatprep.subr.mxu0 0.0
  %521 = vmatpush1.msra.mxu0 %v386
  %522 = vmatprep.subr.mxu0 0.0
  %523 = vmatpush1.msra.mxu0 %v389
  %524 = vmatprep.subr.mxu0 0.0
  %525 = vmatpush1.msra.mxu0 %v392
  %526 = vmatprep.subr.mxu0 0.0
  %527 = vmatpush1.msra.mxu0 %v395
  %528 = vmatprep.subr.mxu0 0.0
  %529 = vmatpush1.msra.mxu0 %v398
  %530 = vmatprep.subr.mxu0 0.0
  %531 = vmatpush1.msra.mxu0 %v401
  %532 = vmatprep.subr.mxu0 0.0
  %533 = vmatpush1.msra.mxu0 %v404
  %534 = vmatprep.subr.mxu0 0.0
  %535 = vmatpush1.msra.mxu0 %v407
  %536 = vmatprep.subr.mxu0 0.0
  %537 = vmatpush1.msra.mxu0 %v410
  %538 = vmatprep.subr.mxu0 0.0
  %539 = vmatpush1.msra.mxu0 %v413
  %540 = vmatprep.subr.mxu0 0.0
  %541 = vmatpush1.msra.mxu0 %v416
  %542 = vmatprep.subr.mxu0 0.0
  %543 = vmatpush1.msra.mxu0 %v419
  %544 = vmatprep.subr.mxu0 0.0
  %545 = vmatpush1.msra.mxu0 %v422
  %546 = vmatprep.subr.mxu0 0.0
  %547 = vmatpush1.msra.mxu0 %v425
  %548 = vmatprep.subr.mxu0 0.0
  %549 = vmatpush1.msra.mxu0 %v428
  %550 = vmatprep.subr.mxu0 0.0
  %551 = vmatpush1.msra.mxu0 %v431
  %552 = vmatprep.subr.mxu0 0.0
  %553 = vmatpush1.msra.mxu0 0.0
  %554 = vmatprep.subr.mxu0 0.0
  %555 = vmatpush1.msra.mxu0 0.0
  %556 = vmatprep.subr.mxu0 0.0
  %557 = vmatpush1.msra.mxu0 0.0
  %558 = vmatprep.subr.mxu0 0.0
  %559 = vmatpush1.msra.mxu0 0.0
  %560 = vmatprep.subr.mxu0 0.0
  %561 = vmatpush1.msra.mxu0 0.0
  %562 = vmatprep.subr.mxu0 0.0
  %563 = vmatpush1.msra.mxu0 0.0
  %564 = vmatprep.subr.mxu0 0.0
  %565 = vmatpush1.msra.mxu0 0.0
  %566 = vmatprep.subr.mxu0 0.0
  %567 = vmatpush1.msra.mxu0 0.0
  %568 = vmatprep.subr.mxu0 0.0
  %569 = vmatpush1.msra.mxu0 0.0
  %570 = vmatprep.subr.mxu0 0.0
  %571 = vmatpush1.msra.mxu0 0.0
  %572 = vmatprep.subr.mxu0 0.0
  %573 = vmatpush1.msra.mxu0 0.0
  %574 = vmatprep.subr.mxu0 0.0
  %575 = vmatpush1.msra.mxu0 0.0
  %576 = vmatprep.subr.mxu0 0.0
  %577 = vmatpush1.msra.mxu0 0.0
  %578 = vmatprep.subr.mxu0 0.0
  %579 = vmatpush1.msra.mxu0 0.0
  %580 = vmatprep.subr.mxu0 0.0
  %581 = vmatpush1.msra.mxu0 0.0
  %582 = vmatprep.subr.mxu0 0.0
  %583 = vmatpush1.msra.mxu0 0.0
  %584 = vmatprep.mubr.f32.mxu0 0.0
  %585 = vmatmul.mubr.f32.gmra.mrb[0].mxu0 0.0
  %v586 = vpop.f32.mrb[0].mxu0
  %v587 = vadd.f32 %v445, %v586
  %v588 = vpop.f32.mrb[0].mxu0
  %589 = vdwg.mxu0
  %v590 = vadd.f32 %v380, %v516
  %v591 = vxor.u32 %v590, 2147483648
  %v592 = vmul.f32 %v591, 1.442695
  %v593 = vpow.pop %v592
  %v594 = vadd.f32 %v593, 1.0
  %v595 = vrcp.pop %v594
  %v596 = vmul.f32 1.0, %v595
  %v597 = vadd.f32 %v381, %v518
  %v598 = vxor.u32 %v597, 2147483648
  %v599 = vmul.f32 %v598, 1.442695
  %v600 = vpow.pop %v599
  %v601 = vadd.f32 %v600, 1.0
  %v602 = vrcp.pop %v601
  %v603 = vmul.f32 1.0, %v602
  %v604 = vmul.f32 %v596, %v587
  %v605 = vadd.f32 %v382, %v604
  %v606 = vtanh.pop %v605
  %v607 = vsub.f32 1.0, %v603
  %v608 = vmul.f32 %v607, %v606
  %v609 = vmul.f32 %v603, 0.0
  %v610 = vadd.f32 %v608, %v609
  %v611 = vmul.f32 %v383, %v610
  %v612 = vadd.f32 %v611, 0.0
  %vm613 = vcmask 523264
  %614 = vst.msk [vmem:[#allocation4] sm:$0xff] %vm613, %v611
  %616 = vrot.lane.b32.xlu0 %v611, 64
  %v617 = vpop.permute.xlu0 %616
  %619 = vst.msk [vmem:[#allocation5 + $0x38] sm:$0xff] %vm613, %v617
  %v620 = vld [vmem:[#allocation2 + $0x18] sm:$0xff]
  %v621 = vld [vmem:[#allocation2 + $0x20] sm:$0xff]
  %v622 = vld [vmem:[#allocation2 + $0x28] sm:$0xff]
  %v623 = vld [vmem:[#allocation2 + $0x90] sm:$0xff]
  %v624 = vld [vmem:[#allocation2 + $0x98] sm:$0xff]
  %v625 = vld [vmem:[#allocation2 + $0xa0] sm:$0xff]
  %v626 = vsel %vm56, %v620, %v623
  %v627 = vsel %vm57, %v621, %v624
  %v628 = vsel %vm58, %v622, %v625
  %s629 = scalar_lea.vmem %s1, 8
  %v630 = vld [vmem:[%s629] sm:$0xff]
  %v631 = vld [vmem:[%s5] sm:$0xff]
  %v632 = vld [vmem:[%s5 + $0x8] sm:$0xff]
  %v633 = vld [vmem:[%s5 + $0x10] sm:$0xff]
  %v634 = vld [vmem:[%s5 + $0x18] sm:$0xff]
  %v635 = vld [vmem:[%s5 + $0x20] sm:$0xff]
  %v636 = vld [vmem:[%s5 + $0x28] sm:$0xff]
  %v637 = vld [vmem:[%s5 + $0x30] sm:$0xff]
  %v638 = vld [vmem:[%s5 + $0x38] sm:$0xff]
  %v639 = vld [vmem:[%s5 + $0x40] sm:$0xff]
  %v640 = vld [vmem:[%s5 + $0x48] sm:$0xff]
  %v641 = vld [vmem:[%s5 + $0x50] sm:$0xff]
  %v642 = vld [vmem:[%s5 + $0x58] sm:$0xff]
  %v643 = vld [vmem:[%s5 + $0x60] sm:$0xff]
  %v644 = vld [vmem:[%s5 + $0x68] sm:$0xff]
  %v645 = vld [vmem:[%s5 + $0x70] sm:$0xff]
  %v646 = vld [vmem:[%s5 + $0x78] sm:$0xff]
  %v647 = vld [vmem:[%s5 + $0x80] sm:$0xff]
  %v648 = vld [vmem:[%s5 + $0x88] sm:$0xff]
  %v649 = vld [vmem:[%s5 + $0x90] sm:$0xff]
  %v650 = vld [vmem:[%s5 + $0x98] sm:$0xff]
  %v651 = vld [vmem:[%s5 + $0xa0] sm:$0xff]
  %v652 = vld [vmem:[%s5 + $0xa8] sm:$0xff]
  %v653 = vld [vmem:[%s5 + $0xb0] sm:$0xff]
  %v654 = vld [vmem:[%s5 + $0xb8] sm:$0xff]
  %v655 = vld [vmem:[%s5 + $0xc0] sm:$0xff]
  %v656 = vld [vmem:[%s5 + $0xc8] sm:$0xff]
  %v657 = vld [vmem:[%s5 + $0xd0] sm:$0xff]
  %v658 = vld [vmem:[%s5 + $0xd8] sm:$0xff]
  %v659 = vld [vmem:[%s5 + $0xe0] sm:$0xff]
  %v660 = vld [vmem:[%s5 + $0xe8] sm:$0xff]
  %v661 = vld [vmem:[%s5 + $0xf0] sm:$0xff]
  %v662 = vld [vmem:[%s5 + $0xf8] sm:$0xff]
  %v663 = vld [vmem:[%s5 + $0x100] sm:$0xff]
  %v664 = vld [vmem:[%s5 + $0x108] sm:$0xff]
  %v665 = vld [vmem:[%s5 + $0x110] sm:$0xff]
  %v666 = vld [vmem:[%s5 + $0x118] sm:$0xff]
  %v667 = vld [vmem:[%s5 + $0x120] sm:$0xff]
  %v668 = vld [vmem:[%s5 + $0x128] sm:$0xff]
  %v669 = vld [vmem:[%s5 + $0x130] sm:$0xff]
  %v670 = vld [vmem:[%s5 + $0x138] sm:$0xff]
  %v671 = vld [vmem:[%s5 + $0x140] sm:$0xff]
  %v672 = vld [vmem:[%s5 + $0x148] sm:$0xff]
  %v673 = vld [vmem:[%s5 + $0x150] sm:$0xff]
  %v674 = vld [vmem:[%s5 + $0x158] sm:$0xff]
  %v675 = vld [vmem:[%s5 + $0x160] sm:$0xff]
  %v676 = vld [vmem:[%s5 + $0x168] sm:$0xff]
  %v677 = vld [vmem:[%s5 + $0x170] sm:$0xff]
  %v678 = vld [vmem:[%s5 + $0x178] sm:$0xff]
  %v679 = vld [vmem:[%s6] sm:$0x7]
  %v681 = vlaneseq
  %v682 = vshrl.u32 %v681, 7
  %v683 = vsub.s32 0, %v682
  %v684 = vrot.slane %v679, %v683
  %v685 = vlaneseq
  %v686 = vshrl.u32 %v685, 7
  %v687 = vsub.s32 1, %v686
  %v688 = vrot.slane %v679, %v687
  %v689 = vlaneseq
  %v690 = vshrl.u32 %v689, 7
  %v691 = vsub.s32 2, %v690
  %v692 = vrot.slane %v679, %v691
  %696 = vmatprep.subr.mxu0 %v632
  %697 = vmatpush1.msra.mxu0 %v631
  %698 = vmatprep.subr.mxu0 %v635
  %699 = vmatpush1.msra.mxu0 %v634
  %700 = vmatprep.subr.mxu0 %v638
  %701 = vmatpush1.msra.mxu0 %v637
  %702 = vmatprep.subr.mxu0 %v641
  %703 = vmatpush1.msra.mxu0 %v640
  %704 = vmatprep.subr.mxu0 %v644
  %705 = vmatpush1.msra.mxu0 %v643
  %706 = vmatprep.subr.mxu0 %v647
  %707 = vmatpush1.msra.mxu0 %v646
  %708 = vmatprep.subr.mxu0 %v650
  %709 = vmatpush1.msra.mxu0 %v649
  %710 = vmatprep.subr.mxu0 %v653
  %711 = vmatpush1.msra.mxu0 %v652
  %712 = vmatprep.subr.mxu0 %v656
  %713 = vmatpush1.msra.mxu0 %v655
  %714 = vmatprep.subr.mxu0 %v659
  %715 = vmatpush1.msra.mxu0 %v658
  %716 = vmatprep.subr.mxu0 %v662
  %717 = vmatpush1.msra.mxu0 %v661
  %718 = vmatprep.subr.mxu0 %v665
  %719 = vmatpush1.msra.mxu0 %v664
  %720 = vmatprep.subr.mxu0 %v668
  %721 = vmatpush1.msra.mxu0 %v667
  %722 = vmatprep.subr.mxu0 %v671
  %723 = vmatpush1.msra.mxu0 %v670
  %724 = vmatprep.subr.mxu0 %v674
  %725 = vmatpush1.msra.mxu0 %v673
  %726 = vmatprep.subr.mxu0 %v677
  %727 = vmatpush1.msra.mxu0 %v676
  %728 = vmatprep.subr.mxu0 0.0
  %729 = vmatpush1.msra.mxu0 0.0
  %730 = vmatprep.subr.mxu0 0.0
  %731 = vmatpush1.msra.mxu0 0.0
  %732 = vmatprep.subr.mxu0 0.0
  %733 = vmatpush1.msra.mxu0 0.0
  %734 = vmatprep.subr.mxu0 0.0
  %735 = vmatpush1.msra.mxu0 0.0
  %736 = vmatprep.subr.mxu0 0.0
  %737 = vmatpush1.msra.mxu0 0.0
  %738 = vmatprep.subr.mxu0 0.0
  %739 = vmatpush1.msra.mxu0 0.0
  %740 = vmatprep.subr.mxu0 0.0
  %741 = vmatpush1.msra.mxu0 0.0
  %742 = vmatprep.subr.mxu0 0.0
  %743 = vmatpush1.msra.mxu0 0.0
  %744 = vmatprep.subr.mxu0 0.0
  %745 = vmatpush1.msra.mxu0 0.0
  %746 = vmatprep.subr.mxu0 0.0
  %747 = vmatpush1.msra.mxu0 0.0
  %748 = vmatprep.subr.mxu0 0.0
  %749 = vmatpush1.msra.mxu0 0.0
  %750 = vmatprep.subr.mxu0 0.0
  %751 = vmatpush1.msra.mxu0 0.0
  %752 = vmatprep.subr.mxu0 0.0
  %753 = vmatpush1.msra.mxu0 0.0
  %754 = vmatprep.subr.mxu0 0.0
  %755 = vmatpush1.msra.mxu0 0.0
  %756 = vmatprep.subr.mxu0 0.0
  %757 = vmatpush1.msra.mxu0 0.0
  %758 = vmatprep.subr.mxu0 0.0
  %759 = vmatpush1.msra.mxu0 0.0
  %760 = vmatprep.mubr.f32.mxu0 0.0
  %761 = vmatmul.mubr.f32.gmra.mrb[0].mxu0 %v612
  %v762 = vpop.f32.mrb[0].mxu0
  %v763 = vadd.f32 %v684, %v762
  %v764 = vpop.f32.mrb[0].mxu0
  %v765 = vadd.f32 %v688, %v764
  %766 = vdwg.mxu0
  %767 = vmatprep.subr.mxu0 0.0
  %768 = vmatpush1.msra.mxu0 %v633
  %769 = vmatprep.subr.mxu0 0.0
  %770 = vmatpush1.msra.mxu0 %v636
  %771 = vmatprep.subr.mxu0 0.0
  %772 = vmatpush1.msra.mxu0 %v639
  %773 = vmatprep.subr.mxu0 0.0
  %774 = vmatpush1.msra.mxu0 %v642
  %775 = vmatprep.subr.mxu0 0.0
  %776 = vmatpush1.msra.mxu0 %v645
  %777 = vmatprep.subr.mxu0 0.0
  %778 = vmatpush1.msra.mxu0 %v648
  %779 = vmatprep.subr.mxu0 0.0
  %780 = vmatpush1.msra.mxu0 %v651
  %781 = vmatprep.subr.mxu0 0.0
  %782 = vmatpush1.msra.mxu0 %v654
  %783 = vmatprep.subr.mxu0 0.0
  %784 = vmatpush1.msra.mxu0 %v657
  %785 = vmatprep.subr.mxu0 0.0
  %786 = vmatpush1.msra.mxu0 %v660
  %787 = vmatprep.subr.mxu0 0.0
  %788 = vmatpush1.msra.mxu0 %v663
  %789 = vmatprep.subr.mxu0 0.0
  %790 = vmatpush1.msra.mxu0 %v666
  %791 = vmatprep.subr.mxu0 0.0
  %792 = vmatpush1.msra.mxu0 %v669
  %793 = vmatprep.subr.mxu0 0.0
  %794 = vmatpush1.msra.mxu0 %v672
  %795 = vmatprep.subr.mxu0 0.0
  %796 = vmatpush1.msra.mxu0 %v675
  %797 = vmatprep.subr.mxu0 0.0
  %798 = vmatpush1.msra.mxu0 %v678
  %799 = vmatprep.subr.mxu0 0.0
  %800 = vmatpush1.msra.mxu0 0.0
  %801 = vmatprep.subr.mxu0 0.0
  %802 = vmatpush1.msra.mxu0 0.0
  %803 = vmatprep.subr.mxu0 0.0
  %804 = vmatpush1.msra.mxu0 0.0
  %805 = vmatprep.subr.mxu0 0.0
  %806 = vmatpush1.msra.mxu0 0.0
  %807 = vmatprep.subr.mxu0 0.0
  %808 = vmatpush1.msra.mxu0 0.0
  %809 = vmatprep.subr.mxu0 0.0
  %810 = vmatpush1.msra.mxu0 0.0
  %811 = vmatprep.subr.mxu0 0.0
  %812 = vmatpush1.msra.mxu0 0.0
  %813 = vmatprep.subr.mxu0 0.0
  %814 = vmatpush1.msra.mxu0 0.0
  %815 = vmatprep.subr.mxu0 0.0
  %816 = vmatpush1.msra.mxu0 0.0
  %817 = vmatprep.subr.mxu0 0.0
  %818 = vmatpush1.msra.mxu0 0.0
  %819 = vmatprep.subr.mxu0 0.0
  %820 = vmatpush1.msra.mxu0 0.0
  %821 = vmatprep.subr.mxu0 0.0
  %822 = vmatpush1.msra.mxu0 0.0
  %823 = vmatprep.subr.mxu0 0.0
  %824 = vmatpush1.msra.mxu0 0.0
  %825 = vmatprep.subr.mxu0 0.0
  %826 = vmatpush1.msra.mxu0 0.0
  %827 = vmatprep.subr.mxu0 0.0
  %828 = vmatpush1.msra.mxu0 0.0
  %829 = vmatprep.subr.mxu0 0.0
  %830 = vmatpush1.msra.mxu0 0.0
  %831 = vmatprep.mubr.f32.mxu0 0.0
  %832 = vmatmul.mubr.f32.gmra.mrb[0].mxu0 %v612
  %v833 = vpop.f32.mrb[0].mxu0
  %v834 = vadd.f32 %v692, %v833
  %v835 = vpop.f32.mrb[0].mxu0
  %836 = vdwg.mxu0
  %v837 = vadd.f32 %v626, %v763
  %v838 = vxor.u32 %v837, 2147483648
  %v839 = vmul.f32 %v838, 1.442695
  %v840 = vpow.pop %v839
  %v841 = vadd.f32 %v840, 1.0
  %v842 = vrcp.pop %v841
  %v843 = vmul.f32 1.0, %v842
  %v844 = vadd.f32 %v627, %v765
  %v845 = vxor.u32 %v844, 2147483648
  %v846 = vmul.f32 %v845, 1.442695
  %v847 = vpow.pop %v846
  %v848 = vadd.f32 %v847, 1.0
  %v849 = vrcp.pop %v848
  %v850 = vmul.f32 1.0, %v849
  %v851 = vmul.f32 %v843, %v834
  %v852 = vadd.f32 %v628, %v851
  %v853 = vtanh.pop %v852
  %v854 = vsub.f32 1.0, %v850
  %v855 = vmul.f32 %v854, %v853
  %v856 = vmul.f32 %v850, %v612
  %v857 = vadd.f32 %v855, %v856
  %v858 = vsub.f32 %v857, %v612
  %v859 = vmul.f32 %v630, %v858
  %v860 = vadd.f32 %v612, %v859
  %v861 = vmul.f32 %v630, %v857
  %862 = vst.msk [vmem:[#allocation4 + $0x8] sm:$0xff] %vm613, %v861
  %864 = vrot.lane.b32.xlu0 %v861, 64
  %v865 = vpop.permute.xlu0 %864
  %867 = vst.msk [vmem:[#allocation5 + $0x30] sm:$0xff] %vm613, %v865
  %v868 = vld [vmem:[#allocation2 + $0x30] sm:$0xff]
  %v869 = vld [vmem:[#allocation2 + $0x38] sm:$0xff]
  %v870 = vld [vmem:[#allocation2 + $0x40] sm:$0xff]
  %v871 = vld [vmem:[#allocation2 + $0x78] sm:$0xff]
  %v872 = vld [vmem:[#allocation2 + $0x80] sm:$0xff]
  %v873 = vld [vmem:[#allocation2 + $0x88] sm:$0xff]
  %v874 = vsel %vm56, %v868, %v871
  %v875 = vsel %vm57, %v869, %v872
  %v876 = vsel %vm58, %v870, %v873
  %s877 = scalar_lea.vmem %s1, 16
  %v878 = vld [vmem:[%s877] sm:$0xff]
  %v879 = vld [vmem:[%s5] sm:$0xff]
  %v880 = vld [vmem:[%s5 + $0x8] sm:$0xff]
  %v881 = vld [vmem:[%s5 + $0x10] sm:$0xff]
  %v882 = vld [vmem:[%s5 + $0x18] sm:$0xff]
  %v883 = vld [vmem:[%s5 + $0x20] sm:$0xff]
  %v884 = vld [vmem:[%s5 + $0x28] sm:$0xff]
  %v885 = vld [vmem:[%s5 + $0x30] sm:$0xff]
  %v886 = vld [vmem:[%s5 + $0x38] sm:$0xff]
  %v887 = vld [vmem:[%s5 + $0x40] sm:$0xff]
  %v888 = vld [vmem:[%s5 + $0x48] sm:$0xff]
  %v889 = vld [vmem:[%s5 + $0x50] sm:$0xff]
  %v890 = vld [vmem:[%s5 + $0x58] sm:$0xff]
  %v891 = vld [vmem:[%s5 + $0x60] sm:$0xff]
  %v892 = vld [vmem:[%s5 + $0x68] sm:$0xff]
  %v893 = vld [vmem:[%s5 + $0x70] sm:$0xff]
  %v894 = vld [vmem:[%s5 + $0x78] sm:$0xff]
  %v895 = vld [vmem:[%s5 + $0x80] sm:$0xff]
  %v896 = vld [vmem:[%s5 + $0x88] sm:$0xff]
  %v897 = vld [vmem:[%s5 + $0x90] sm:$0xff]
  %v898 = vld [vmem:[%s5 + $0x98] sm:$0xff]
  %v899 = vld [vmem:[%s5 + $0xa0] sm:$0xff]
  %v900 = vld [vmem:[%s5 + $0xa8] sm:$0xff]
  %v901 = vld [vmem:[%s5 + $0xb0] sm:$0xff]
  %v902 = vld [vmem:[%s5 + $0xb8] sm:$0xff]
  %v903 = vld [vmem:[%s5 + $0xc0] sm:$0xff]
  %v904 = vld [vmem:[%s5 + $0xc8] sm:$0xff]
  %v905 = vld [vmem:[%s5 + $0xd0] sm:$0xff]
  %v906 = vld [vmem:[%s5 + $0xd8] sm:$0xff]
  %v907 = vld [vmem:[%s5 + $0xe0] sm:$0xff]
  %v908 = vld [vmem:[%s5 + $0xe8] sm:$0xff]
  %v909 = vld [vmem:[%s5 + $0xf0] sm:$0xff]
  %v910 = vld [vmem:[%s5 + $0xf8] sm:$0xff]
  %v911 = vld [vmem:[%s5 + $0x100] sm:$0xff]
  %v912 = vld [vmem:[%s5 + $0x108] sm:$0xff]
  %v913 = vld [vmem:[%s5 + $0x110] sm:$0xff]
  %v914 = vld [vmem:[%s5 + $0x118] sm:$0xff]
  %v915 = vld [vmem:[%s5 + $0x120] sm:$0xff]
  %v916 = vld [vmem:[%s5 + $0x128] sm:$0xff]
  %v917 = vld [vmem:[%s5 + $0x130] sm:$0xff]
  %v918 = vld [vmem:[%s5 + $0x138] sm:$0xff]
  %v919 = vld [vmem:[%s5 + $0x140] sm:$0xff]
  %v920 = vld [vmem:[%s5 + $0x148] sm:$0xff]
  %v921 = vld [vmem:[%s5 + $0x150] sm:$0xff]
  %v922 = vld [vmem:[%s5 + $0x158] sm:$0xff]
  %v923 = vld [vmem:[%s5 + $0x160] sm:$0xff]
  %v924 = vld [vmem:[%s5 + $0x168] sm:$0xff]
  %v925 = vld [vmem:[%s5 + $0x170] sm:$0xff]
  %v926 = vld [vmem:[%s5 + $0x178] sm:$0xff]
  %v927 = vld [vmem:[%s6] sm:$0x7]
  %v929 = vlaneseq
  %v930 = vshrl.u32 %v929, 7
  %v931 = vsub.s32 0, %v930
  %v932 = vrot.slane %v927, %v931
  %v933 = vlaneseq
  %v934 = vshrl.u32 %v933, 7
  %v935 = vsub.s32 1, %v934
  %v936 = vrot.slane %v927, %v935
  %v937 = vlaneseq
  %v938 = vshrl.u32 %v937, 7
  %v939 = vsub.s32 2, %v938
  %v940 = vrot.slane %v927, %v939
  %944 = vmatprep.subr.mxu0 %v880
  %945 = vmatpush1.msra.mxu0 %v879
  %946 = vmatprep.subr.mxu0 %v883
  %947 = vmatpush1.msra.mxu0 %v882
  %948 = vmatprep.subr.mxu0 %v886
  %949 = vmatpush1.msra.mxu0 %v885
  %950 = vmatprep.subr.mxu0 %v889
  %951 = vmatpush1.msra.mxu0 %v888
  %952 = vmatprep.subr.mxu0 %v892
  %953 = vmatpush1.msra.mxu0 %v891
  %954 = vmatprep.subr.mxu0 %v895
  %955 = vmatpush1.msra.mxu0 %v894
  %956 = vmatprep.subr.mxu0 %v898
  %957 = vmatpush1.msra.mxu0 %v897
  %958 = vmatprep.subr.mxu0 %v901
  %959 = vmatpush1.msra.mxu0 %v900
  %960 = vmatprep.subr.mxu0 %v904
  %961 = vmatpush1.msra.mxu0 %v903
  %962 = vmatprep.subr.mxu0 %v907
  %963 = vmatpush1.msra.mxu0 %v906
  %964 = vmatprep.subr.mxu0 %v910
  %965 = vmatpush1.msra.mxu0 %v909
  %966 = vmatprep.subr.mxu0 %v913
  %967 = vmatpush1.msra.mxu0 %v912
  %968 = vmatprep.subr.mxu0 %v916
  %969 = vmatpush1.msra.mxu0 %v915
  %970 = vmatprep.subr.mxu0 %v919
  %971 = vmatpush1.msra.mxu0 %v918
  %972 = vmatprep.subr.mxu0 %v922
  %973 = vmatpush1.msra.mxu0 %v921
  %974 = vmatprep.subr.mxu0 %v925
  %975 = vmatpush1.msra.mxu0 %v924
  %976 = vmatprep.subr.mxu0 0.0
  %977 = vmatpush1.msra.mxu0 0.0
  %978 = vmatprep.subr.mxu0 0.0
  %979 = vmatpush1.msra.mxu0 0.0
  %980 = vmatprep.subr.mxu0 0.0
  %981 = vmatpush1.msra.mxu0 0.0
  %982 = vmatprep.subr.mxu0 0.0
  %983 = vmatpush1.msra.mxu0 0.0
  %984 = vmatprep.subr.mxu0 0.0
  %985 = vmatpush1.msra.mxu0 0.0
  %986 = vmatprep.subr.mxu0 0.0
  %987 = vmatpush1.msra.mxu0 0.0
  %988 = vmatprep.subr.mxu0 0.0
  %989 = vmatpush1.msra.mxu0 0.0
  %990 = vmatprep.subr.mxu0 0.0
  %991 = vmatpush1.msra.mxu0 0.0
  %992 = vmatprep.subr.mxu0 0.0
  %993 = vmatpush1.msra.mxu0 0.0
  %994 = vmatprep.subr.mxu0 0.0
  %995 = vmatpush1.msra.mxu0 0.0
  %996 = vmatprep.subr.mxu0 0.0
  %997 = vmatpush1.msra.mxu0 0.0
  %998 = vmatprep.subr.mxu0 0.0
  %999 = vmatpush1.msra.mxu0 0.0
  %1000 = vmatprep.subr.mxu0 0.0
  %1001 = vmatpush1.msra.mxu0 0.0
  %1002 = vmatprep.subr.mxu0 0.0
  %1003 = vmatpush1.msra.mxu0 0.0
  %1004 = vmatprep.subr.mxu0 0.0
  %1005 = vmatpush1.msra.mxu0 0.0
  %1006 = vmatprep.subr.mxu0 0.0
  %1007 = vmatpush1.msra.mxu0 0.0
  %1008 = vmatprep.mubr.f32.mxu0 0.0
  %1009 = vmatmul.mubr.f32.gmra.mrb[0].mxu0 %v860
  %v1010 = vpop.f32.mrb[0].mxu0
  %v1011 = vadd.f32 %v932, %v1010
  %v1012 = vpop.f32.mrb[0].mxu0
  %v1013 = vadd.f32 %v936, %v1012
  %1014 = vdwg.mxu0
  %1015 = vmatprep.subr.mxu0 0.0
  %1016 = vmatpush1.msra.mxu0 %v881
  %1017 = vmatprep.subr.mxu0 0.0
  %1018 = vmatpush1.msra.mxu0 %v884
  %1019 = vmatprep.subr.mxu0 0.0
  %1020 = vmatpush1.msra.mxu0 %v887
  %1021 = vmatprep.subr.mxu0 0.0
  %1022 = vmatpush1.msra.mxu0 %v890
  %1023 = vmatprep.subr.mxu0 0.0
  %1024 = vmatpush1.msra.mxu0 %v893
  %1025 = vmatprep.subr.mxu0 0.0
  %1026 = vmatpush1.msra.mxu0 %v896
  %1027 = vmatprep.subr.mxu0 0.0
  %1028 = vmatpush1.msra.mxu0 %v899
  %1029 = vmatprep.subr.mxu0 0.0
  %1030 = vmatpush1.msra.mxu0 %v902
  %1031 = vmatprep.subr.mxu0 0.0
  %1032 = vmatpush1.msra.mxu0 %v905
  %1033 = vmatprep.subr.mxu0 0.0
  %1034 = vmatpush1.msra.mxu0 %v908
  %1035 = vmatprep.subr.mxu0 0.0
  %1036 = vmatpush1.msra.mxu0 %v911
  %1037 = vmatprep.subr.mxu0 0.0
  %1038 = vmatpush1.msra.mxu0 %v914
  %1039 = vmatprep.subr.mxu0 0.0
  %1040 = vmatpush1.msra.mxu0 %v917
  %1041 = vmatprep.subr.mxu0 0.0
  %1042 = vmatpush1.msra.mxu0 %v920
  %1043 = vmatprep.subr.mxu0 0.0
  %1044 = vmatpush1.msra.mxu0 %v923
  %1045 = vmatprep.subr.mxu0 0.0
  %1046 = vmatpush1.msra.mxu0 %v926
  %1047 = vmatprep.subr.mxu0 0.0
  %1048 = vmatpush1.msra.mxu0 0.0
  %1049 = vmatprep.subr.mxu0 0.0
  %1050 = vmatpush1.msra.mxu0 0.0
  %1051 = vmatprep.subr.mxu0 0.0
  %1052 = vmatpush1.msra.mxu0 0.0
  %1053 = vmatprep.subr.mxu0 0.0
  %1054 = vmatpush1.msra.mxu0 0.0
  %1055 = vmatprep.subr.mxu0 0.0
  %1056 = vmatpush1.msra.mxu0 0.0
  %1057 = vmatprep.subr.mxu0 0.0
  %1058 = vmatpush1.msra.mxu0 0.0
  %1059 = vmatprep.subr.mxu0 0.0
  %1060 = vmatpush1.msra.mxu0 0.0
  %1061 = vmatprep.subr.mxu0 0.0
  %1062 = vmatpush1.msra.mxu0 0.0
  %1063 = vmatprep.subr.mxu0 0.0
  %1064 = vmatpush1.msra.mxu0 0.0
  %1065 = vmatprep.subr.mxu0 0.0
  %1066 = vmatpush1.msra.mxu0 0.0
  %1067 = vmatprep.subr.mxu0 0.0
  %1068 = vmatpush1.msra.mxu0 0.0
  %1069 = vmatprep.subr.mxu0 0.0
  %1070 = vmatpush1.msra.mxu0 0.0
  %1071 = vmatprep.subr.mxu0 0.0
  %1072 = vmatpush1.msra.mxu0 0.0
  %1073 = vmatprep.subr.mxu0 0.0
  %1074 = vmatpush1.msra.mxu0 0.0
  %1075 = vmatprep.subr.mxu0 0.0
  %1076 = vmatpush1.msra.mxu0 0.0
  %1077 = vmatprep.subr.mxu0 0.0
  %1078 = vmatpush1.msra.mxu0 0.0
  %1079 = vmatprep.mubr.f32.mxu0 0.0
  %1080 = vmatmul.mubr.f32.gmra.mrb[0].mxu0 %v860
  %v1081 = vpop.f32.mrb[0].mxu0
  %v1082 = vadd.f32 %v940, %v1081
  %v1083 = vpop.f32.mrb[0].mxu0
  %1084 = vdwg.mxu0
  %v1085 = vadd.f32 %v874, %v1011
  %v1086 = vxor.u32 %v1085, 2147483648
  %v1087 = vmul.f32 %v1086, 1.442695
  %v1088 = vpow.pop %v1087
  %v1089 = vadd.f32 %v1088, 1.0
  %v1090 = vrcp.pop %v1089
  %v1091 = vmul.f32 1.0, %v1090
  %v1092 = vadd.f32 %v875, %v1013
  %v1093 = vxor.u32 %v1092, 2147483648
  %v1094 = vmul.f32 %v1093, 1.442695
  %v1095 = vpow.pop %v1094
  %v1096 = vadd.f32 %v1095, 1.0
  %v1097 = vrcp.pop %v1096
  %v1098 = vmul.f32 1.0, %v1097
  %v1099 = vmul.f32 %v1091, %v1082
  %v1100 = vadd.f32 %v876, %v1099
  %v1101 = vtanh.pop %v1100
  %v1102 = vsub.f32 1.0, %v1098
  %v1103 = vmul.f32 %v1102, %v1101
  %v1104 = vmul.f32 %v1098, %v860
  %v1105 = vadd.f32 %v1103, %v1104
  %v1106 = vsub.f32 %v1105, %v860
  %v1107 = vmul.f32 %v878, %v1106
  %v1108 = vadd.f32 %v860, %v1107
  %v1109 = vmul.f32 %v878, %v1105
  %1110 = vst.msk [vmem:[#allocation4 + $0x10] sm:$0xff] %vm613, %v1109
  %1112 = vrot.lane.b32.xlu0 %v1109, 64
  %v1113 = vpop.permute.xlu0 %1112
  %1115 = vst.msk [vmem:[#allocation5 + $0x28] sm:$0xff] %vm613, %v1113
  %v1116 = vld [vmem:[#allocation2 + $0x48] sm:$0xff]
  %v1117 = vld [vmem:[#allocation2 + $0x50] sm:$0xff]
  %v1118 = vld [vmem:[#allocation2 + $0x58] sm:$0xff]
  %v1119 = vld [vmem:[#allocation2 + $0x60] sm:$0xff]
  %v1120 = vld [vmem:[#allocation2 + $0x68] sm:$0xff]
  %v1121 = vld [vmem:[#allocation2 + $0x70] sm:$0xff]
  %v1122 = vsel %vm56, %v1116, %v1119
  %v1123 = vsel %vm57, %v1117, %v1120
  %v1124 = vsel %vm58, %v1118, %v1121
  %s1125 = scalar_lea.vmem %s1, 24
  %v1126 = vld [vmem:[%s1125] sm:$0xff]
  %v1127 = vld [vmem:[%s5] sm:$0xff]
  %v1128 = vld [vmem:[%s5 + $0x8] sm:$0xff]
  %v1129 = vld [vmem:[%s5 + $0x10] sm:$0xff]
  %v1130 = vld [vmem:[%s5 + $0x18] sm:$0xff]
  %v1131 = vld [vmem:[%s5 + $0x20] sm:$0xff]
  %v1132 = vld [vmem:[%s5 + $0x28] sm:$0xff]
  %v1133 = vld [vmem:[%s5 + $0x30] sm:$0xff]
  %v1134 = vld [vmem:[%s5 + $0x38] sm:$0xff]
  %v1135 = vld [vmem:[%s5 + $0x40] sm:$0xff]
  %v1136 = vld [vmem:[%s5 + $0x48] sm:$0xff]
  %v1137 = vld [vmem:[%s5 + $0x50] sm:$0xff]
  %v1138 = vld [vmem:[%s5 + $0x58] sm:$0xff]
  %v1139 = vld [vmem:[%s5 + $0x60] sm:$0xff]
  %v1140 = vld [vmem:[%s5 + $0x68] sm:$0xff]
  %v1141 = vld [vmem:[%s5 + $0x70] sm:$0xff]
  %v1142 = vld [vmem:[%s5 + $0x78] sm:$0xff]
  %v1143 = vld [vmem:[%s5 + $0x80] sm:$0xff]
  %v1144 = vld [vmem:[%s5 + $0x88] sm:$0xff]
  %v1145 = vld [vmem:[%s5 + $0x90] sm:$0xff]
  %v1146 = vld [vmem:[%s5 + $0x98] sm:$0xff]
  %v1147 = vld [vmem:[%s5 + $0xa0] sm:$0xff]
  %v1148 = vld [vmem:[%s5 + $0xa8] sm:$0xff]
  %v1149 = vld [vmem:[%s5 + $0xb0] sm:$0xff]
  %v1150 = vld [vmem:[%s5 + $0xb8] sm:$0xff]
  %v1151 = vld [vmem:[%s5 + $0xc0] sm:$0xff]
  %v1152 = vld [vmem:[%s5 + $0xc8] sm:$0xff]
  %v1153 = vld [vmem:[%s5 + $0xd0] sm:$0xff]
  %v1154 = vld [vmem:[%s5 + $0xd8] sm:$0xff]
  %v1155 = vld [vmem:[%s5 + $0xe0] sm:$0xff]
  %v1156 = vld [vmem:[%s5 + $0xe8] sm:$0xff]
  %v1157 = vld [vmem:[%s5 + $0xf0] sm:$0xff]
  %v1158 = vld [vmem:[%s5 + $0xf8] sm:$0xff]
  %v1159 = vld [vmem:[%s5 + $0x100] sm:$0xff]
  %v1160 = vld [vmem:[%s5 + $0x108] sm:$0xff]
  %v1161 = vld [vmem:[%s5 + $0x110] sm:$0xff]
  %v1162 = vld [vmem:[%s5 + $0x118] sm:$0xff]
  %v1163 = vld [vmem:[%s5 + $0x120] sm:$0xff]
  %v1164 = vld [vmem:[%s5 + $0x128] sm:$0xff]
  %v1165 = vld [vmem:[%s5 + $0x130] sm:$0xff]
  %v1166 = vld [vmem:[%s5 + $0x138] sm:$0xff]
  %v1167 = vld [vmem:[%s5 + $0x140] sm:$0xff]
  %v1168 = vld [vmem:[%s5 + $0x148] sm:$0xff]
  %v1169 = vld [vmem:[%s5 + $0x150] sm:$0xff]
  %v1170 = vld [vmem:[%s5 + $0x158] sm:$0xff]
  %v1171 = vld [vmem:[%s5 + $0x160] sm:$0xff]
  %v1172 = vld [vmem:[%s5 + $0x168] sm:$0xff]
  %v1173 = vld [vmem:[%s5 + $0x170] sm:$0xff]
  %v1174 = vld [vmem:[%s5 + $0x178] sm:$0xff]
  %v1175 = vld [vmem:[%s6] sm:$0x7]
  %v1177 = vlaneseq
  %v1178 = vshrl.u32 %v1177, 7
  %v1179 = vsub.s32 0, %v1178
  %v1180 = vrot.slane %v1175, %v1179
  %v1181 = vlaneseq
  %v1182 = vshrl.u32 %v1181, 7
  %v1183 = vsub.s32 1, %v1182
  %v1184 = vrot.slane %v1175, %v1183
  %v1185 = vlaneseq
  %v1186 = vshrl.u32 %v1185, 7
  %v1187 = vsub.s32 2, %v1186
  %v1188 = vrot.slane %v1175, %v1187
  %1192 = vmatprep.subr.mxu0 %v1128
  %1193 = vmatpush1.msra.mxu0 %v1127
  %1194 = vmatprep.subr.mxu0 %v1131
  %1195 = vmatpush1.msra.mxu0 %v1130
  %1196 = vmatprep.subr.mxu0 %v1134
  %1197 = vmatpush1.msra.mxu0 %v1133
  %1198 = vmatprep.subr.mxu0 %v1137
  %1199 = vmatpush1.msra.mxu0 %v1136
  %1200 = vmatprep.subr.mxu0 %v1140
  %1201 = vmatpush1.msra.mxu0 %v1139
  %1202 = vmatprep.subr.mxu0 %v1143
  %1203 = vmatpush1.msra.mxu0 %v1142
  %1204 = vmatprep.subr.mxu0 %v1146
  %1205 = vmatpush1.msra.mxu0 %v1145
  %1206 = vmatprep.subr.mxu0 %v1149
  %1207 = vmatpush1.msra.mxu0 %v1148
  %1208 = vmatprep.subr.mxu0 %v1152
  %1209 = vmatpush1.msra.mxu0 %v1151
  %1210 = vmatprep.subr.mxu0 %v1155
  %1211 = vmatpush1.msra.mxu0 %v1154
  %1212 = vmatprep.subr.mxu0 %v1158
  %1213 = vmatpush1.msra.mxu0 %v1157
  %1214 = vmatprep.subr.mxu0 %v1161
  %1215 = vmatpush1.msra.mxu0 %v1160
  %1216 = vmatprep.subr.mxu0 %v1164
  %1217 = vmatpush1.msra.mxu0 %v1163
  %1218 = vmatprep.subr.mxu0 %v1167
  %1219 = vmatpush1.msra.mxu0 %v1166
  %1220 = vmatprep.subr.mxu0 %v1170
  %1221 = vmatpush1.msra.mxu0 %v1169
  %1222 = vmatprep.subr.mxu0 %v1173
  %1223 = vmatpush1.msra.mxu0 %v1172
  %1224 = vmatprep.subr.mxu0 0.0
  %1225 = vmatpush1.msra.mxu0 0.0
  %1226 = vmatprep.subr.mxu0 0.0
  %1227 = vmatpush1.msra.mxu0 0.0
  %1228 = vmatprep.subr.mxu0 0.0
  %1229 = vmatpush1.msra.mxu0 0.0
  %1230 = vmatprep.subr.mxu0 0.0
  %1231 = vmatpush1.msra.mxu0 0.0
  %1232 = vmatprep.subr.mxu0 0.0
  %1233 = vmatpush1.msra.mxu0 0.0
  %1234 = vmatprep.subr.mxu0 0.0
  %1235 = vmatpush1.msra.mxu0 0.0
  %1236 = vmatprep.subr.mxu0 0.0
  %1237 = vmatpush1.msra.mxu0 0.0
  %1238 = vmatprep.subr.mxu0 0.0
  %1239 = vmatpush1.msra.mxu0 0.0
  %1240 = vmatprep.subr.mxu0 0.0
  %1241 = vmatpush1.msra.mxu0 0.0
  %1242 = vmatprep.subr.mxu0 0.0
  %1243 = vmatpush1.msra.mxu0 0.0
  %1244 = vmatprep.subr.mxu0 0.0
  %1245 = vmatpush1.msra.mxu0 0.0
  %1246 = vmatprep.subr.mxu0 0.0
  %1247 = vmatpush1.msra.mxu0 0.0
  %1248 = vmatprep.subr.mxu0 0.0
  %1249 = vmatpush1.msra.mxu0 0.0
  %1250 = vmatprep.subr.mxu0 0.0
  %1251 = vmatpush1.msra.mxu0 0.0
  %1252 = vmatprep.subr.mxu0 0.0
  %1253 = vmatpush1.msra.mxu0 0.0
  %1254 = vmatprep.subr.mxu0 0.0
  %1255 = vmatpush1.msra.mxu0 0.0
  %1256 = vmatprep.mubr.f32.mxu0 0.0
  %1257 = vmatmul.mubr.f32.gmra.mrb[0].mxu0 %v1108
  %v1258 = vpop.f32.mrb[0].mxu0
  %v1259 = vadd.f32 %v1180, %v1258
  %v1260 = vpop.f32.mrb[0].mxu0
  %v1261 = vadd.f32 %v1184, %v1260
  %1262 = vdwg.mxu0
  %1263 = vmatprep.subr.mxu0 0.0
  %1264 = vmatpush1.msra.mxu0 %v1129
  %1265 = vmatprep.subr.mxu0 0.0
  %1266 = vmatpush1.msra.mxu0 %v1132
  %1267 = vmatprep.subr.mxu0 0.0
  %1268 = vmatpush1.msra.mxu0 %v1135
  %1269 = vmatprep.subr.mxu0 0.0
  %1270 = vmatpush1.msra.mxu0 %v1138
  %1271 = vmatprep.subr.mxu0 0.0
  %1272 = vmatpush1.msra.mxu0 %v1141
  %1273 = vmatprep.subr.mxu0 0.0
  %1274 = vmatpush1.msra.mxu0 %v1144
  %1275 = vmatprep.subr.mxu0 0.0
  %1276 = vmatpush1.msra.mxu0 %v1147
  %1277 = vmatprep.subr.mxu0 0.0
  %1278 = vmatpush1.msra.mxu0 %v1150
  %1279 = vmatprep.subr.mxu0 0.0
  %1280 = vmatpush1.msra.mxu0 %v1153
  %1281 = vmatprep.subr.mxu0 0.0
  %1282 = vmatpush1.msra.mxu0 %v1156
  %1283 = vmatprep.subr.mxu0 0.0
  %1284 = vmatpush1.msra.mxu0 %v1159
  %1285 = vmatprep.subr.mxu0 0.0
  %1286 = vmatpush1.msra.mxu0 %v1162
  %1287 = vmatprep.subr.mxu0 0.0
  %1288 = vmatpush1.msra.mxu0 %v1165
  %1289 = vmatprep.subr.mxu0 0.0
  %1290 = vmatpush1.msra.mxu0 %v1168
  %1291 = vmatprep.subr.mxu0 0.0
  %1292 = vmatpush1.msra.mxu0 %v1171
  %1293 = vmatprep.subr.mxu0 0.0
  %1294 = vmatpush1.msra.mxu0 %v1174
  %1295 = vmatprep.subr.mxu0 0.0
  %1296 = vmatpush1.msra.mxu0 0.0
  %1297 = vmatprep.subr.mxu0 0.0
  %1298 = vmatpush1.msra.mxu0 0.0
  %1299 = vmatprep.subr.mxu0 0.0
  %1300 = vmatpush1.msra.mxu0 0.0
  %1301 = vmatprep.subr.mxu0 0.0
  %1302 = vmatpush1.msra.mxu0 0.0
  %1303 = vmatprep.subr.mxu0 0.0
  %1304 = vmatpush1.msra.mxu0 0.0
  %1305 = vmatprep.subr.mxu0 0.0
  %1306 = vmatpush1.msra.mxu0 0.0
  %1307 = vmatprep.subr.mxu0 0.0
  %1308 = vmatpush1.msra.mxu0 0.0
  %1309 = vmatprep.subr.mxu0 0.0
  %1310 = vmatpush1.msra.mxu0 0.0
  %1311 = vmatprep.subr.mxu0 0.0
  %1312 = vmatpush1.msra.mxu0 0.0
  %1313 = vmatprep.subr.mxu0 0.0
  %1314 = vmatpush1.msra.mxu0 0.0
  %1315 = vmatprep.subr.mxu0 0.0
  %1316 = vmatpush1.msra.mxu0 0.0
  %1317 = vmatprep.subr.mxu0 0.0
  %1318 = vmatpush1.msra.mxu0 0.0
  %1319 = vmatprep.subr.mxu0 0.0
  %1320 = vmatpush1.msra.mxu0 0.0
  %1321 = vmatprep.subr.mxu0 0.0
  %1322 = vmatpush1.msra.mxu0 0.0
  %1323 = vmatprep.subr.mxu0 0.0
  %1324 = vmatpush1.msra.mxu0 0.0
  %1325 = vmatprep.subr.mxu0 0.0
  %1326 = vmatpush1.msra.mxu0 0.0
  %1327 = vmatprep.mubr.f32.mxu0 0.0
  %1328 = vmatmul.mubr.f32.gmra.mrb[0].mxu0 %v1108
  %v1329 = vpop.f32.mrb[0].mxu0
  %v1330 = vadd.f32 %v1188, %v1329
  %v1331 = vpop.f32.mrb[0].mxu0
  %1332 = vdwg.mxu0
  %v1333 = vadd.f32 %v1122, %v1259
  %v1334 = vxor.u32 %v1333, 2147483648
  %v1335 = vmul.f32 %v1334, 1.442695
  %v1336 = vpow.pop %v1335
  %v1337 = vadd.f32 %v1336, 1.0
  %v1338 = vrcp.pop %v1337
  %v1339 = vmul.f32 1.0, %v1338
  %v1340 = vadd.f32 %v1123, %v1261
  %v1341 = vxor.u32 %v1340, 2147483648
  %v1342 = vmul.f32 %v1341, 1.442695
  %v1343 = vpow.pop %v1342
  %v1344 = vadd.f32 %v1343, 1.0
  %v1345 = vrcp.pop %v1344
  %v1346 = vmul.f32 1.0, %v1345
  %v1347 = vmul.f32 %v1339, %v1330
  %v1348 = vadd.f32 %v1124, %v1347
  %v1349 = vtanh.pop %v1348
  %v1350 = vsub.f32 1.0, %v1346
  %v1351 = vmul.f32 %v1350, %v1349
  %v1352 = vmul.f32 %v1346, %v1108
  %v1353 = vadd.f32 %v1351, %v1352
  %v1354 = vsub.f32 %v1353, %v1108
  %v1355 = vmul.f32 %v1126, %v1354
  %v1356 = vadd.f32 %v1108, %v1355
  %v1357 = vmul.f32 %v1126, %v1353
  %1358 = vst.msk [vmem:[#allocation4 + $0x18] sm:$0xff] %vm613, %v1357
  %1360 = vrot.lane.b32.xlu0 %v1357, 64
  %v1361 = vpop.permute.xlu0 %1360
  %1363 = vst.msk [vmem:[#allocation5 + $0x20] sm:$0xff] %vm613, %v1361
  %v1364 = vld [vmem:[#allocation2 + $0x60] sm:$0xff]
  %v1365 = vld [vmem:[#allocation2 + $0x68] sm:$0xff]
  %v1366 = vld [vmem:[#allocation2 + $0x70] sm:$0xff]
  %v1367 = vld [vmem:[#allocation2 + $0x48] sm:$0xff]
  %v1368 = vld [vmem:[#allocation2 + $0x50] sm:$0xff]
  %v1369 = vld [vmem:[#allocation2 + $0x58] sm:$0xff]
  %v1370 = vsel %vm56, %v1364, %v1367
  %v1371 = vsel %vm57, %v1365, %v1368
  %v1372 = vsel %vm58, %v1366, %v1369
  %s1373 = scalar_lea.vmem %s1, 32
  %v1374 = vld [vmem:[%s1373] sm:$0xff]
  %v1375 = vld [vmem:[%s5] sm:$0xff]
  %v1376 = vld [vmem:[%s5 + $0x8] sm:$0xff]
  %v1377 = vld [vmem:[%s5 + $0x10] sm:$0xff]
  %v1378 = vld [vmem:[%s5 + $0x18] sm:$0xff]
  %v1379 = vld [vmem:[%s5 + $0x20] sm:$0xff]
  %v1380 = vld [vmem:[%s5 + $0x28] sm:$0xff]
  %v1381 = vld [vmem:[%s5 + $0x30] sm:$0xff]
  %v1382 = vld [vmem:[%s5 + $0x38] sm:$0xff]
  %v1383 = vld [vmem:[%s5 + $0x40] sm:$0xff]
  %v1384 = vld [vmem:[%s5 + $0x48] sm:$0xff]
  %v1385 = vld [vmem:[%s5 + $0x50] sm:$0xff]
  %v1386 = vld [vmem:[%s5 + $0x58] sm:$0xff]
  %v1387 = vld [vmem:[%s5 + $0x60] sm:$0xff]
  %v1388 = vld [vmem:[%s5 + $0x68] sm:$0xff]
  %v1389 = vld [vmem:[%s5 + $0x70] sm:$0xff]
  %v1390 = vld [vmem:[%s5 + $0x78] sm:$0xff]
  %v1391 = vld [vmem:[%s5 + $0x80] sm:$0xff]
  %v1392 = vld [vmem:[%s5 + $0x88] sm:$0xff]
  %v1393 = vld [vmem:[%s5 + $0x90] sm:$0xff]
  %v1394 = vld [vmem:[%s5 + $0x98] sm:$0xff]
  %v1395 = vld [vmem:[%s5 + $0xa0] sm:$0xff]
  %v1396 = vld [vmem:[%s5 + $0xa8] sm:$0xff]
  %v1397 = vld [vmem:[%s5 + $0xb0] sm:$0xff]
  %v1398 = vld [vmem:[%s5 + $0xb8] sm:$0xff]
  %v1399 = vld [vmem:[%s5 + $0xc0] sm:$0xff]
  %v1400 = vld [vmem:[%s5 + $0xc8] sm:$0xff]
  %v1401 = vld [vmem:[%s5 + $0xd0] sm:$0xff]
  %v1402 = vld [vmem:[%s5 + $0xd8] sm:$0xff]
  %v1403 = vld [vmem:[%s5 + $0xe0] sm:$0xff]
  %v1404 = vld [vmem:[%s5 + $0xe8] sm:$0xff]
  %v1405 = vld [vmem:[%s5 + $0xf0] sm:$0xff]
  %v1406 = vld [vmem:[%s5 + $0xf8] sm:$0xff]
  %v1407 = vld [vmem:[%s5 + $0x100] sm:$0xff]
  %v1408 = vld [vmem:[%s5 + $0x108] sm:$0xff]
  %v1409 = vld [vmem:[%s5 + $0x110] sm:$0xff]
  %v1410 = vld [vmem:[%s5 + $0x118] sm:$0xff]
  %v1411 = vld [vmem:[%s5 + $0x120] sm:$0xff]
  %v1412 = vld [vmem:[%s5 + $0x128] sm:$0xff]
  %v1413 = vld [vmem:[%s5 + $0x130] sm:$0xff]
  %v1414 = vld [vmem:[%s5 + $0x138] sm:$0xff]
  %v1415 = vld [vmem:[%s5 + $0x140] sm:$0xff]
  %v1416 = vld [vmem:[%s5 + $0x148] sm:$0xff]
  %v1417 = vld [vmem:[%s5 + $0x150] sm:$0xff]
  %v1418 = vld [vmem:[%s5 + $0x158] sm:$0xff]
  %v1419 = vld [vmem:[%s5 + $0x160] sm:$0xff]
  %v1420 = vld [vmem:[%s5 + $0x168] sm:$0xff]
  %v1421 = vld [vmem:[%s5 + $0x170] sm:$0xff]
  %v1422 = vld [vmem:[%s5 + $0x178] sm:$0xff]
  %v1423 = vld [vmem:[%s6] sm:$0x7]
  %v1425 = vlaneseq
  %v1426 = vshrl.u32 %v1425, 7
  %v1427 = vsub.s32 0, %v1426
  %v1428 = vrot.slane %v1423, %v1427
  %v1429 = vlaneseq
  %v1430 = vshrl.u32 %v1429, 7
  %v1431 = vsub.s32 1, %v1430
  %v1432 = vrot.slane %v1423, %v1431
  %v1433 = vlaneseq
  %v1434 = vshrl.u32 %v1433, 7
  %v1435 = vsub.s32 2, %v1434
  %v1436 = vrot.slane %v1423, %v1435
  %1440 = vmatprep.subr.mxu0 %v1376
  %1441 = vmatpush1.msra.mxu0 %v1375
  %1442 = vmatprep.subr.mxu0 %v1379
  %1443 = vmatpush1.msra.mxu0 %v1378
  %1444 = vmatprep.subr.mxu0 %v1382
  %1445 = vmatpush1.msra.mxu0 %v1381
  %1446 = vmatprep.subr.mxu0 %v1385
  %1447 = vmatpush1.msra.mxu0 %v1384
  %1448 = vmatprep.subr.mxu0 %v1388
  %1449 = vmatpush1.msra.mxu0 %v1387
  %1450 = vmatprep.subr.mxu0 %v1391
  %1451 = vmatpush1.msra.mxu0 %v1390
  %1452 = vmatprep.subr.mxu0 %v1394
  %1453 = vmatpush1.msra.mxu0 %v1393
  %1454 = vmatprep.subr.mxu0 %v1397
  %1455 = vmatpush1.msra.mxu0 %v1396
  %1456 = vmatprep.subr.mxu0 %v1400
  %1457 = vmatpush1.msra.mxu0 %v1399
  %1458 = vmatprep.subr.mxu0 %v1403
  %1459 = vmatpush1.msra.mxu0 %v1402
  %1460 = vmatprep.subr.mxu0 %v1406
  %1461 = vmatpush1.msra.mxu0 %v1405
  %1462 = vmatprep.subr.mxu0 %v1409
  %1463 = vmatpush1.msra.mxu0 %v1408
  %1464 = vmatprep.subr.mxu0 %v1412
  %1465 = vmatpush1.msra.mxu0 %v1411
  %1466 = vmatprep.subr.mxu0 %v1415
  %1467 = vmatpush1.msra.mxu0 %v1414
  %1468 = vmatprep.subr.mxu0 %v1418
  %1469 = vmatpush1.msra.mxu0 %v1417
  %1470 = vmatprep.subr.mxu0 %v1421
  %1471 = vmatpush1.msra.mxu0 %v1420
  %1472 = vmatprep.subr.mxu0 0.0
  %1473 = vmatpush1.msra.mxu0 0.0
  %1474 = vmatprep.subr.mxu0 0.0
  %1475 = vmatpush1.msra.mxu0 0.0
  %1476 = vmatprep.subr.mxu0 0.0
  %1477 = vmatpush1.msra.mxu0 0.0
  %1478 = vmatprep.subr.mxu0 0.0
  %1479 = vmatpush1.msra.mxu0 0.0
  %1480 = vmatprep.subr.mxu0 0.0
  %1481 = vmatpush1.msra.mxu0 0.0
  %1482 = vmatprep.subr.mxu0 0.0
  %1483 = vmatpush1.msra.mxu0 0.0
  %1484 = vmatprep.subr.mxu0 0.0
  %1485 = vmatpush1.msra.mxu0 0.0
  %1486 = vmatprep.subr.mxu0 0.0
  %1487 = vmatpush1.msra.mxu0 0.0
  %1488 = vmatprep.subr.mxu0 0.0
  %1489 = vmatpush1.msra.mxu0 0.0
  %1490 = vmatprep.subr.mxu0 0.0
  %1491 = vmatpush1.msra.mxu0 0.0
  %1492 = vmatprep.subr.mxu0 0.0
  %1493 = vmatpush1.msra.mxu0 0.0
  %1494 = vmatprep.subr.mxu0 0.0
  %1495 = vmatpush1.msra.mxu0 0.0
  %1496 = vmatprep.subr.mxu0 0.0
  %1497 = vmatpush1.msra.mxu0 0.0
  %1498 = vmatprep.subr.mxu0 0.0
  %1499 = vmatpush1.msra.mxu0 0.0
  %1500 = vmatprep.subr.mxu0 0.0
  %1501 = vmatpush1.msra.mxu0 0.0
  %1502 = vmatprep.subr.mxu0 0.0
  %1503 = vmatpush1.msra.mxu0 0.0
  %1504 = vmatprep.mubr.f32.mxu0 0.0
  %1505 = vmatmul.mubr.f32.gmra.mrb[0].mxu0 %v1356
  %v1506 = vpop.f32.mrb[0].mxu0
  %v1507 = vadd.f32 %v1428, %v1506
  %v1508 = vpop.f32.mrb[0].mxu0
  %v1509 = vadd.f32 %v1432, %v1508
  %1510 = vdwg.mxu0
  %1511 = vmatprep.subr.mxu0 0.0
  %1512 = vmatpush1.msra.mxu0 %v1377
  %1513 = vmatprep.subr.mxu0 0.0
  %1514 = vmatpush1.msra.mxu0 %v1380
  %1515 = vmatprep.subr.mxu0 0.0
  %1516 = vmatpush1.msra.mxu0 %v1383
  %1517 = vmatprep.subr.mxu0 0.0
  %1518 = vmatpush1.msra.mxu0 %v1386
  %1519 = vmatprep.subr.mxu0 0.0
  %1520 = vmatpush1.msra.mxu0 %v1389
  %1521 = vmatprep.subr.mxu0 0.0
  %1522 = vmatpush1.msra.mxu0 %v1392
  %1523 = vmatprep.subr.mxu0 0.0
  %1524 = vmatpush1.msra.mxu0 %v1395
  %1525 = vmatprep.subr.mxu0 0.0
  %1526 = vmatpush1.msra.mxu0 %v1398
  %1527 = vmatprep.subr.mxu0 0.0
  %1528 = vmatpush1.msra.mxu0 %v1401
  %1529 = vmatprep.subr.mxu0 0.0
  %1530 = vmatpush1.msra.mxu0 %v1404
  %1531 = vmatprep.subr.mxu0 0.0
  %1532 = vmatpush1.msra.mxu0 %v1407
  %1533 = vmatprep.subr.mxu0 0.0
  %1534 = vmatpush1.msra.mxu0 %v1410
  %1535 = vmatprep.subr.mxu0 0.0
  %1536 = vmatpush1.msra.mxu0 %v1413
  %1537 = vmatprep.subr.mxu0 0.0
  %1538 = vmatpush1.msra.mxu0 %v1416
  %1539 = vmatprep.subr.mxu0 0.0
  %1540 = vmatpush1.msra.mxu0 %v1419
  %1541 = vmatprep.subr.mxu0 0.0
  %1542 = vmatpush1.msra.mxu0 %v1422
  %1543 = vmatprep.subr.mxu0 0.0
  %1544 = vmatpush1.msra.mxu0 0.0
  %1545 = vmatprep.subr.mxu0 0.0
  %1546 = vmatpush1.msra.mxu0 0.0
  %1547 = vmatprep.subr.mxu0 0.0
  %1548 = vmatpush1.msra.mxu0 0.0
  %1549 = vmatprep.subr.mxu0 0.0
  %1550 = vmatpush1.msra.mxu0 0.0
  %1551 = vmatprep.subr.mxu0 0.0
  %1552 = vmatpush1.msra.mxu0 0.0
  %1553 = vmatprep.subr.mxu0 0.0
  %1554 = vmatpush1.msra.mxu0 0.0
  %1555 = vmatprep.subr.mxu0 0.0
  %1556 = vmatpush1.msra.mxu0 0.0
  %1557 = vmatprep.subr.mxu0 0.0
  %1558 = vmatpush1.msra.mxu0 0.0
  %1559 = vmatprep.subr.mxu0 0.0
  %1560 = vmatpush1.msra.mxu0 0.0
  %1561 = vmatprep.subr.mxu0 0.0
  %1562 = vmatpush1.msra.mxu0 0.0
  %1563 = vmatprep.subr.mxu0 0.0
  %1564 = vmatpush1.msra.mxu0 0.0
  %1565 = vmatprep.subr.mxu0 0.0
  %1566 = vmatpush1.msra.mxu0 0.0
  %1567 = vmatprep.subr.mxu0 0.0
  %1568 = vmatpush1.msra.mxu0 0.0
  %1569 = vmatprep.subr.mxu0 0.0
  %1570 = vmatpush1.msra.mxu0 0.0
  %1571 = vmatprep.subr.mxu0 0.0
  %1572 = vmatpush1.msra.mxu0 0.0
  %1573 = vmatprep.subr.mxu0 0.0
  %1574 = vmatpush1.msra.mxu0 0.0
  %1575 = vmatprep.mubr.f32.mxu0 0.0
  %1576 = vmatmul.mubr.f32.gmra.mrb[0].mxu0 %v1356
  %v1577 = vpop.f32.mrb[0].mxu0
  %v1578 = vadd.f32 %v1436, %v1577
  %v1579 = vpop.f32.mrb[0].mxu0
  %1580 = vdwg.mxu0
  %v1581 = vadd.f32 %v1370, %v1507
  %v1582 = vxor.u32 %v1581, 2147483648
  %v1583 = vmul.f32 %v1582, 1.442695
  %v1584 = vpow.pop %v1583
  %v1585 = vadd.f32 %v1584, 1.0
  %v1586 = vrcp.pop %v1585
  %v1587 = vmul.f32 1.0, %v1586
  %v1588 = vadd.f32 %v1371, %v1509
  %v1589 = vxor.u32 %v1588, 2147483648
  %v1590 = vmul.f32 %v1589, 1.442695
  %v1591 = vpow.pop %v1590
  %v1592 = vadd.f32 %v1591, 1.0
  %v1593 = vrcp.pop %v1592
  %v1594 = vmul.f32 1.0, %v1593
  %v1595 = vmul.f32 %v1587, %v1578
  %v1596 = vadd.f32 %v1372, %v1595
  %v1597 = vtanh.pop %v1596
  %v1598 = vsub.f32 1.0, %v1594
  %v1599 = vmul.f32 %v1598, %v1597
  %v1600 = vmul.f32 %v1594, %v1356
  %v1601 = vadd.f32 %v1599, %v1600
  %v1602 = vsub.f32 %v1601, %v1356
  %v1603 = vmul.f32 %v1374, %v1602
  %v1604 = vadd.f32 %v1356, %v1603
  %v1605 = vmul.f32 %v1374, %v1601
  %1606 = vst.msk [vmem:[#allocation4 + $0x20] sm:$0xff] %vm613, %v1605
  %1608 = vrot.lane.b32.xlu0 %v1605, 64
  %v1609 = vpop.permute.xlu0 %1608
  %1611 = vst.msk [vmem:[#allocation5 + $0x18] sm:$0xff] %vm613, %v1609
  %v1612 = vld [vmem:[#allocation2 + $0x78] sm:$0xff]
  %v1613 = vld [vmem:[#allocation2 + $0x80] sm:$0xff]
  %v1614 = vld [vmem:[#allocation2 + $0x88] sm:$0xff]
  %v1615 = vld [vmem:[#allocation2 + $0x30] sm:$0xff]
  %v1616 = vld [vmem:[#allocation2 + $0x38] sm:$0xff]
  %v1617 = vld [vmem:[#allocation2 + $0x40] sm:$0xff]
  %v1618 = vsel %vm56, %v1612, %v1615
  %v1619 = vsel %vm57, %v1613, %v1616
  %v1620 = vsel %vm58, %v1614, %v1617
  %s1621 = scalar_lea.vmem %s1, 40
  %v1622 = vld [vmem:[%s1621] sm:$0xff]
  %v1623 = vld [vmem:[%s5] sm:$0xff]
  %v1624 = vld [vmem:[%s5 + $0x8] sm:$0xff]
  %v1625 = vld [vmem:[%s5 + $0x10] sm:$0xff]
  %v1626 = vld [vmem:[%s5 + $0x18] sm:$0xff]
  %v1627 = vld [vmem:[%s5 + $0x20] sm:$0xff]
  %v1628 = vld [vmem:[%s5 + $0x28] sm:$0xff]
  %v1629 = vld [vmem:[%s5 + $0x30] sm:$0xff]
  %v1630 = vld [vmem:[%s5 + $0x38] sm:$0xff]
  %v1631 = vld [vmem:[%s5 + $0x40] sm:$0xff]
  %v1632 = vld [vmem:[%s5 + $0x48] sm:$0xff]
  %v1633 = vld [vmem:[%s5 + $0x50] sm:$0xff]
  %v1634 = vld [vmem:[%s5 + $0x58] sm:$0xff]
  %v1635 = vld [vmem:[%s5 + $0x60] sm:$0xff]
  %v1636 = vld [vmem:[%s5 + $0x68] sm:$0xff]
  %v1637 = vld [vmem:[%s5 + $0x70] sm:$0xff]
  %v1638 = vld [vmem:[%s5 + $0x78] sm:$0xff]
  %v1639 = vld [vmem:[%s5 + $0x80] sm:$0xff]
  %v1640 = vld [vmem:[%s5 + $0x88] sm:$0xff]
  %v1641 = vld [vmem:[%s5 + $0x90] sm:$0xff]
  %v1642 = vld [vmem:[%s5 + $0x98] sm:$0xff]
  %v1643 = vld [vmem:[%s5 + $0xa0] sm:$0xff]
  %v1644 = vld [vmem:[%s5 + $0xa8] sm:$0xff]
  %v1645 = vld [vmem:[%s5 + $0xb0] sm:$0xff]
  %v1646 = vld [vmem:[%s5 + $0xb8] sm:$0xff]
  %v1647 = vld [vmem:[%s5 + $0xc0] sm:$0xff]
  %v1648 = vld [vmem:[%s5 + $0xc8] sm:$0xff]
  %v1649 = vld [vmem:[%s5 + $0xd0] sm:$0xff]
  %v1650 = vld [vmem:[%s5 + $0xd8] sm:$0xff]
  %v1651 = vld [vmem:[%s5 + $0xe0] sm:$0xff]
  %v1652 = vld [vmem:[%s5 + $0xe8] sm:$0xff]
  %v1653 = vld [vmem:[%s5 + $0xf0] sm:$0xff]
  %v1654 = vld [vmem:[%s5 + $0xf8] sm:$0xff]
  %v1655 = vld [vmem:[%s5 + $0x100] sm:$0xff]
  %v1656 = vld [vmem:[%s5 + $0x108] sm:$0xff]
  %v1657 = vld [vmem:[%s5 + $0x110] sm:$0xff]
  %v1658 = vld [vmem:[%s5 + $0x118] sm:$0xff]
  %v1659 = vld [vmem:[%s5 + $0x120] sm:$0xff]
  %v1660 = vld [vmem:[%s5 + $0x128] sm:$0xff]
  %v1661 = vld [vmem:[%s5 + $0x130] sm:$0xff]
  %v1662 = vld [vmem:[%s5 + $0x138] sm:$0xff]
  %v1663 = vld [vmem:[%s5 + $0x140] sm:$0xff]
  %v1664 = vld [vmem:[%s5 + $0x148] sm:$0xff]
  %v1665 = vld [vmem:[%s5 + $0x150] sm:$0xff]
  %v1666 = vld [vmem:[%s5 + $0x158] sm:$0xff]
  %v1667 = vld [vmem:[%s5 + $0x160] sm:$0xff]
  %v1668 = vld [vmem:[%s5 + $0x168] sm:$0xff]
  %v1669 = vld [vmem:[%s5 + $0x170] sm:$0xff]
  %v1670 = vld [vmem:[%s5 + $0x178] sm:$0xff]
  %v1671 = vld [vmem:[%s6] sm:$0x7]
  %v1673 = vlaneseq
  %v1674 = vshrl.u32 %v1673, 7
  %v1675 = vsub.s32 0, %v1674
  %v1676 = vrot.slane %v1671, %v1675
  %v1677 = vlaneseq
  %v1678 = vshrl.u32 %v1677, 7
  %v1679 = vsub.s32 1, %v1678
  %v1680 = vrot.slane %v1671, %v1679
  %v1681 = vlaneseq
  %v1682 = vshrl.u32 %v1681, 7
  %v1683 = vsub.s32 2, %v1682
  %v1684 = vrot.slane %v1671, %v1683
  %1688 = vmatprep.subr.mxu0 %v1624
  %1689 = vmatpush1.msra.mxu0 %v1623
  %1690 = vmatprep.subr.mxu0 %v1627
  %1691 = vmatpush1.msra.mxu0 %v1626
  %1692 = vmatprep.subr.mxu0 %v1630
  %1693 = vmatpush1.msra.mxu0 %v1629
  %1694 = vmatprep.subr.mxu0 %v1633
  %1695 = vmatpush1.msra.mxu0 %v1632
  %1696 = vmatprep.subr.mxu0 %v1636
  %1697 = vmatpush1.msra.mxu0 %v1635
  %1698 = vmatprep.subr.mxu0 %v1639
  %1699 = vmatpush1.msra.mxu0 %v1638
  %1700 = vmatprep.subr.mxu0 %v1642
  %1701 = vmatpush1.msra.mxu0 %v1641
  %1702 = vmatprep.subr.mxu0 %v1645
  %1703 = vmatpush1.msra.mxu0 %v1644
  %1704 = vmatprep.subr.mxu0 %v1648
  %1705 = vmatpush1.msra.mxu0 %v1647
  %1706 = vmatprep.subr.mxu0 %v1651
  %1707 = vmatpush1.msra.mxu0 %v1650
  %1708 = vmatprep.subr.mxu0 %v1654
  %1709 = vmatpush1.msra.mxu0 %v1653
  %1710 = vmatprep.subr.mxu0 %v1657
  %1711 = vmatpush1.msra.mxu0 %v1656
  %1712 = vmatprep.subr.mxu0 %v1660
  %1713 = vmatpush1.msra.mxu0 %v1659
  %1714 = vmatprep.subr.mxu0 %v1663
  %1715 = vmatpush1.msra.mxu0 %v1662
  %1716 = vmatprep.subr.mxu0 %v1666
  %1717 = vmatpush1.msra.mxu0 %v1665
  %1718 = vmatprep.subr.mxu0 %v1669
  %1719 = vmatpush1.msra.mxu0 %v1668
  %1720 = vmatprep.subr.mxu0 0.0
  %1721 = vmatpush1.msra.mxu0 0.0
  %1722 = vmatprep.subr.mxu0 0.0
  %1723 = vmatpush1.msra.mxu0 0.0
  %1724 = vmatprep.subr.mxu0 0.0
  %1725 = vmatpush1.msra.mxu0 0.0
  %1726 = vmatprep.subr.mxu0 0.0
  %1727 = vmatpush1.msra.mxu0 0.0
  %1728 = vmatprep.subr.mxu0 0.0
  %1729 = vmatpush1.msra.mxu0 0.0
  %1730 = vmatprep.subr.mxu0 0.0
  %1731 = vmatpush1.msra.mxu0 0.0
  %1732 = vmatprep.subr.mxu0 0.0
  %1733 = vmatpush1.msra.mxu0 0.0
  %1734 = vmatprep.subr.mxu0 0.0
  %1735 = vmatpush1.msra.mxu0 0.0
  %1736 = vmatprep.subr.mxu0 0.0
  %1737 = vmatpush1.msra.mxu0 0.0
  %1738 = vmatprep.subr.mxu0 0.0
  %1739 = vmatpush1.msra.mxu0 0.0
  %1740 = vmatprep.subr.mxu0 0.0
  %1741 = vmatpush1.msra.mxu0 0.0
  %1742 = vmatprep.subr.mxu0 0.0
  %1743 = vmatpush1.msra.mxu0 0.0
  %1744 = vmatprep.subr.mxu0 0.0
  %1745 = vmatpush1.msra.mxu0 0.0
  %1746 = vmatprep.subr.mxu0 0.0
  %1747 = vmatpush1.msra.mxu0 0.0
  %1748 = vmatprep.subr.mxu0 0.0
  %1749 = vmatpush1.msra.mxu0 0.0
  %1750 = vmatprep.subr.mxu0 0.0
  %1751 = vmatpush1.msra.mxu0 0.0
  %1752 = vmatprep.mubr.f32.mxu0 0.0
  %1753 = vmatmul.mubr.f32.gmra.mrb[0].mxu0 %v1604
  %v1754 = vpop.f32.mrb[0].mxu0
  %v1755 = vadd.f32 %v1676, %v1754
  %v1756 = vpop.f32.mrb[0].mxu0
  %v1757 = vadd.f32 %v1680, %v1756
  %1758 = vdwg.mxu0
  %1759 = vmatprep.subr.mxu0 0.0
  %1760 = vmatpush1.msra.mxu0 %v1625
  %1761 = vmatprep.subr.mxu0 0.0
  %1762 = vmatpush1.msra.mxu0 %v1628
  %1763 = vmatprep.subr.mxu0 0.0
  %1764 = vmatpush1.msra.mxu0 %v1631
  %1765 = vmatprep.subr.mxu0 0.0
  %1766 = vmatpush1.msra.mxu0 %v1634
  %1767 = vmatprep.subr.mxu0 0.0
  %1768 = vmatpush1.msra.mxu0 %v1637
  %1769 = vmatprep.subr.mxu0 0.0
  %1770 = vmatpush1.msra.mxu0 %v1640
  %1771 = vmatprep.subr.mxu0 0.0
  %1772 = vmatpush1.msra.mxu0 %v1643
  %1773 = vmatprep.subr.mxu0 0.0
  %1774 = vmatpush1.msra.mxu0 %v1646
  %1775 = vmatprep.subr.mxu0 0.0
  %1776 = vmatpush1.msra.mxu0 %v1649
  %1777 = vmatprep.subr.mxu0 0.0
  %1778 = vmatpush1.msra.mxu0 %v1652
  %1779 = vmatprep.subr.mxu0 0.0
  %1780 = vmatpush1.msra.mxu0 %v1655
  %1781 = vmatprep.subr.mxu0 0.0
  %1782 = vmatpush1.msra.mxu0 %v1658
  %1783 = vmatprep.subr.mxu0 0.0
  %1784 = vmatpush1.msra.mxu0 %v1661
  %1785 = vmatprep.subr.mxu0 0.0
  %1786 = vmatpush1.msra.mxu0 %v1664
  %1787 = vmatprep.subr.mxu0 0.0
  %1788 = vmatpush1.msra.mxu0 %v1667
  %1789 = vmatprep.subr.mxu0 0.0
  %1790 = vmatpush1.msra.mxu0 %v1670
  %1791 = vmatprep.subr.mxu0 0.0
  %1792 = vmatpush1.msra.mxu0 0.0
  %1793 = vmatprep.subr.mxu0 0.0
  %1794 = vmatpush1.msra.mxu0 0.0
  %1795 = vmatprep.subr.mxu0 0.0
  %1796 = vmatpush1.msra.mxu0 0.0
  %1797 = vmatprep.subr.mxu0 0.0
  %1798 = vmatpush1.msra.mxu0 0.0
  %1799 = vmatprep.subr.mxu0 0.0
  %1800 = vmatpush1.msra.mxu0 0.0
  %1801 = vmatprep.subr.mxu0 0.0
  %1802 = vmatpush1.msra.mxu0 0.0
  %1803 = vmatprep.subr.mxu0 0.0
  %1804 = vmatpush1.msra.mxu0 0.0
  %1805 = vmatprep.subr.mxu0 0.0
  %1806 = vmatpush1.msra.mxu0 0.0
  %1807 = vmatprep.subr.mxu0 0.0
  %1808 = vmatpush1.msra.mxu0 0.0
  %1809 = vmatprep.subr.mxu0 0.0
  %1810 = vmatpush1.msra.mxu0 0.0
  %1811 = vmatprep.subr.mxu0 0.0
  %1812 = vmatpush1.msra.mxu0 0.0
  %1813 = vmatprep.subr.mxu0 0.0
  %1814 = vmatpush1.msra.mxu0 0.0
  %1815 = vmatprep.subr.mxu0 0.0
  %1816 = vmatpush1.msra.mxu0 0.0
  %1817 = vmatprep.subr.mxu0 0.0
  %1818 = vmatpush1.msra.mxu0 0.0
  %1819 = vmatprep.subr.mxu0 0.0
  %1820 = vmatpush1.msra.mxu0 0.0
  %1821 = vmatprep.subr.mxu0 0.0
  %1822 = vmatpush1.msra.mxu0 0.0
  %1823 = vmatprep.mubr.f32.mxu0 0.0
  %1824 = vmatmul.mubr.f32.gmra.mrb[0].mxu0 %v1604
  %v1825 = vpop.f32.mrb[0].mxu0
  %v1826 = vadd.f32 %v1684, %v1825
  %v1827 = vpop.f32.mrb[0].mxu0
  %1828 = vdwg.mxu0
  %v1829 = vadd.f32 %v1618, %v1755
  %v1830 = vxor.u32 %v1829, 2147483648
  %v1831 = vmul.f32 %v1830, 1.442695
  %v1832 = vpow.pop %v1831
  %v1833 = vadd.f32 %v1832, 1.0
  %v1834 = vrcp.pop %v1833
  %v1835 = vmul.f32 1.0, %v1834
  %v1836 = vadd.f32 %v1619, %v1757
  %v1837 = vxor.u32 %v1836, 2147483648
  %v1838 = vmul.f32 %v1837, 1.442695
  %v1839 = vpow.pop %v1838
  %v1840 = vadd.f32 %v1839, 1.0
  %v1841 = vrcp.pop %v1840
  %v1842 = vmul.f32 1.0, %v1841
  %v1843 = vmul.f32 %v1835, %v1826
  %v1844 = vadd.f32 %v1620, %v1843
  %v1845 = vtanh.pop %v1844
  %v1846 = vsub.f32 1.0, %v1842
  %v1847 = vmul.f32 %v1846, %v1845
  %v1848 = vmul.f32 %v1842, %v1604
  %v1849 = vadd.f32 %v1847, %v1848
  %v1850 = vsub.f32 %v1849, %v1604
  %v1851 = vmul.f32 %v1622, %v1850
  %v1852 = vadd.f32 %v1604, %v1851
  %v1853 = vmul.f32 %v1622, %v1849
  %1854 = vst.msk [vmem:[#allocation4 + $0x28] sm:$0xff] %vm613, %v1853
  %1856 = vrot.lane.b32.xlu0 %v1853, 64
  %v1857 = vpop.permute.xlu0 %1856
  %1859 = vst.msk [vmem:[#allocation5 + $0x10] sm:$0xff] %vm613, %v1857
  %v1860 = vld [vmem:[#allocation2 + $0x90] sm:$0xff]
  %v1861 = vld [vmem:[#allocation2 + $0x98] sm:$0xff]
  %v1862 = vld [vmem:[#allocation2 + $0xa0] sm:$0xff]
  %v1863 = vld [vmem:[#allocation2 + $0x18] sm:$0xff]
  %v1864 = vld [vmem:[#allocation2 + $0x20] sm:$0xff]
  %v1865 = vld [vmem:[#allocation2 + $0x28] sm:$0xff]
  %v1866 = vsel %vm56, %v1860, %v1863
  %v1867 = vsel %vm57, %v1861, %v1864
  %v1868 = vsel %vm58, %v1862, %v1865
  %s1869 = scalar_lea.vmem %s1, 48
  %v1870 = vld [vmem:[%s1869] sm:$0xff]
  %v1871 = vld [vmem:[%s5] sm:$0xff]
  %v1872 = vld [vmem:[%s5 + $0x8] sm:$0xff]
  %v1873 = vld [vmem:[%s5 + $0x10] sm:$0xff]
  %v1874 = vld [vmem:[%s5 + $0x18] sm:$0xff]
  %v1875 = vld [vmem:[%s5 + $0x20] sm:$0xff]
  %v1876 = vld [vmem:[%s5 + $0x28] sm:$0xff]
  %v1877 = vld [vmem:[%s5 + $0x30] sm:$0xff]
  %v1878 = vld [vmem:[%s5 + $0x38] sm:$0xff]
  %v1879 = vld [vmem:[%s5 + $0x40] sm:$0xff]
  %v1880 = vld [vmem:[%s5 + $0x48] sm:$0xff]
  %v1881 = vld [vmem:[%s5 + $0x50] sm:$0xff]
  %v1882 = vld [vmem:[%s5 + $0x58] sm:$0xff]
  %v1883 = vld [vmem:[%s5 + $0x60] sm:$0xff]
  %v1884 = vld [vmem:[%s5 + $0x68] sm:$0xff]
  %v1885 = vld [vmem:[%s5 + $0x70] sm:$0xff]
  %v1886 = vld [vmem:[%s5 + $0x78] sm:$0xff]
  %v1887 = vld [vmem:[%s5 + $0x80] sm:$0xff]
  %v1888 = vld [vmem:[%s5 + $0x88] sm:$0xff]
  %v1889 = vld [vmem:[%s5 + $0x90] sm:$0xff]
  %v1890 = vld [vmem:[%s5 + $0x98] sm:$0xff]
  %v1891 = vld [vmem:[%s5 + $0xa0] sm:$0xff]
  %v1892 = vld [vmem:[%s5 + $0xa8] sm:$0xff]
  %v1893 = vld [vmem:[%s5 + $0xb0] sm:$0xff]
  %v1894 = vld [vmem:[%s5 + $0xb8] sm:$0xff]
  %v1895 = vld [vmem:[%s5 + $0xc0] sm:$0xff]
  %v1896 = vld [vmem:[%s5 + $0xc8] sm:$0xff]
  %v1897 = vld [vmem:[%s5 + $0xd0] sm:$0xff]
  %v1898 = vld [vmem:[%s5 + $0xd8] sm:$0xff]
  %v1899 = vld [vmem:[%s5 + $0xe0] sm:$0xff]
  %v1900 = vld [vmem:[%s5 + $0xe8] sm:$0xff]
  %v1901 = vld [vmem:[%s5 + $0xf0] sm:$0xff]
  %v1902 = vld [vmem:[%s5 + $0xf8] sm:$0xff]
  %v1903 = vld [vmem:[%s5 + $0x100] sm:$0xff]
  %v1904 = vld [vmem:[%s5 + $0x108] sm:$0xff]
  %v1905 = vld [vmem:[%s5 + $0x110] sm:$0xff]
  %v1906 = vld [vmem:[%s5 + $0x118] sm:$0xff]
  %v1907 = vld [vmem:[%s5 + $0x120] sm:$0xff]
  %v1908 = vld [vmem:[%s5 + $0x128] sm:$0xff]
  %v1909 = vld [vmem:[%s5 + $0x130] sm:$0xff]
  %v1910 = vld [vmem:[%s5 + $0x138] sm:$0xff]
  %v1911 = vld [vmem:[%s5 + $0x140] sm:$0xff]
  %v1912 = vld [vmem:[%s5 + $0x148] sm:$0xff]
  %v1913 = vld [vmem:[%s5 + $0x150] sm:$0xff]
  %v1914 = vld [vmem:[%s5 + $0x158] sm:$0xff]
  %v1915 = vld [vmem:[%s5 + $0x160] sm:$0xff]
  %v1916 = vld [vmem:[%s5 + $0x168] sm:$0xff]
  %v1917 = vld [vmem:[%s5 + $0x170] sm:$0xff]
  %v1918 = vld [vmem:[%s5 + $0x178] sm:$0xff]
  %v1919 = vld [vmem:[%s6] sm:$0x7]
  %v1921 = vlaneseq
  %v1922 = vshrl.u32 %v1921, 7
  %v1923 = vsub.s32 0, %v1922
  %v1924 = vrot.slane %v1919, %v1923
  %v1925 = vlaneseq
  %v1926 = vshrl.u32 %v1925, 7
  %v1927 = vsub.s32 1, %v1926
  %v1928 = vrot.slane %v1919, %v1927
  %v1929 = vlaneseq
  %v1930 = vshrl.u32 %v1929, 7
  %v1931 = vsub.s32 2, %v1930
  %v1932 = vrot.slane %v1919, %v1931
  %1936 = vmatprep.subr.mxu0 %v1872
  %1937 = vmatpush1.msra.mxu0 %v1871
  %1938 = vmatprep.subr.mxu0 %v1875
  %1939 = vmatpush1.msra.mxu0 %v1874
  %1940 = vmatprep.subr.mxu0 %v1878
  %1941 = vmatpush1.msra.mxu0 %v1877
  %1942 = vmatprep.subr.mxu0 %v1881
  %1943 = vmatpush1.msra.mxu0 %v1880
  %1944 = vmatprep.subr.mxu0 %v1884
  %1945 = vmatpush1.msra.mxu0 %v1883
  %1946 = vmatprep.subr.mxu0 %v1887
  %1947 = vmatpush1.msra.mxu0 %v1886
  %1948 = vmatprep.subr.mxu0 %v1890
  %1949 = vmatpush1.msra.mxu0 %v1889
  %1950 = vmatprep.subr.mxu0 %v1893
  %1951 = vmatpush1.msra.mxu0 %v1892
  %1952 = vmatprep.subr.mxu0 %v1896
  %1953 = vmatpush1.msra.mxu0 %v1895
  %1954 = vmatprep.subr.mxu0 %v1899
  %1955 = vmatpush1.msra.mxu0 %v1898
  %1956 = vmatprep.subr.mxu0 %v1902
  %1957 = vmatpush1.msra.mxu0 %v1901
  %1958 = vmatprep.subr.mxu0 %v1905
  %1959 = vmatpush1.msra.mxu0 %v1904
  %1960 = vmatprep.subr.mxu0 %v1908
  %1961 = vmatpush1.msra.mxu0 %v1907
  %1962 = vmatprep.subr.mxu0 %v1911
  %1963 = vmatpush1.msra.mxu0 %v1910
  %1964 = vmatprep.subr.mxu0 %v1914
  %1965 = vmatpush1.msra.mxu0 %v1913
  %1966 = vmatprep.subr.mxu0 %v1917
  %1967 = vmatpush1.msra.mxu0 %v1916
  %1968 = vmatprep.subr.mxu0 0.0
  %1969 = vmatpush1.msra.mxu0 0.0
  %1970 = vmatprep.subr.mxu0 0.0
  %1971 = vmatpush1.msra.mxu0 0.0
  %1972 = vmatprep.subr.mxu0 0.0
  %1973 = vmatpush1.msra.mxu0 0.0
  %1974 = vmatprep.subr.mxu0 0.0
  %1975 = vmatpush1.msra.mxu0 0.0
  %1976 = vmatprep.subr.mxu0 0.0
  %1977 = vmatpush1.msra.mxu0 0.0
  %1978 = vmatprep.subr.mxu0 0.0
  %1979 = vmatpush1.msra.mxu0 0.0
  %1980 = vmatprep.subr.mxu0 0.0
  %1981 = vmatpush1.msra.mxu0 0.0
  %1982 = vmatprep.subr.mxu0 0.0
  %1983 = vmatpush1.msra.mxu0 0.0
  %1984 = vmatprep.subr.mxu0 0.0
  %1985 = vmatpush1.msra.mxu0 0.0
  %1986 = vmatprep.subr.mxu0 0.0
  %1987 = vmatpush1.msra.mxu0 0.0
  %1988 = vmatprep.subr.mxu0 0.0
  %1989 = vmatpush1.msra.mxu0 0.0
  %1990 = vmatprep.subr.mxu0 0.0
  %1991 = vmatpush1.msra.mxu0 0.0
  %1992 = vmatprep.subr.mxu0 0.0
  %1993 = vmatpush1.msra.mxu0 0.0
  %1994 = vmatprep.subr.mxu0 0.0
  %1995 = vmatpush1.msra.mxu0 0.0
  %1996 = vmatprep.subr.mxu0 0.0
  %1997 = vmatpush1.msra.mxu0 0.0
  %1998 = vmatprep.subr.mxu0 0.0
  %1999 = vmatpush1.msra.mxu0 0.0
  %2000 = vmatprep.mubr.f32.mxu0 0.0
  %2001 = vmatmul.mubr.f32.gmra.mrb[0].mxu0 %v1852
  %v2002 = vpop.f32.mrb[0].mxu0
  %v2003 = vadd.f32 %v1924, %v2002
  %v2004 = vpop.f32.mrb[0].mxu0
  %v2005 = vadd.f32 %v1928, %v2004
  %2006 = vdwg.mxu0
  %2007 = vmatprep.subr.mxu0 0.0
  %2008 = vmatpush1.msra.mxu0 %v1873
  %2009 = vmatprep.subr.mxu0 0.0
  %2010 = vmatpush1.msra.mxu0 %v1876
  %2011 = vmatprep.subr.mxu0 0.0
  %2012 = vmatpush1.msra.mxu0 %v1879
  %2013 = vmatprep.subr.mxu0 0.0
  %2014 = vmatpush1.msra.mxu0 %v1882
  %2015 = vmatprep.subr.mxu0 0.0
  %2016 = vmatpush1.msra.mxu0 %v1885
  %2017 = vmatprep.subr.mxu0 0.0
  %2018 = vmatpush1.msra.mxu0 %v1888
  %2019 = vmatprep.subr.mxu0 0.0
  %2020 = vmatpush1.msra.mxu0 %v1891
  %2021 = vmatprep.subr.mxu0 0.0
  %2022 = vmatpush1.msra.mxu0 %v1894
  %2023 = vmatprep.subr.mxu0 0.0
  %2024 = vmatpush1.msra.mxu0 %v1897
  %2025 = vmatprep.subr.mxu0 0.0
  %2026 = vmatpush1.msra.mxu0 %v1900
  %2027 = vmatprep.subr.mxu0 0.0
  %2028 = vmatpush1.msra.mxu0 %v1903
  %2029 = vmatprep.subr.mxu0 0.0
  %2030 = vmatpush1.msra.mxu0 %v1906
  %2031 = vmatprep.subr.mxu0 0.0
  %2032 = vmatpush1.msra.mxu0 %v1909
  %2033 = vmatprep.subr.mxu0 0.0
  %2034 = vmatpush1.msra.mxu0 %v1912
  %2035 = vmatprep.subr.mxu0 0.0
  %2036 = vmatpush1.msra.mxu0 %v1915
  %2037 = vmatprep.subr.mxu0 0.0
  %2038 = vmatpush1.msra.mxu0 %v1918
  %2039 = vmatprep.subr.mxu0 0.0
  %2040 = vmatpush1.msra.mxu0 0.0
  %2041 = vmatprep.subr.mxu0 0.0
  %2042 = vmatpush1.msra.mxu0 0.0
  %2043 = vmatprep.subr.mxu0 0.0
  %2044 = vmatpush1.msra.mxu0 0.0
  %2045 = vmatprep.subr.mxu0 0.0
  %2046 = vmatpush1.msra.mxu0 0.0
  %2047 = vmatprep.subr.mxu0 0.0
  %2048 = vmatpush1.msra.mxu0 0.0
  %2049 = vmatprep.subr.mxu0 0.0
  %2050 = vmatpush1.msra.mxu0 0.0
  %2051 = vmatprep.subr.mxu0 0.0
  %2052 = vmatpush1.msra.mxu0 0.0
  %2053 = vmatprep.subr.mxu0 0.0
  %2054 = vmatpush1.msra.mxu0 0.0
  %2055 = vmatprep.subr.mxu0 0.0
  %2056 = vmatpush1.msra.mxu0 0.0
  %2057 = vmatprep.subr.mxu0 0.0
  %2058 = vmatpush1.msra.mxu0 0.0
  %2059 = vmatprep.subr.mxu0 0.0
  %2060 = vmatpush1.msra.mxu0 0.0
  %2061 = vmatprep.subr.mxu0 0.0
  %2062 = vmatpush1.msra.mxu0 0.0
  %2063 = vmatprep.subr.mxu0 0.0
  %2064 = vmatpush1.msra.mxu0 0.0
  %2065 = vmatprep.subr.mxu0 0.0
  %2066 = vmatpush1.msra.mxu0 0.0
  %2067 = vmatprep.subr.mxu0 0.0
  %2068 = vmatpush1.msra.mxu0 0.0
  %2069 = vmatprep.subr.mxu0 0.0
  %2070 = vmatpush1.msra.mxu0 0.0
  %2071 = vmatprep.mubr.f32.mxu0 0.0
  %2072 = vmatmul.mubr.f32.gmra.mrb[0].mxu0 %v1852
  %v2073 = vpop.f32.mrb[0].mxu0
  %v2074 = vadd.f32 %v1932, %v2073
  %v2075 = vpop.f32.mrb[0].mxu0
  %2076 = vdwg.mxu0
  %v2077 = vadd.f32 %v1866, %v2003
  %v2078 = vxor.u32 %v2077, 2147483648
  %v2079 = vmul.f32 %v2078, 1.442695
  %v2080 = vpow.pop %v2079
  %v2081 = vadd.f32 %v2080, 1.0
  %v2082 = vrcp.pop %v2081
  %v2083 = vmul.f32 1.0, %v2082
  %v2084 = vadd.f32 %v1867, %v2005
  %v2085 = vxor.u32 %v2084, 2147483648
  %v2086 = vmul.f32 %v2085, 1.442695
  %v2087 = vpow.pop %v2086
  %v2088 = vadd.f32 %v2087, 1.0
  %v2089 = vrcp.pop %v2088
  %v2090 = vmul.f32 1.0, %v2089
  %v2091 = vmul.f32 %v2083, %v2074
  %v2092 = vadd.f32 %v1868, %v2091
  %v2093 = vtanh.pop %v2092
  %v2094 = vsub.f32 1.0, %v2090
  %v2095 = vmul.f32 %v2094, %v2093
  %v2096 = vmul.f32 %v2090, %v1852
  %v2097 = vadd.f32 %v2095, %v2096
  %v2098 = vsub.f32 %v2097, %v1852
  %v2099 = vmul.f32 %v1870, %v2098
  %v2100 = vadd.f32 %v1852, %v2099
  %v2101 = vmul.f32 %v1870, %v2097
  %2102 = vst.msk [vmem:[#allocation4 + $0x30] sm:$0xff] %vm613, %v2101
  %2104 = vrot.lane.b32.xlu0 %v2101, 64
  %v2105 = vpop.permute.xlu0 %2104
  %2107 = vst.msk [vmem:[#allocation5 + $0x8] sm:$0xff] %vm613, %v2105
  %v2108 = vld [vmem:[#allocation2 + $0xa8] sm:$0xff]
  %v2109 = vld [vmem:[#allocation2 + $0xb0] sm:$0xff]
  %v2110 = vld [vmem:[#allocation2 + $0xb8] sm:$0xff]
  %v2111 = vld [vmem:[#allocation2] sm:$0xff]
  %v2112 = vld [vmem:[#allocation2 + $0x8] sm:$0xff]
  %v2113 = vld [vmem:[#allocation2 + $0x10] sm:$0xff]
  %v2114 = vsel %vm56, %v2108, %v2111
  %v2115 = vsel %vm57, %v2109, %v2112
  %v2116 = vsel %vm58, %v2110, %v2113
  %s2117 = scalar_lea.vmem %s1, 56
  %v2118 = vld [vmem:[%s2117] sm:$0xff]
  %v2119 = vld [vmem:[%s5] sm:$0xff]
  %v2120 = vld [vmem:[%s5 + $0x8] sm:$0xff]
  %v2121 = vld [vmem:[%s5 + $0x10] sm:$0xff]
  %v2122 = vld [vmem:[%s5 + $0x18] sm:$0xff]
  %v2123 = vld [vmem:[%s5 + $0x20] sm:$0xff]
  %v2124 = vld [vmem:[%s5 + $0x28] sm:$0xff]
  %v2125 = vld [vmem:[%s5 + $0x30] sm:$0xff]
  %v2126 = vld [vmem:[%s5 + $0x38] sm:$0xff]
  %v2127 = vld [vmem:[%s5 + $0x40] sm:$0xff]
  %v2128 = vld [vmem:[%s5 + $0x48] sm:$0xff]
  %v2129 = vld [vmem:[%s5 + $0x50] sm:$0xff]
  %v2130 = vld [vmem:[%s5 + $0x58] sm:$0xff]
  %v2131 = vld [vmem:[%s5 + $0x60] sm:$0xff]
  %v2132 = vld [vmem:[%s5 + $0x68] sm:$0xff]
  %v2133 = vld [vmem:[%s5 + $0x70] sm:$0xff]
  %v2134 = vld [vmem:[%s5 + $0x78] sm:$0xff]
  %v2135 = vld [vmem:[%s5 + $0x80] sm:$0xff]
  %v2136 = vld [vmem:[%s5 + $0x88] sm:$0xff]
  %v2137 = vld [vmem:[%s5 + $0x90] sm:$0xff]
  %v2138 = vld [vmem:[%s5 + $0x98] sm:$0xff]
  %v2139 = vld [vmem:[%s5 + $0xa0] sm:$0xff]
  %v2140 = vld [vmem:[%s5 + $0xa8] sm:$0xff]
  %v2141 = vld [vmem:[%s5 + $0xb0] sm:$0xff]
  %v2142 = vld [vmem:[%s5 + $0xb8] sm:$0xff]
  %v2143 = vld [vmem:[%s5 + $0xc0] sm:$0xff]
  %v2144 = vld [vmem:[%s5 + $0xc8] sm:$0xff]
  %v2145 = vld [vmem:[%s5 + $0xd0] sm:$0xff]
  %v2146 = vld [vmem:[%s5 + $0xd8] sm:$0xff]
  %v2147 = vld [vmem:[%s5 + $0xe0] sm:$0xff]
  %v2148 = vld [vmem:[%s5 + $0xe8] sm:$0xff]
  %v2149 = vld [vmem:[%s5 + $0xf0] sm:$0xff]
  %v2150 = vld [vmem:[%s5 + $0xf8] sm:$0xff]
  %v2151 = vld [vmem:[%s5 + $0x100] sm:$0xff]
  %v2152 = vld [vmem:[%s5 + $0x108] sm:$0xff]
  %v2153 = vld [vmem:[%s5 + $0x110] sm:$0xff]
  %v2154 = vld [vmem:[%s5 + $0x118] sm:$0xff]
  %v2155 = vld [vmem:[%s5 + $0x120] sm:$0xff]
  %v2156 = vld [vmem:[%s5 + $0x128] sm:$0xff]
  %v2157 = vld [vmem:[%s5 + $0x130] sm:$0xff]
  %v2158 = vld [vmem:[%s5 + $0x138] sm:$0xff]
  %v2159 = vld [vmem:[%s5 + $0x140] sm:$0xff]
  %v2160 = vld [vmem:[%s5 + $0x148] sm:$0xff]
  %v2161 = vld [vmem:[%s5 + $0x150] sm:$0xff]
  %v2162 = vld [vmem:[%s5 + $0x158] sm:$0xff]
  %v2163 = vld [vmem:[%s5 + $0x160] sm:$0xff]
  %v2164 = vld [vmem:[%s5 + $0x168] sm:$0xff]
  %v2165 = vld [vmem:[%s5 + $0x170] sm:$0xff]
  %v2166 = vld [vmem:[%s5 + $0x178] sm:$0xff]
  %v2167 = vld [vmem:[%s6] sm:$0x7]
  %v2169 = vlaneseq
  %v2170 = vshrl.u32 %v2169, 7
  %v2171 = vsub.s32 0, %v2170
  %v2172 = vrot.slane %v2167, %v2171
  %v2173 = vlaneseq
  %v2174 = vshrl.u32 %v2173, 7
  %v2175 = vsub.s32 1, %v2174
  %v2176 = vrot.slane %v2167, %v2175
  %v2177 = vlaneseq
  %v2178 = vshrl.u32 %v2177, 7
  %v2179 = vsub.s32 2, %v2178
  %v2180 = vrot.slane %v2167, %v2179
  %2184 = vmatprep.subr.mxu0 %v2120
  %2185 = vmatpush1.msra.mxu0 %v2119
  %2186 = vmatprep.subr.mxu0 %v2123
  %2187 = vmatpush1.msra.mxu0 %v2122
  %2188 = vmatprep.subr.mxu0 %v2126
  %2189 = vmatpush1.msra.mxu0 %v2125
  %2190 = vmatprep.subr.mxu0 %v2129
  %2191 = vmatpush1.msra.mxu0 %v2128
  %2192 = vmatprep.subr.mxu0 %v2132
  %2193 = vmatpush1.msra.mxu0 %v2131
  %2194 = vmatprep.subr.mxu0 %v2135
  %2195 = vmatpush1.msra.mxu0 %v2134
  %2196 = vmatprep.subr.mxu0 %v2138
  %2197 = vmatpush1.msra.mxu0 %v2137
  %2198 = vmatprep.subr.mxu0 %v2141
  %2199 = vmatpush1.msra.mxu0 %v2140
  %2200 = vmatprep.subr.mxu0 %v2144
  %2201 = vmatpush1.msra.mxu0 %v2143
  %2202 = vmatprep.subr.mxu0 %v2147
  %2203 = vmatpush1.msra.mxu0 %v2146
  %2204 = vmatprep.subr.mxu0 %v2150
  %2205 = vmatpush1.msra.mxu0 %v2149
  %2206 = vmatprep.subr.mxu0 %v2153
  %2207 = vmatpush1.msra.mxu0 %v2152
  %2208 = vmatprep.subr.mxu0 %v2156
  %2209 = vmatpush1.msra.mxu0 %v2155
  %2210 = vmatprep.subr.mxu0 %v2159
  %2211 = vmatpush1.msra.mxu0 %v2158
  %2212 = vmatprep.subr.mxu0 %v2162
  %2213 = vmatpush1.msra.mxu0 %v2161
  %2214 = vmatprep.subr.mxu0 %v2165
  %2215 = vmatpush1.msra.mxu0 %v2164
  %2216 = vmatprep.subr.mxu0 0.0
  %2217 = vmatpush1.msra.mxu0 0.0
  %2218 = vmatprep.subr.mxu0 0.0
  %2219 = vmatpush1.msra.mxu0 0.0
  %2220 = vmatprep.subr.mxu0 0.0
  %2221 = vmatpush1.msra.mxu0 0.0
  %2222 = vmatprep.subr.mxu0 0.0
  %2223 = vmatpush1.msra.mxu0 0.0
  %2224 = vmatprep.subr.mxu0 0.0
  %2225 = vmatpush1.msra.mxu0 0.0
  %2226 = vmatprep.subr.mxu0 0.0
  %2227 = vmatpush1.msra.mxu0 0.0
  %2228 = vmatprep.subr.mxu0 0.0
  %2229 = vmatpush1.msra.mxu0 0.0
  %2230 = vmatprep.subr.mxu0 0.0
  %2231 = vmatpush1.msra.mxu0 0.0
  %2232 = vmatprep.subr.mxu0 0.0
  %2233 = vmatpush1.msra.mxu0 0.0
  %2234 = vmatprep.subr.mxu0 0.0
  %2235 = vmatpush1.msra.mxu0 0.0
  %2236 = vmatprep.subr.mxu0 0.0
  %2237 = vmatpush1.msra.mxu0 0.0
  %2238 = vmatprep.subr.mxu0 0.0
  %2239 = vmatpush1.msra.mxu0 0.0
  %2240 = vmatprep.subr.mxu0 0.0
  %2241 = vmatpush1.msra.mxu0 0.0
  %2242 = vmatprep.subr.mxu0 0.0
  %2243 = vmatpush1.msra.mxu0 0.0
  %2244 = vmatprep.subr.mxu0 0.0
  %2245 = vmatpush1.msra.mxu0 0.0
  %2246 = vmatprep.subr.mxu0 0.0
  %2247 = vmatpush1.msra.mxu0 0.0
  %2248 = vmatprep.mubr.f32.mxu0 0.0
  %2249 = vmatmul.mubr.f32.gmra.mrb[0].mxu0 %v2100
  %v2250 = vpop.f32.mrb[0].mxu0
  %v2251 = vadd.f32 %v2172, %v2250
  %v2252 = vpop.f32.mrb[0].mxu0
  %v2253 = vadd.f32 %v2176, %v2252
  %2254 = vdwg.mxu0
  %2255 = vmatprep.subr.mxu0 0.0
  %2256 = vmatpush1.msra.mxu0 %v2121
  %2257 = vmatprep.subr.mxu0 0.0
  %2258 = vmatpush1.msra.mxu0 %v2124
  %2259 = vmatprep.subr.mxu0 0.0
  %2260 = vmatpush1.msra.mxu0 %v2127
  %2261 = vmatprep.subr.mxu0 0.0
  %2262 = vmatpush1.msra.mxu0 %v2130
  %2263 = vmatprep.subr.mxu0 0.0
  %2264 = vmatpush1.msra.mxu0 %v2133
  %2265 = vmatprep.subr.mxu0 0.0
  %2266 = vmatpush1.msra.mxu0 %v2136
  %2267 = vmatprep.subr.mxu0 0.0
  %2268 = vmatpush1.msra.mxu0 %v2139
  %2269 = vmatprep.subr.mxu0 0.0
  %2270 = vmatpush1.msra.mxu0 %v2142
  %2271 = vmatprep.subr.mxu0 0.0
  %2272 = vmatpush1.msra.mxu0 %v2145
  %2273 = vmatprep.subr.mxu0 0.0
  %2274 = vmatpush1.msra.mxu0 %v2148
  %2275 = vmatprep.subr.mxu0 0.0
  %2276 = vmatpush1.msra.mxu0 %v2151
  %2277 = vmatprep.subr.mxu0 0.0
  %2278 = vmatpush1.msra.mxu0 %v2154
  %2279 = vmatprep.subr.mxu0 0.0
  %2280 = vmatpush1.msra.mxu0 %v2157
  %2281 = vmatprep.subr.mxu0 0.0
  %2282 = vmatpush1.msra.mxu0 %v2160
  %2283 = vmatprep.subr.mxu0 0.0
  %2284 = vmatpush1.msra.mxu0 %v2163
  %2285 = vmatprep.subr.mxu0 0.0
  %2286 = vmatpush1.msra.mxu0 %v2166
  %2287 = vmatprep.subr.mxu0 0.0
  %2288 = vmatpush1.msra.mxu0 0.0
  %2289 = vmatprep.subr.mxu0 0.0
  %2290 = vmatpush1.msra.mxu0 0.0
  %2291 = vmatprep.subr.mxu0 0.0
  %2292 = vmatpush1.msra.mxu0 0.0
  %2293 = vmatprep.subr.mxu0 0.0
  %2294 = vmatpush1.msra.mxu0 0.0
  %2295 = vmatprep.subr.mxu0 0.0
  %2296 = vmatpush1.msra.mxu0 0.0
  %2297 = vmatprep.subr.mxu0 0.0
  %2298 = vmatpush1.msra.mxu0 0.0
  %2299 = vmatprep.subr.mxu0 0.0
  %2300 = vmatpush1.msra.mxu0 0.0
  %2301 = vmatprep.subr.mxu0 0.0
  %2302 = vmatpush1.msra.mxu0 0.0
  %2303 = vmatprep.subr.mxu0 0.0
  %2304 = vmatpush1.msra.mxu0 0.0
  %2305 = vmatprep.subr.mxu0 0.0
  %2306 = vmatpush1.msra.mxu0 0.0
  %2307 = vmatprep.subr.mxu0 0.0
  %2308 = vmatpush1.msra.mxu0 0.0
  %2309 = vmatprep.subr.mxu0 0.0
  %2310 = vmatpush1.msra.mxu0 0.0
  %2311 = vmatprep.subr.mxu0 0.0
  %2312 = vmatpush1.msra.mxu0 0.0
  %2313 = vmatprep.subr.mxu0 0.0
  %2314 = vmatpush1.msra.mxu0 0.0
  %2315 = vmatprep.subr.mxu0 0.0
  %2316 = vmatpush1.msra.mxu0 0.0
  %2317 = vmatprep.subr.mxu0 0.0
  %2318 = vmatpush1.msra.mxu0 0.0
  %2319 = vmatprep.mubr.f32.mxu0 0.0
  %2320 = vmatmul.mubr.f32.gmra.mrb[0].mxu0 %v2100
  %v2321 = vpop.f32.mrb[0].mxu0
  %v2322 = vadd.f32 %v2180, %v2321
  %v2323 = vpop.f32.mrb[0].mxu0
  %2324 = vdwg.mxu0
  %v2325 = vadd.f32 %v2114, %v2251
  %v2326 = vxor.u32 %v2325, 2147483648
  %v2327 = vmul.f32 %v2326, 1.442695
  %v2328 = vpow.pop %v2327
  %v2329 = vadd.f32 %v2328, 1.0
  %v2330 = vrcp.pop %v2329
  %v2331 = vmul.f32 1.0, %v2330
  %v2332 = vadd.f32 %v2115, %v2253
  %v2333 = vxor.u32 %v2332, 2147483648
  %v2334 = vmul.f32 %v2333, 1.442695
  %v2335 = vpow.pop %v2334
  %v2336 = vadd.f32 %v2335, 1.0
  %v2337 = vrcp.pop %v2336
  %v2338 = vmul.f32 1.0, %v2337
  %v2339 = vmul.f32 %v2331, %v2322
  %v2340 = vadd.f32 %v2116, %v2339
  %v2341 = vtanh.pop %v2340
  %v2342 = vsub.f32 1.0, %v2338
  %v2343 = vmul.f32 %v2342, %v2341
  %v2344 = vmul.f32 %v2338, %v2100
  %v2345 = vadd.f32 %v2343, %v2344
  %v2346 = vmul.f32 %v2118, %v2345
  %2347 = vst.msk [vmem:[#allocation4 + $0x38] sm:$0xff] %vm613, %v2346
  %2349 = vrot.lane.b32.xlu0 %v2346, 64
  %v2350 = vpop.permute.xlu0 %2349
  %2352 = vst.msk [vmem:[#allocation5] sm:$0xff] %vm613, %v2350
  %v2353 = vld [vmem:[#allocation4] sm:$0xff]
  %v2354 = vld [vmem:[#allocation4 + $0x8] sm:$0xff]
  %v2355 = vld [vmem:[#allocation4 + $0x10] sm:$0xff]
  %v2356 = vld [vmem:[#allocation4 + $0x18] sm:$0xff]
  %v2357 = vld [vmem:[#allocation4 + $0x20] sm:$0xff]
  %v2358 = vld [vmem:[#allocation4 + $0x28] sm:$0xff]
  %v2359 = vld [vmem:[#allocation4 + $0x30] sm:$0xff]
  %v2360 = vld [vmem:[#allocation4 + $0x38] sm:$0xff]
  %v2361 = vld [vmem:[%s7] sm:$0xff]
  %v2362 = vld [vmem:[%s7 + $0x8] sm:$0xff]
  %v2363 = vld [vmem:[%s7 + $0x10] sm:$0xff]
  %v2364 = vld [vmem:[%s7 + $0x18] sm:$0xff]
  %v2365 = vld [vmem:[%s7 + $0x20] sm:$0xff]
  %v2366 = vld [vmem:[%s7 + $0x28] sm:$0xff]
  %v2367 = vld [vmem:[%s7 + $0x30] sm:$0xff]
  %v2368 = vld [vmem:[%s7 + $0x38] sm:$0xff]
  %v2369 = vld [vmem:[%s7 + $0x40] sm:$0xff]
  %v2370 = vld [vmem:[%s7 + $0x48] sm:$0xff]
  %v2371 = vld [vmem:[%s7 + $0x50] sm:$0xff]
  %v2372 = vld [vmem:[%s7 + $0x58] sm:$0xff]
  %v2373 = vld [vmem:[%s7 + $0x60] sm:$0xff]
  %v2374 = vld [vmem:[%s7 + $0x68] sm:$0xff]
  %v2375 = vld [vmem:[%s7 + $0x70] sm:$0xff]
  %v2376 = vld [vmem:[%s7 + $0x78] sm:$0xff]
  %v2377 = vld [vmem:[%s7 + $0x80] sm:$0xff]
  %v2378 = vld [vmem:[%s7 + $0x88] sm:$0xff]
  %v2379 = vld [vmem:[%s7 + $0x90] sm:$0xff]
  %v2380 = vld [vmem:[%s7 + $0x98] sm:$0xff]
  %v2381 = vld [vmem:[%s7 + $0xa0] sm:$0xff]
  %v2382 = vld [vmem:[%s7 + $0xa8] sm:$0xff]
  %v2383 = vld [vmem:[%s7 + $0xb0] sm:$0xff]
  %v2384 = vld [vmem:[%s7 + $0xb8] sm:$0xff]
  %v2385 = vld [vmem:[#allocation5] sm:$0xff]
  %v2386 = vld [vmem:[#allocation5 + $0x8] sm:$0xff]
  %v2387 = vld [vmem:[#allocation5 + $0x10] sm:$0xff]
  %v2388 = vld [vmem:[#allocation5 + $0x18] sm:$0xff]
  %v2389 = vld [vmem:[#allocation5 + $0x20] sm:$0xff]
  %v2390 = vld [vmem:[#allocation5 + $0x28] sm:$0xff]
  %v2391 = vld [vmem:[#allocation5 + $0x30] sm:$0xff]
  %v2392 = vld [vmem:[#allocation5 + $0x38] sm:$0xff]
  %v2393 = vld [vmem:[%s8] sm:$0xff]
  %v2394 = vld [vmem:[%s8 + $0x8] sm:$0xff]
  %v2395 = vld [vmem:[%s8 + $0x10] sm:$0xff]
  %v2396 = vld [vmem:[%s8 + $0x18] sm:$0xff]
  %v2397 = vld [vmem:[%s8 + $0x20] sm:$0xff]
  %v2398 = vld [vmem:[%s8 + $0x28] sm:$0xff]
  %v2399 = vld [vmem:[%s8 + $0x30] sm:$0xff]
  %v2400 = vld [vmem:[%s8 + $0x38] sm:$0xff]
  %v2401 = vld [vmem:[%s8 + $0x40] sm:$0xff]
  %v2402 = vld [vmem:[%s8 + $0x48] sm:$0xff]
  %v2403 = vld [vmem:[%s8 + $0x50] sm:$0xff]
  %v2404 = vld [vmem:[%s8 + $0x58] sm:$0xff]
  %v2405 = vld [vmem:[%s8 + $0x60] sm:$0xff]
  %v2406 = vld [vmem:[%s8 + $0x68] sm:$0xff]
  %v2407 = vld [vmem:[%s8 + $0x70] sm:$0xff]
  %v2408 = vld [vmem:[%s8 + $0x78] sm:$0xff]
  %v2409 = vld [vmem:[%s8 + $0x80] sm:$0xff]
  %v2410 = vld [vmem:[%s8 + $0x88] sm:$0xff]
  %v2411 = vld [vmem:[%s8 + $0x90] sm:$0xff]
  %v2412 = vld [vmem:[%s8 + $0x98] sm:$0xff]
  %v2413 = vld [vmem:[%s8 + $0xa0] sm:$0xff]
  %v2414 = vld [vmem:[%s8 + $0xa8] sm:$0xff]
  %v2415 = vld [vmem:[%s8 + $0xb0] sm:$0xff]
  %v2416 = vld [vmem:[%s8 + $0xb8] sm:$0xff]
  %v2418 = vsel %vm613, %v2385, 0
  %v2421 = vsel %vm613, %v2386, 0
  %v2424 = vsel %vm613, %v2387, 0
  %v2427 = vsel %vm613, %v2388, 0
  %v2430 = vsel %vm613, %v2389, 0
  %v2433 = vsel %vm613, %v2390, 0
  %v2436 = vsel %vm613, %v2391, 0
  %v2439 = vsel %vm613, %v2392, 0
  %2441 = vmatprep.subr.mxu0 %v2394
  %2442 = vmatpush1.msra.mxu0 %v2393
  %2443 = vmatprep.subr.mxu0 %v2397
  %2444 = vmatpush1.msra.mxu0 %v2396
  %2445 = vmatprep.subr.mxu0 %v2400
  %2446 = vmatpush1.msra.mxu0 %v2399
  %2447 = vmatprep.subr.mxu0 %v2403
  %2448 = vmatpush1.msra.mxu0 %v2402
  %2449 = vmatprep.subr.mxu0 %v2406
  %2450 = vmatpush1.msra.mxu0 %v2405
  %2451 = vmatprep.subr.mxu0 %v2409
  %2452 = vmatpush1.msra.mxu0 %v2408
  %2453 = vmatprep.subr.mxu0 %v2412
  %2454 = vmatpush1.msra.mxu0 %v2411
  %2455 = vmatprep.subr.mxu0 %v2415
  %2456 = vmatpush1.msra.mxu0 %v2414
  %2457 = vmatprep.subr.mxu0 0.0
  %2458 = vmatpush1.msra.mxu0 0.0
  %2459 = vmatprep.subr.mxu0 0.0
  %2460 = vmatpush1.msra.mxu0 0.0
  %2461 = vmatprep.subr.mxu0 0.0
  %2462 = vmatpush1.msra.mxu0 0.0
  %2463 = vmatprep.subr.mxu0 0.0
  %2464 = vmatpush1.msra.mxu0 0.0
  %2465 = vmatprep.subr.mxu0 0.0
  %2466 = vmatpush1.msra.mxu0 0.0
  %2467 = vmatprep.subr.mxu0 0.0
  %2468 = vmatpush1.msra.mxu0 0.0
  %2469 = vmatprep.subr.mxu0 0.0
  %2470 = vmatpush1.msra.mxu0 0.0
  %2471 = vmatprep.subr.mxu0 0.0
  %2472 = vmatpush1.msra.mxu0 0.0
  %2473 = vmatprep.subr.mxu0 0.0
  %2474 = vmatpush1.msra.mxu0 0.0
  %2475 = vmatprep.subr.mxu0 0.0
  %2476 = vmatpush1.msra.mxu0 0.0
  %2477 = vmatprep.subr.mxu0 0.0
  %2478 = vmatpush1.msra.mxu0 0.0
  %2479 = vmatprep.subr.mxu0 0.0
  %2480 = vmatpush1.msra.mxu0 0.0
  %2481 = vmatprep.subr.mxu0 0.0
  %2482 = vmatpush1.msra.mxu0 0.0
  %2483 = vmatprep.subr.mxu0 0.0
  %2484 = vmatpush1.msra.mxu0 0.0
  %2485 = vmatprep.subr.mxu0 0.0
  %2486 = vmatpush1.msra.mxu0 0.0
  %2487 = vmatprep.subr.mxu0 0.0
  %2488 = vmatpush1.msra.mxu0 0.0
  %2489 = vmatprep.subr.mxu0 0.0
  %2490 = vmatpush1.msra.mxu0 0.0
  %2491 = vmatprep.subr.mxu0 0.0
  %2492 = vmatpush1.msra.mxu0 0.0
  %2493 = vmatprep.subr.mxu0 0.0
  %2494 = vmatpush1.msra.mxu0 0.0
  %2495 = vmatprep.subr.mxu0 0.0
  %2496 = vmatpush1.msra.mxu0 0.0
  %2497 = vmatprep.subr.mxu0 0.0
  %2498 = vmatpush1.msra.mxu0 0.0
  %2499 = vmatprep.subr.mxu0 0.0
  %2500 = vmatpush1.msra.mxu0 0.0
  %2501 = vmatprep.subr.mxu0 0.0
  %2502 = vmatpush1.msra.mxu0 0.0
  %2503 = vmatprep.subr.mxu0 0.0
  %2504 = vmatpush1.msra.mxu0 0.0
  %2505 = vmatprep.mubr.f32.mxu0 0.0
  %2506 = vmatmul.mubr.f32.gmra.mrb[0].mxu0 %v2418
  %v2507 = vpop.f32.mrb[0].mxu0
  %v2508 = vadd.f32 0.0, %v2507
  %v2509 = vpop.f32.mrb[0].mxu0
  %v2510 = vadd.f32 0.0, %v2509
  %2511 = vmatprep.mubr.f32.mxu0 0.0
  %2512 = vmatmul.mubr.f32.gmra.mrb[0].mxu0 %v2421
  %v2513 = vpop.f32.mrb[0].mxu0
  %v2514 = vadd.f32 0.0, %v2513
  %v2515 = vpop.f32.mrb[0].mxu0
  %v2516 = vadd.f32 0.0, %v2515
  %2517 = vmatprep.mubr.f32.mxu0 0.0
  %2518 = vmatmul.mubr.f32.gmra.mrb[0].mxu0 %v2424
  %v2519 = vpop.f32.mrb[0].mxu0
  %v2520 = vadd.f32 0.0, %v2519
  %v2521 = vpop.f32.mrb[0].mxu0
  %v2522 = vadd.f32 0.0, %v2521
  %2523 = vmatprep.mubr.f32.mxu0 0.0
  %2524 = vmatmul.mubr.f32.gmra.mrb[0].mxu0 %v2427
  %v2525 = vpop.f32.mrb[0].mxu0
  %v2526 = vadd.f32 0.0, %v2525
  %v2527 = vpop.f32.mrb[0].mxu0
  %v2528 = vadd.f32 0.0, %v2527
  %2529 = vmatprep.mubr.f32.mxu0 0.0
  %2530 = vmatmul.mubr.f32.gmra.mrb[0].mxu0 %v2430
  %v2531 = vpop.f32.mrb[0].mxu0
  %v2532 = vadd.f32 0.0, %v2531
  %v2533 = vpop.f32.mrb[0].mxu0
  %v2534 = vadd.f32 0.0, %v2533
  %2535 = vmatprep.mubr.f32.mxu0 0.0
  %2536 = vmatmul.mubr.f32.gmra.mrb[0].mxu0 %v2433
  %v2537 = vpop.f32.mrb[0].mxu0
  %v2538 = vadd.f32 0.0, %v2537
  %v2539 = vpop.f32.mrb[0].mxu0
  %v2540 = vadd.f32 0.0, %v2539
  %2541 = vmatprep.mubr.f32.mxu0 0.0
  %2542 = vmatmul.mubr.f32.gmra.mrb[0].mxu0 %v2436
  %v2543 = vpop.f32.mrb[0].mxu0
  %v2544 = vadd.f32 0.0, %v2543
  %v2545 = vpop.f32.mrb[0].mxu0
  %v2546 = vadd.f32 0.0, %v2545
  %2547 = vmatprep.mubr.f32.mxu0 0.0
  %2548 = vmatmul.mubr.f32.gmra.mrb[0].mxu0 %v2439
  %v2549 = vpop.f32.mrb[0].mxu0
  %v2550 = vadd.f32 0.0, %v2549
  %v2551 = vpop.f32.mrb[0].mxu0
  %v2552 = vadd.f32 0.0, %v2551
  %2553 = vdwg.mxu0
  %2554 = vmatprep.subr.mxu0 0.0
  %2555 = vmatpush1.msra.mxu0 %v2395
  %2556 = vmatprep.subr.mxu0 0.0
  %2557 = vmatpush1.msra.mxu0 %v2398
  %2558 = vmatprep.subr.mxu0 0.0
  %2559 = vmatpush1.msra.mxu0 %v2401
  %2560 = vmatprep.subr.mxu0 0.0
  %2561 = vmatpush1.msra.mxu0 %v2404
  %2562 = vmatprep.subr.mxu0 0.0
  %2563 = vmatpush1.msra.mxu0 %v2407
  %2564 = vmatprep.subr.mxu0 0.0
  %2565 = vmatpush1.msra.mxu0 %v2410
  %2566 = vmatprep.subr.mxu0 0.0
  %2567 = vmatpush1.msra.mxu0 %v2413
  %2568 = vmatprep.subr.mxu0 0.0
  %2569 = vmatpush1.msra.mxu0 %v2416
  %2570 = vmatprep.subr.mxu0 0.0
  %2571 = vmatpush1.msra.mxu0 0.0
  %2572 = vmatprep.subr.mxu0 0.0
  %2573 = vmatpush1.msra.mxu0 0.0
  %2574 = vmatprep.subr.mxu0 0.0
  %2575 = vmatpush1.msra.mxu0 0.0
  %2576 = vmatprep.subr.mxu0 0.0
  %2577 = vmatpush1.msra.mxu0 0.0
  %2578 = vmatprep.subr.mxu0 0.0
  %2579 = vmatpush1.msra.mxu0 0.0
  %2580 = vmatprep.subr.mxu0 0.0
  %2581 = vmatpush1.msra.mxu0 0.0
  %2582 = vmatprep.subr.mxu0 0.0
  %2583 = vmatpush1.msra.mxu0 0.0
  %2584 = vmatprep.subr.mxu0 0.0
  %2585 = vmatpush1.msra.mxu0 0.0
  %2586 = vmatprep.subr.mxu0 0.0
  %2587 = vmatpush1.msra.mxu0 0.0
  %2588 = vmatprep.subr.mxu0 0.0
  %2589 = vmatpush1.msra.mxu0 0.0
  %2590 = vmatprep.subr.mxu0 0.0
  %2591 = vmatpush1.msra.mxu0 0.0
  %2592 = vmatprep.subr.mxu0 0.0
  %2593 = vmatpush1.msra.mxu0 0.0
  %2594 = vmatprep.subr.mxu0 0.0
  %2595 = vmatpush1.msra.mxu0 0.0
  %2596 = vmatprep.subr.mxu0 0.0
  %2597 = vmatpush1.msra.mxu0 0.0
  %2598 = vmatprep.subr.mxu0 0.0
  %2599 = vmatpush1.msra.mxu0 0.0
  %2600 = vmatprep.subr.mxu0 0.0
  %2601 = vmatpush1.msra.mxu0 0.0
  %2602 = vmatprep.subr.mxu0 0.0
  %2603 = vmatpush1.msra.mxu0 0.0
  %2604 = vmatprep.subr.mxu0 0.0
  %2605 = vmatpush1.msra.mxu0 0.0
  %2606 = vmatprep.subr.mxu0 0.0
  %2607 = vmatpush1.msra.mxu0 0.0
  %2608 = vmatprep.subr.mxu0 0.0
  %2609 = vmatpush1.msra.mxu0 0.0
  %2610 = vmatprep.subr.mxu0 0.0
  %2611 = vmatpush1.msra.mxu0 0.0
  %2612 = vmatprep.subr.mxu0 0.0
  %2613 = vmatpush1.msra.mxu0 0.0
  %2614 = vmatprep.subr.mxu0 0.0
  %2615 = vmatpush1.msra.mxu0 0.0
  %2616 = vmatprep.subr.mxu0 0.0
  %2617 = vmatpush1.msra.mxu0 0.0
  %2618 = vmatprep.mubr.f32.mxu0 0.0
  %2619 = vmatmul.mubr.f32.gmra.mrb[0].mxu0 %v2418
  %v2620 = vpop.f32.mrb[0].mxu0
  %v2621 = vadd.f32 0.0, %v2620
  %v2622 = vpop.f32.mrb[0].mxu0
  %2623 = vmatprep.mubr.f32.mxu0 0.0
  %2624 = vmatmul.mubr.f32.gmra.mrb[0].mxu0 %v2421
  %v2625 = vpop.f32.mrb[0].mxu0
  %v2626 = vadd.f32 0.0, %v2625
  %v2627 = vpop.f32.mrb[0].mxu0
  %2628 = vmatprep.mubr.f32.mxu0 0.0
  %2629 = vmatmul.mubr.f32.gmra.mrb[0].mxu0 %v2424
  %v2630 = vpop.f32.mrb[0].mxu0
  %v2631 = vadd.f32 0.0, %v2630
  %v2632 = vpop.f32.mrb[0].mxu0
  %2633 = vmatprep.mubr.f32.mxu0 0.0
  %2634 = vmatmul.mubr.f32.gmra.mrb[0].mxu0 %v2427
  %v2635 = vpop.f32.mrb[0].mxu0
  %v2636 = vadd.f32 0.0, %v2635
  %v2637 = vpop.f32.mrb[0].mxu0
  %2638 = vmatprep.mubr.f32.mxu0 0.0
  %2639 = vmatmul.mubr.f32.gmra.mrb[0].mxu0 %v2430
  %v2640 = vpop.f32.mrb[0].mxu0
  %v2641 = vadd.f32 0.0, %v2640
  %v2642 = vpop.f32.mrb[0].mxu0
  %2643 = vmatprep.mubr.f32.mxu0 0.0
  %2644 = vmatmul.mubr.f32.gmra.mrb[0].mxu0 %v2433
  %v2645 = vpop.f32.mrb[0].mxu0
  %v2646 = vadd.f32 0.0, %v2645
  %v2647 = vpop.f32.mrb[0].mxu0
  %2648 = vmatprep.mubr.f32.mxu0 0.0
  %2649 = vmatmul.mubr.f32.gmra.mrb[0].mxu0 %v2436
  %v2650 = vpop.f32.mrb[0].mxu0
  %v2651 = vadd.f32 0.0, %v2650
  %v2652 = vpop.f32.mrb[0].mxu0
  %2653 = vmatprep.mubr.f32.mxu0 0.0
  %2654 = vmatmul.mubr.f32.gmra.mrb[0].mxu0 %v2439
  %v2655 = vpop.f32.mrb[0].mxu0
  %v2656 = vadd.f32 0.0, %v2655
  %v2657 = vpop.f32.mrb[0].mxu0
  %2658 = vdwg.mxu0
  %v2660 = vsel %vm613, %v2353, 0
  %v2663 = vsel %vm613, %v2354, 0
  %v2666 = vsel %vm613, %v2355, 0
  %v2669 = vsel %vm613, %v2356, 0
  %v2672 = vsel %vm613, %v2357, 0
  %v2675 = vsel %vm613, %v2358, 0
  %v2678 = vsel %vm613, %v2359, 0
  %v2681 = vsel %vm613, %v2360, 0
  %2683 = vmatprep.subr.mxu0 %v2362
  %2684 = vmatpush1.msra.mxu0 %v2361
  %2685 = vmatprep.subr.mxu0 %v2365
  %2686 = vmatpush1.msra.mxu0 %v2364
  %2687 = vmatprep.subr.mxu0 %v2368
  %2688 = vmatpush1.msra.mxu0 %v2367
  %2689 = vmatprep.subr.mxu0 %v2371
  %2690 = vmatpush1.msra.mxu0 %v2370
  %2691 = vmatprep.subr.mxu0 %v2374
  %2692 = vmatpush1.msra.mxu0 %v2373
  %2693 = vmatprep.subr.mxu0 %v2377
  %2694 = vmatpush1.msra.mxu0 %v2376
  %2695 = vmatprep.subr.mxu0 %v2380
  %2696 = vmatpush1.msra.mxu0 %v2379
  %2697 = vmatprep.subr.mxu0 %v2383
  %2698 = vmatpush1.msra.mxu0 %v2382
  %2699 = vmatprep.subr.mxu0 0.0
  %2700 = vmatpush1.msra.mxu0 0.0
  %2701 = vmatprep.subr.mxu0 0.0
  %2702 = vmatpush1.msra.mxu0 0.0
  %2703 = vmatprep.subr.mxu0 0.0
  %2704 = vmatpush1.msra.mxu0 0.0
  %2705 = vmatprep.subr.mxu0 0.0
  %2706 = vmatpush1.msra.mxu0 0.0
  %2707 = vmatprep.subr.mxu0 0.0
  %2708 = vmatpush1.msra.mxu0 0.0
  %2709 = vmatprep.subr.mxu0 0.0
  %2710 = vmatpush1.msra.mxu0 0.0
  %2711 = vmatprep.subr.mxu0 0.0
  %2712 = vmatpush1.msra.mxu0 0.0
  %2713 = vmatprep.subr.mxu0 0.0
  %2714 = vmatpush1.msra.mxu0 0.0
  %2715 = vmatprep.subr.mxu0 0.0
  %2716 = vmatpush1.msra.mxu0 0.0
  %2717 = vmatprep.subr.mxu0 0.0
  %2718 = vmatpush1.msra.mxu0 0.0
  %2719 = vmatprep.subr.mxu0 0.0
  %2720 = vmatpush1.msra.mxu0 0.0
  %2721 = vmatprep.subr.mxu0 0.0
  %2722 = vmatpush1.msra.mxu0 0.0
  %2723 = vmatprep.subr.mxu0 0.0
  %2724 = vmatpush1.msra.mxu0 0.0
  %2725 = vmatprep.subr.mxu0 0.0
  %2726 = vmatpush1.msra.mxu0 0.0
  %2727 = vmatprep.subr.mxu0 0.0
  %2728 = vmatpush1.msra.mxu0 0.0
  %2729 = vmatprep.subr.mxu0 0.0
  %2730 = vmatpush1.msra.mxu0 0.0
  %2731 = vmatprep.subr.mxu0 0.0
  %2732 = vmatpush1.msra.mxu0 0.0
  %2733 = vmatprep.subr.mxu0 0.0
  %2734 = vmatpush1.msra.mxu0 0.0
  %2735 = vmatprep.subr.mxu0 0.0
  %2736 = vmatpush1.msra.mxu0 0.0
  %2737 = vmatprep.subr.mxu0 0.0
  %2738 = vmatpush1.msra.mxu0 0.0
  %2739 = vmatprep.subr.mxu0 0.0
  %2740 = vmatpush1.msra.mxu0 0.0
  %2741 = vmatprep.subr.mxu0 0.0
  %2742 = vmatpush1.msra.mxu0 0.0
  %2743 = vmatprep.subr.mxu0 0.0
  %2744 = vmatpush1.msra.mxu0 0.0
  %2745 = vmatprep.subr.mxu0 0.0
  %2746 = vmatpush1.msra.mxu0 0.0
  %2747 = vmatprep.mubr.f32.mxu0 0.0
  %2748 = vmatmul.mubr.f32.gmra.mrb[0].mxu0 %v2660
  %v2749 = vpop.f32.mrb[0].mxu0
  %v2750 = vadd.f32 %v2508, %v2749
  %v2751 = vpop.f32.mrb[0].mxu0
  %v2752 = vadd.f32 %v2510, %v2751
  %2753 = vmatprep.mubr.f32.mxu0 0.0
  %2754 = vmatmul.mubr.f32.gmra.mrb[0].mxu0 %v2663
  %v2755 = vpop.f32.mrb[0].mxu0
  %v2756 = vadd.f32 %v2514, %v2755
  %v2757 = vpop.f32.mrb[0].mxu0
  %v2758 = vadd.f32 %v2516, %v2757
  %2759 = vmatprep.mubr.f32.mxu0 0.0
  %2760 = vmatmul.mubr.f32.gmra.mrb[0].mxu0 %v2666
  %v2761 = vpop.f32.mrb[0].mxu0
  %v2762 = vadd.f32 %v2520, %v2761
  %v2763 = vpop.f32.mrb[0].mxu0
  %v2764 = vadd.f32 %v2522, %v2763
  %2765 = vmatprep.mubr.f32.mxu0 0.0
  %2766 = vmatmul.mubr.f32.gmra.mrb[0].mxu0 %v2669
  %v2767 = vpop.f32.mrb[0].mxu0
  %v2768 = vadd.f32 %v2526, %v2767
  %v2769 = vpop.f32.mrb[0].mxu0
  %v2770 = vadd.f32 %v2528, %v2769
  %2771 = vmatprep.mubr.f32.mxu0 0.0
  %2772 = vmatmul.mubr.f32.gmra.mrb[0].mxu0 %v2672
  %v2773 = vpop.f32.mrb[0].mxu0
  %v2774 = vadd.f32 %v2532, %v2773
  %v2775 = vpop.f32.mrb[0].mxu0
  %v2776 = vadd.f32 %v2534, %v2775
  %2777 = vmatprep.mubr.f32.mxu0 0.0
  %2778 = vmatmul.mubr.f32.gmra.mrb[0].mxu0 %v2675
  %v2779 = vpop.f32.mrb[0].mxu0
  %v2780 = vadd.f32 %v2538, %v2779
  %v2781 = vpop.f32.mrb[0].mxu0
  %v2782 = vadd.f32 %v2540, %v2781
  %2783 = vmatprep.mubr.f32.mxu0 0.0
  %2784 = vmatmul.mubr.f32.gmra.mrb[0].mxu0 %v2678
  %v2785 = vpop.f32.mrb[0].mxu0
  %v2786 = vadd.f32 %v2544, %v2785
  %v2787 = vpop.f32.mrb[0].mxu0
  %v2788 = vadd.f32 %v2546, %v2787
  %2789 = vmatprep.mubr.f32.mxu0 0.0
  %2790 = vmatmul.mubr.f32.gmra.mrb[0].mxu0 %v2681
  %v2791 = vpop.f32.mrb[0].mxu0
  %v2792 = vadd.f32 %v2550, %v2791
  %v2793 = vpop.f32.mrb[0].mxu0
  %v2794 = vadd.f32 %v2552, %v2793
  %2795 = vdwg.mxu0
  %2796 = vmatprep.subr.mxu0 0.0
  %2797 = vmatpush1.msra.mxu0 %v2363
  %2798 = vmatprep.subr.mxu0 0.0
  %2799 = vmatpush1.msra.mxu0 %v2366
  %2800 = vmatprep.subr.mxu0 0.0
  %2801 = vmatpush1.msra.mxu0 %v2369
  %2802 = vmatprep.subr.mxu0 0.0
  %2803 = vmatpush1.msra.mxu0 %v2372
  %2804 = vmatprep.subr.mxu0 0.0
  %2805 = vmatpush1.msra.mxu0 %v2375
  %2806 = vmatprep.subr.mxu0 0.0
  %2807 = vmatpush1.msra.mxu0 %v2378
  %2808 = vmatprep.subr.mxu0 0.0
  %2809 = vmatpush1.msra.mxu0 %v2381
  %2810 = vmatprep.subr.mxu0 0.0
  %2811 = vmatpush1.msra.mxu0 %v2384
  %2812 = vmatprep.subr.mxu0 0.0
  %2813 = vmatpush1.msra.mxu0 0.0
  %2814 = vmatprep.subr.mxu0 0.0
  %2815 = vmatpush1.msra.mxu0 0.0
  %2816 = vmatprep.subr.mxu0 0.0
  %2817 = vmatpush1.msra.mxu0 0.0
  %2818 = vmatprep.subr.mxu0 0.0
  %2819 = vmatpush1.msra.mxu0 0.0
  %2820 = vmatprep.subr.mxu0 0.0
  %2821 = vmatpush1.msra.mxu0 0.0
  %2822 = vmatprep.subr.mxu0 0.0
  %2823 = vmatpush1.msra.mxu0 0.0
  %2824 = vmatprep.subr.mxu0 0.0
  %2825 = vmatpush1.msra.mxu0 0.0
  %2826 = vmatprep.subr.mxu0 0.0
  %2827 = vmatpush1.msra.mxu0 0.0
  %2828 = vmatprep.subr.mxu0 0.0
  %2829 = vmatpush1.msra.mxu0 0.0
  %2830 = vmatprep.subr.mxu0 0.0
  %2831 = vmatpush1.msra.mxu0 0.0
  %2832 = vmatprep.subr.mxu0 0.0
  %2833 = vmatpush1.msra.mxu0 0.0
  %2834 = vmatprep.subr.mxu0 0.0
  %2835 = vmatpush1.msra.mxu0 0.0
  %2836 = vmatprep.subr.mxu0 0.0
  %2837 = vmatpush1.msra.mxu0 0.0
  %2838 = vmatprep.subr.mxu0 0.0
  %2839 = vmatpush1.msra.mxu0 0.0
  %2840 = vmatprep.subr.mxu0 0.0
  %2841 = vmatpush1.msra.mxu0 0.0
  %2842 = vmatprep.subr.mxu0 0.0
  %2843 = vmatpush1.msra.mxu0 0.0
  %2844 = vmatprep.subr.mxu0 0.0
  %2845 = vmatpush1.msra.mxu0 0.0
  %2846 = vmatprep.subr.mxu0 0.0
  %2847 = vmatpush1.msra.mxu0 0.0
  %2848 = vmatprep.subr.mxu0 0.0
  %2849 = vmatpush1.msra.mxu0 0.0
  %2850 = vmatprep.subr.mxu0 0.0
  %2851 = vmatpush1.msra.mxu0 0.0
  %2852 = vmatprep.subr.mxu0 0.0
  %2853 = vmatpush1.msra.mxu0 0.0
  %2854 = vmatprep.subr.mxu0 0.0
  %2855 = vmatpush1.msra.mxu0 0.0
  %2856 = vmatprep.subr.mxu0 0.0
  %2857 = vmatpush1.msra.mxu0 0.0
  %2858 = vmatprep.subr.mxu0 0.0
  %2859 = vmatpush1.msra.mxu0 0.0
  %2860 = vmatprep.mubr.f32.mxu0 0.0
  %2861 = vmatmul.mubr.f32.gmra.mrb[0].mxu0 %v2660
  %v2862 = vpop.f32.mrb[0].mxu0
  %v2863 = vadd.f32 %v2621, %v2862
  %v2864 = vpop.f32.mrb[0].mxu0
  %2865 = vmatprep.mubr.f32.mxu0 0.0
  %2866 = vmatmul.mubr.f32.gmra.mrb[0].mxu0 %v2663
  %v2867 = vpop.f32.mrb[0].mxu0
  %v2868 = vadd.f32 %v2626, %v2867
  %v2869 = vpop.f32.mrb[0].mxu0
  %2870 = vmatprep.mubr.f32.mxu0 0.0
  %2871 = vmatmul.mubr.f32.gmra.mrb[0].mxu0 %v2666
  %v2872 = vpop.f32.mrb[0].mxu0
  %v2873 = vadd.f32 %v2631, %v2872
  %v2874 = vpop.f32.mrb[0].mxu0
  %2875 = vmatprep.mubr.f32.mxu0 0.0
  %2876 = vmatmul.mubr.f32.gmra.mrb[0].mxu0 %v2669
  %v2877 = vpop.f32.mrb[0].mxu0
  %v2878 = vadd.f32 %v2636, %v2877
  %v2879 = vpop.f32.mrb[0].mxu0
  %2880 = vmatprep.mubr.f32.mxu0 0.0
  %2881 = vmatmul.mubr.f32.gmra.mrb[0].mxu0 %v2672
  %v2882 = vpop.f32.mrb[0].mxu0
  %v2883 = vadd.f32 %v2641, %v2882
  %v2884 = vpop.f32.mrb[0].mxu0
  %2885 = vmatprep.mubr.f32.mxu0 0.0
  %2886 = vmatmul.mubr.f32.gmra.mrb[0].mxu0 %v2675
  %v2887 = vpop.f32.mrb[0].mxu0
  %v2888 = vadd.f32 %v2646, %v2887
  %v2889 = vpop.f32.mrb[0].mxu0
  %2890 = vmatprep.mubr.f32.mxu0 0.0
  %2891 = vmatmul.mubr.f32.gmra.mrb[0].mxu0 %v2678
  %v2892 = vpop.f32.mrb[0].mxu0
  %v2893 = vadd.f32 %v2651, %v2892
  %v2894 = vpop.f32.mrb[0].mxu0
  %2895 = vmatprep.mubr.f32.mxu0 0.0
  %2896 = vmatmul.mubr.f32.gmra.mrb[0].mxu0 %v2681
  %v2897 = vpop.f32.mrb[0].mxu0
  %v2898 = vadd.f32 %v2656, %v2897
  %v2899 = vpop.f32.mrb[0].mxu0
  %2900 = vdwg.mxu0
  %v2901 = vld [vmem:[%s9] sm:$0x7]
  %v2903 = vlaneseq
  %v2904 = vshrl.u32 %v2903, 7
  %v2905 = vsub.s32 0, %v2904
  %v2906 = vrot.slane %v2901, %v2905
  %v2907 = vlaneseq
  %v2908 = vshrl.u32 %v2907, 7
  %v2909 = vsub.s32 1, %v2908
  %v2910 = vrot.slane %v2901, %v2909
  %v2911 = vlaneseq
  %v2912 = vshrl.u32 %v2911, 7
  %v2913 = vsub.s32 2, %v2912
  %v2914 = vrot.slane %v2901, %v2913
  %v2918 = vadd.f32 %v2750, %v2906
  %v2919 = vadd.f32 %v2752, %v2910
  %v2920 = vadd.f32 %v2863, %v2914
  %v2921 = vadd.f32 %v2756, %v2906
  %v2922 = vadd.f32 %v2758, %v2910
  %v2923 = vadd.f32 %v2868, %v2914
  %v2924 = vadd.f32 %v2762, %v2906
  %v2925 = vadd.f32 %v2764, %v2910
  %v2926 = vadd.f32 %v2873, %v2914
  %v2927 = vadd.f32 %v2768, %v2906
  %v2928 = vadd.f32 %v2770, %v2910
  %v2929 = vadd.f32 %v2878, %v2914
  %v2930 = vadd.f32 %v2774, %v2906
  %v2931 = vadd.f32 %v2776, %v2910
  %v2932 = vadd.f32 %v2883, %v2914
  %v2933 = vadd.f32 %v2780, %v2906
  %v2934 = vadd.f32 %v2782, %v2910
  %v2935 = vadd.f32 %v2888, %v2914
  %v2936 = vadd.f32 %v2786, %v2906
  %v2937 = vadd.f32 %v2788, %v2910
  %v2938 = vadd.f32 %v2893, %v2914
  %v2939 = vadd.f32 %v2792, %v2906
  %v2940 = vadd.f32 %v2794, %v2910
  %v2941 = vadd.f32 %v2898, %v2914
  %2942 = vst [vmem:[#allocation3] sm:$0xff] %v2918
  %2943 = vst [vmem:[#allocation3 + $0x8] sm:$0xff] %v2919
  %2944 = vst [vmem:[#allocation3 + $0x10] sm:$0xff] %v2920
  %2945 = vst [vmem:[#allocation3 + $0x18] sm:$0xff] %v2921
  %2946 = vst [vmem:[#allocation3 + $0x20] sm:$0xff] %v2922
  %2947 = vst [vmem:[#allocation3 + $0x28] sm:$0xff] %v2923
  %2948 = vst [vmem:[#allocation3 + $0x30] sm:$0xff] %v2924
  %2949 = vst [vmem:[#allocation3 + $0x38] sm:$0xff] %v2925
  %2950 = vst [vmem:[#allocation3 + $0x40] sm:$0xff] %v2926
  %2951 = vst [vmem:[#allocation3 + $0x48] sm:$0xff] %v2927
  %2952 = vst [vmem:[#allocation3 + $0x50] sm:$0xff] %v2928
  %2953 = vst [vmem:[#allocation3 + $0x58] sm:$0xff] %v2929
  %2954 = vst [vmem:[#allocation3 + $0x60] sm:$0xff] %v2930
  %2955 = vst [vmem:[#allocation3 + $0x68] sm:$0xff] %v2931
  %2956 = vst [vmem:[#allocation3 + $0x70] sm:$0xff] %v2932
  %2957 = vst [vmem:[#allocation3 + $0x78] sm:$0xff] %v2933
  %2958 = vst [vmem:[#allocation3 + $0x80] sm:$0xff] %v2934
  %2959 = vst [vmem:[#allocation3 + $0x88] sm:$0xff] %v2935
  %2960 = vst [vmem:[#allocation3 + $0x90] sm:$0xff] %v2936
  %2961 = vst [vmem:[#allocation3 + $0x98] sm:$0xff] %v2937
  %2962 = vst [vmem:[#allocation3 + $0xa0] sm:$0xff] %v2938
  %2963 = vst [vmem:[#allocation3 + $0xa8] sm:$0xff] %v2939
  %2964 = vst [vmem:[#allocation3 + $0xb0] sm:$0xff] %v2940
  %2965 = vst [vmem:[#allocation3 + $0xb8] sm:$0xff] %v2941
  %v2966 = vld [vmem:[#allocation3] sm:$0xff]
  %v2967 = vld [vmem:[#allocation3 + $0x8] sm:$0xff]
  %v2968 = vld [vmem:[#allocation3 + $0x10] sm:$0xff]
  %v2969 = vld [vmem:[#allocation3 + $0xa8] sm:$0xff]
  %v2970 = vld [vmem:[#allocation3 + $0xb0] sm:$0xff]
  %v2971 = vld [vmem:[#allocation3 + $0xb8] sm:$0xff]
  %v2972 = vsel %vm56, %v2966, %v2969
  %v2973 = vsel %vm57, %v2967, %v2970
  %v2974 = vsel %vm58, %v2968, %v2971
  %v2975 = vld [vmem:[%s1] sm:$0xff]
  %v2976 = vld [vmem:[%s10] sm:$0xff]
  %v2977 = vld [vmem:[%s10 + $0x8] sm:$0xff]
  %v2978 = vld [vmem:[%s10 + $0x10] sm:$0xff]
  %v2979 = vld [vmem:[%s10 + $0x18] sm:$0xff]
  %v2980 = vld [vmem:[%s10 + $0x20] sm:$0xff]
  %v2981 = vld [vmem:[%s10 + $0x28] sm:$0xff]
  %v2982 = vld [vmem:[%s10 + $0x30] sm:$0xff]
  %v2983 = vld [vmem:[%s10 + $0x38] sm:$0xff]
  %v2984 = vld [vmem:[%s10 + $0x40] sm:$0xff]
  %v2985 = vld [vmem:[%s10 + $0x48] sm:$0xff]
  %v2986 = vld [vmem:[%s10 + $0x50] sm:$0xff]
  %v2987 = vld [vmem:[%s10 + $0x58] sm:$0xff]
  %v2988 = vld [vmem:[%s10 + $0x60] sm:$0xff]
  %v2989 = vld [vmem:[%s10 + $0x68] sm:$0xff]
  %v2990 = vld [vmem:[%s10 + $0x70] sm:$0xff]
  %v2991 = vld [vmem:[%s10 + $0x78] sm:$0xff]
  %v2992 = vld [vmem:[%s10 + $0x80] sm:$0xff]
  %v2993 = vld [vmem:[%s10 + $0x88] sm:$0xff]
  %v2994 = vld [vmem:[%s10 + $0x90] sm:$0xff]
  %v2995 = vld [vmem:[%s10 + $0x98] sm:$0xff]
  %v2996 = vld [vmem:[%s10 + $0xa0] sm:$0xff]
  %v2997 = vld [vmem:[%s10 + $0xa8] sm:$0xff]
  %v2998 = vld [vmem:[%s10 + $0xb0] sm:$0xff]
  %v2999 = vld [vmem:[%s10 + $0xb8] sm:$0xff]
  %v3000 = vld [vmem:[%s10 + $0xc0] sm:$0xff]
  %v3001 = vld [vmem:[%s10 + $0xc8] sm:$0xff]
  %v3002 = vld [vmem:[%s10 + $0xd0] sm:$0xff]
  %v3003 = vld [vmem:[%s10 + $0xd8] sm:$0xff]
  %v3004 = vld [vmem:[%s10 + $0xe0] sm:$0xff]
  %v3005 = vld [vmem:[%s10 + $0xe8] sm:$0xff]
  %v3006 = vld [vmem:[%s10 + $0xf0] sm:$0xff]
  %v3007 = vld [vmem:[%s10 + $0xf8] sm:$0xff]
  %v3008 = vld [vmem:[%s10 + $0x100] sm:$0xff]
  %v3009 = vld [vmem:[%s10 + $0x108] sm:$0xff]
  %v3010 = vld [vmem:[%s10 + $0x110] sm:$0xff]
  %v3011 = vld [vmem:[%s10 + $0x118] sm:$0xff]
  %v3012 = vld [vmem:[%s10 + $0x120] sm:$0xff]
  %v3013 = vld [vmem:[%s10 + $0x128] sm:$0xff]
  %v3014 = vld [vmem:[%s10 + $0x130] sm:$0xff]
  %v3015 = vld [vmem:[%s10 + $0x138] sm:$0xff]
  %v3016 = vld [vmem:[%s10 + $0x140] sm:$0xff]
  %v3017 = vld [vmem:[%s10 + $0x148] sm:$0xff]
  %v3018 = vld [vmem:[%s10 + $0x150] sm:$0xff]
  %v3019 = vld [vmem:[%s10 + $0x158] sm:$0xff]
  %v3020 = vld [vmem:[%s10 + $0x160] sm:$0xff]
  %v3021 = vld [vmem:[%s10 + $0x168] sm:$0xff]
  %v3022 = vld [vmem:[%s10 + $0x170] sm:$0xff]
  %v3023 = vld [vmem:[%s10 + $0x178] sm:$0xff]
  %v3024 = vld [vmem:[%s11] sm:$0x7]
  %v3026 = vlaneseq
  %v3027 = vshrl.u32 %v3026, 7
  %v3028 = vsub.s32 0, %v3027
  %v3029 = vrot.slane %v3024, %v3028
  %v3030 = vlaneseq
  %v3031 = vshrl.u32 %v3030, 7
  %v3032 = vsub.s32 1, %v3031
  %v3033 = vrot.slane %v3024, %v3032
  %v3034 = vlaneseq
  %v3035 = vshrl.u32 %v3034, 7
  %v3036 = vsub.s32 2, %v3035
  %v3037 = vrot.slane %v3024, %v3036
  %3041 = vmatprep.subr.mxu0 %v2977
  %3042 = vmatpush1.msra.mxu0 %v2976
  %3043 = vmatprep.subr.mxu0 %v2980
  %3044 = vmatpush1.msra.mxu0 %v2979
  %3045 = vmatprep.subr.mxu0 %v2983
  %3046 = vmatpush1.msra.mxu0 %v2982
  %3047 = vmatprep.subr.mxu0 %v2986
  %3048 = vmatpush1.msra.mxu0 %v2985
  %3049 = vmatprep.subr.mxu0 %v2989
  %3050 = vmatpush1.msra.mxu0 %v2988
  %3051 = vmatprep.subr.mxu0 %v2992
  %3052 = vmatpush1.msra.mxu0 %v2991
  %3053 = vmatprep.subr.mxu0 %v2995
  %3054 = vmatpush1.msra.mxu0 %v2994
  %3055 = vmatprep.subr.mxu0 %v2998
  %3056 = vmatpush1.msra.mxu0 %v2997
  %3057 = vmatprep.subr.mxu0 %v3001
  %3058 = vmatpush1.msra.mxu0 %v3000
  %3059 = vmatprep.subr.mxu0 %v3004
  %3060 = vmatpush1.msra.mxu0 %v3003
  %3061 = vmatprep.subr.mxu0 %v3007
  %3062 = vmatpush1.msra.mxu0 %v3006
  %3063 = vmatprep.subr.mxu0 %v3010
  %3064 = vmatpush1.msra.mxu0 %v3009
  %3065 = vmatprep.subr.mxu0 %v3013
  %3066 = vmatpush1.msra.mxu0 %v3012
  %3067 = vmatprep.subr.mxu0 %v3016
  %3068 = vmatpush1.msra.mxu0 %v3015
  %3069 = vmatprep.subr.mxu0 %v3019
  %3070 = vmatpush1.msra.mxu0 %v3018
  %3071 = vmatprep.subr.mxu0 %v3022
  %3072 = vmatpush1.msra.mxu0 %v3021
  %3073 = vmatprep.subr.mxu0 0.0
  %3074 = vmatpush1.msra.mxu0 0.0
  %3075 = vmatprep.subr.mxu0 0.0
  %3076 = vmatpush1.msra.mxu0 0.0
  %3077 = vmatprep.subr.mxu0 0.0
  %3078 = vmatpush1.msra.mxu0 0.0
  %3079 = vmatprep.subr.mxu0 0.0
  %3080 = vmatpush1.msra.mxu0 0.0
  %3081 = vmatprep.subr.mxu0 0.0
  %3082 = vmatpush1.msra.mxu0 0.0
  %3083 = vmatprep.subr.mxu0 0.0
  %3084 = vmatpush1.msra.mxu0 0.0
  %3085 = vmatprep.subr.mxu0 0.0
  %3086 = vmatpush1.msra.mxu0 0.0
  %3087 = vmatprep.subr.mxu0 0.0
  %3088 = vmatpush1.msra.mxu0 0.0
  %3089 = vmatprep.subr.mxu0 0.0
  %3090 = vmatpush1.msra.mxu0 0.0
  %3091 = vmatprep.subr.mxu0 0.0
  %3092 = vmatpush1.msra.mxu0 0.0
  %3093 = vmatprep.subr.mxu0 0.0
  %3094 = vmatpush1.msra.mxu0 0.0
  %3095 = vmatprep.subr.mxu0 0.0
  %3096 = vmatpush1.msra.mxu0 0.0
  %3097 = vmatprep.subr.mxu0 0.0
  %3098 = vmatpush1.msra.mxu0 0.0
  %3099 = vmatprep.subr.mxu0 0.0
  %3100 = vmatpush1.msra.mxu0 0.0
  %3101 = vmatprep.subr.mxu0 0.0
  %3102 = vmatpush1.msra.mxu0 0.0
  %3103 = vmatprep.subr.mxu0 0.0
  %3104 = vmatpush1.msra.mxu0 0.0
  %3105 = vmatprep.mubr.f32.mxu0 0.0
  %3106 = vmatmul.mubr.f32.gmra.mrb[0].mxu0 0.0
  %v3107 = vpop.f32.mrb[0].mxu0
  %v3108 = vadd.f32 %v3029, %v3107
  %v3109 = vpop.f32.mrb[0].mxu0
  %v3110 = vadd.f32 %v3033, %v3109
  %3111 = vdwg.mxu0
  %3112 = vmatprep.subr.mxu0 0.0
  %3113 = vmatpush1.msra.mxu0 %v2978
  %3114 = vmatprep.subr.mxu0 0.0
  %3115 = vmatpush1.msra.mxu0 %v2981
  %3116 = vmatprep.subr.mxu0 0.0
  %3117 = vmatpush1.msra.mxu0 %v2984
  %3118 = vmatprep.subr.mxu0 0.0
  %3119 = vmatpush1.msra.mxu0 %v2987
  %3120 = vmatprep.subr.mxu0 0.0
  %3121 = vmatpush1.msra.mxu0 %v2990
  %3122 = vmatprep.subr.mxu0 0.0
  %3123 = vmatpush1.msra.mxu0 %v2993
  %3124 = vmatprep.subr.mxu0 0.0
  %3125 = vmatpush1.msra.mxu0 %v2996
  %3126 = vmatprep.subr.mxu0 0.0
  %3127 = vmatpush1.msra.mxu0 %v2999
  %3128 = vmatprep.subr.mxu0 0.0
  %3129 = vmatpush1.msra.mxu0 %v3002
  %3130 = vmatprep.subr.mxu0 0.0
  %3131 = vmatpush1.msra.mxu0 %v3005
  %3132 = vmatprep.subr.mxu0 0.0
  %3133 = vmatpush1.msra.mxu0 %v3008
  %3134 = vmatprep.subr.mxu0 0.0
  %3135 = vmatpush1.msra.mxu0 %v3011
  %3136 = vmatprep.subr.mxu0 0.0
  %3137 = vmatpush1.msra.mxu0 %v3014
  %3138 = vmatprep.subr.mxu0 0.0
  %3139 = vmatpush1.msra.mxu0 %v3017
  %3140 = vmatprep.subr.mxu0 0.0
  %3141 = vmatpush1.msra.mxu0 %v3020
  %3142 = vmatprep.subr.mxu0 0.0
  %3143 = vmatpush1.msra.mxu0 %v3023
  %3144 = vmatprep.subr.mxu0 0.0
  %3145 = vmatpush1.msra.mxu0 0.0
  %3146 = vmatprep.subr.mxu0 0.0
  %3147 = vmatpush1.msra.mxu0 0.0
  %3148 = vmatprep.subr.mxu0 0.0
  %3149 = vmatpush1.msra.mxu0 0.0
  %3150 = vmatprep.subr.mxu0 0.0
  %3151 = vmatpush1.msra.mxu0 0.0
  %3152 = vmatprep.subr.mxu0 0.0
  %3153 = vmatpush1.msra.mxu0 0.0
  %3154 = vmatprep.subr.mxu0 0.0
  %3155 = vmatpush1.msra.mxu0 0.0
  %3156 = vmatprep.subr.mxu0 0.0
  %3157 = vmatpush1.msra.mxu0 0.0
  %3158 = vmatprep.subr.mxu0 0.0
  %3159 = vmatpush1.msra.mxu0 0.0
  %3160 = vmatprep.subr.mxu0 0.0
  %3161 = vmatpush1.msra.mxu0 0.0
  %3162 = vmatprep.subr.mxu0 0.0
  %3163 = vmatpush1.msra.mxu0 0.0
  %3164 = vmatprep.subr.mxu0 0.0
  %3165 = vmatpush1.msra.mxu0 0.0
  %3166 = vmatprep.subr.mxu0 0.0
  %3167 = vmatpush1.msra.mxu0 0.0
  %3168 = vmatprep.subr.mxu0 0.0
  %3169 = vmatpush1.msra.mxu0 0.0
  %3170 = vmatprep.subr.mxu0 0.0
  %3171 = vmatpush1.msra.mxu0 0.0
  %3172 = vmatprep.subr.mxu0 0.0
  %3173 = vmatpush1.msra.mxu0 0.0
  %3174 = vmatprep.subr.mxu0 0.0
  %3175 = vmatpush1.msra.mxu0 0.0
  %3176 = vmatprep.mubr.f32.mxu0 0.0
  %3177 = vmatmul.mubr.f32.gmra.mrb[0].mxu0 0.0
  %v3178 = vpop.f32.mrb[0].mxu0
  %v3179 = vadd.f32 %v3037, %v3178
  %v3180 = vpop.f32.mrb[0].mxu0
  %3181 = vdwg.mxu0
  %v3182 = vadd.f32 %v2972, %v3108
  %v3183 = vxor.u32 %v3182, 2147483648
  %v3184 = vmul.f32 %v3183, 1.442695
  %v3185 = vpow.pop %v3184
  %v3186 = vadd.f32 %v3185, 1.0
  %v3187 = vrcp.pop %v3186
  %v3188 = vmul.f32 1.0, %v3187
  %v3189 = vadd.f32 %v2973, %v3110
  %v3190 = vxor.u32 %v3189, 2147483648
  %v3191 = vmul.f32 %v3190, 1.442695
  %v3192 = vpow.pop %v3191
  %v3193 = vadd.f32 %v3192, 1.0
  %v3194 = vrcp.pop %v3193
  %v3195 = vmul.f32 1.0, %v3194
  %v3196 = vmul.f32 %v3188, %v3179
  %v3197 = vadd.f32 %v2974, %v3196
  %v3198 = vtanh.pop %v3197
  %v3199 = vsub.f32 1.0, %v3195
  %v3200 = vmul.f32 %v3199, %v3198
  %v3201 = vmul.f32 %v3195, 0.0
  %v3202 = vadd.f32 %v3200, %v3201
  %v3203 = vmul.f32 %v2975, %v3202
  %v3204 = vadd.f32 %v3203, 0.0
  %v3205 = vld [vmem:[#allocation3 + $0x18] sm:$0xff]
  %v3206 = vld [vmem:[#allocation3 + $0x20] sm:$0xff]
  %v3207 = vld [vmem:[#allocation3 + $0x28] sm:$0xff]
  %v3208 = vld [vmem:[#allocation3 + $0x90] sm:$0xff]
  %v3209 = vld [vmem:[#allocation3 + $0x98] sm:$0xff]
  %v3210 = vld [vmem:[#allocation3 + $0xa0] sm:$0xff]
  %v3211 = vsel %vm56, %v3205, %v3208
  %v3212 = vsel %vm57, %v3206, %v3209
  %v3213 = vsel %vm58, %v3207, %v3210
  %v3214 = vld [vmem:[%s629] sm:$0xff]
  %3215 = vmatprep.subr.mxu0 %v2977
  %3216 = vmatpush1.msra.mxu0 %v2976
  %3217 = vmatprep.subr.mxu0 %v2980
  %3218 = vmatpush1.msra.mxu0 %v2979
  %3219 = vmatprep.subr.mxu0 %v2983
  %3220 = vmatpush1.msra.mxu0 %v2982
  %3221 = vmatprep.subr.mxu0 %v2986
  %3222 = vmatpush1.msra.mxu0 %v2985
  %3223 = vmatprep.subr.mxu0 %v2989
  %3224 = vmatpush1.msra.mxu0 %v2988
  %3225 = vmatprep.subr.mxu0 %v2992
  %3226 = vmatpush1.msra.mxu0 %v2991
  %3227 = vmatprep.subr.mxu0 %v2995
  %3228 = vmatpush1.msra.mxu0 %v2994
  %3229 = vmatprep.subr.mxu0 %v2998
  %3230 = vmatpush1.msra.mxu0 %v2997
  %3231 = vmatprep.subr.mxu0 %v3001
  %3232 = vmatpush1.msra.mxu0 %v3000
  %3233 = vmatprep.subr.mxu0 %v3004
  %3234 = vmatpush1.msra.mxu0 %v3003
  %3235 = vmatprep.subr.mxu0 %v3007
  %3236 = vmatpush1.msra.mxu0 %v3006
  %3237 = vmatprep.subr.mxu0 %v3010
  %3238 = vmatpush1.msra.mxu0 %v3009
  %3239 = vmatprep.subr.mxu0 %v3013
  %3240 = vmatpush1.msra.mxu0 %v3012
  %3241 = vmatprep.subr.mxu0 %v3016
  %3242 = vmatpush1.msra.mxu0 %v3015
  %3243 = vmatprep.subr.mxu0 %v3019
  %3244 = vmatpush1.msra.mxu0 %v3018
  %3245 = vmatprep.subr.mxu0 %v3022
  %3246 = vmatpush1.msra.mxu0 %v3021
  %3247 = vmatprep.subr.mxu0 0.0
  %3248 = vmatpush1.msra.mxu0 0.0
  %3249 = vmatprep.subr.mxu0 0.0
  %3250 = vmatpush1.msra.mxu0 0.0
  %3251 = vmatprep.subr.mxu0 0.0
  %3252 = vmatpush1.msra.mxu0 0.0
  %3253 = vmatprep.subr.mxu0 0.0
  %3254 = vmatpush1.msra.mxu0 0.0
  %3255 = vmatprep.subr.mxu0 0.0
  %3256 = vmatpush1.msra.mxu0 0.0
  %3257 = vmatprep.subr.mxu0 0.0
  %3258 = vmatpush1.msra.mxu0 0.0
  %3259 = vmatprep.subr.mxu0 0.0
  %3260 = vmatpush1.msra.mxu0 0.0
  %3261 = vmatprep.subr.mxu0 0.0
  %3262 = vmatpush1.msra.mxu0 0.0
  %3263 = vmatprep.subr.mxu0 0.0
  %3264 = vmatpush1.msra.mxu0 0.0
  %3265 = vmatprep.subr.mxu0 0.0
  %3266 = vmatpush1.msra.mxu0 0.0
  %3267 = vmatprep.subr.mxu0 0.0
  %3268 = vmatpush1.msra.mxu0 0.0
  %3269 = vmatprep.subr.mxu0 0.0
  %3270 = vmatpush1.msra.mxu0 0.0
  %3271 = vmatprep.subr.mxu0 0.0
  %3272 = vmatpush1.msra.mxu0 0.0
  %3273 = vmatprep.subr.mxu0 0.0
  %3274 = vmatpush1.msra.mxu0 0.0
  %3275 = vmatprep.subr.mxu0 0.0
  %3276 = vmatpush1.msra.mxu0 0.0
  %3277 = vmatprep.subr.mxu0 0.0
  %3278 = vmatpush1.msra.mxu0 0.0
  %3279 = vmatprep.mubr.f32.mxu0 0.0
  %3280 = vmatmul.mubr.f32.gmra.mrb[0].mxu0 %v3204
  %v3281 = vpop.f32.mrb[0].mxu0
  %v3282 = vadd.f32 %v3029, %v3281
  %v3283 = vpop.f32.mrb[0].mxu0
  %v3284 = vadd.f32 %v3033, %v3283
  %3285 = vdwg.mxu0
  %3286 = vmatprep.subr.mxu0 0.0
  %3287 = vmatpush1.msra.mxu0 %v2978
  %3288 = vmatprep.subr.mxu0 0.0
  %3289 = vmatpush1.msra.mxu0 %v2981
  %3290 = vmatprep.subr.mxu0 0.0
  %3291 = vmatpush1.msra.mxu0 %v2984
  %3292 = vmatprep.subr.mxu0 0.0
  %3293 = vmatpush1.msra.mxu0 %v2987
  %3294 = vmatprep.subr.mxu0 0.0
  %3295 = vmatpush1.msra.mxu0 %v2990
  %3296 = vmatprep.subr.mxu0 0.0
  %3297 = vmatpush1.msra.mxu0 %v2993
  %3298 = vmatprep.subr.mxu0 0.0
  %3299 = vmatpush1.msra.mxu0 %v2996
  %3300 = vmatprep.subr.mxu0 0.0
  %3301 = vmatpush1.msra.mxu0 %v2999
  %3302 = vmatprep.subr.mxu0 0.0
  %3303 = vmatpush1.msra.mxu0 %v3002
  %3304 = vmatprep.subr.mxu0 0.0
  %3305 = vmatpush1.msra.mxu0 %v3005
  %3306 = vmatprep.subr.mxu0 0.0
  %3307 = vmatpush1.msra.mxu0 %v3008
  %3308 = vmatprep.subr.mxu0 0.0
  %3309 = vmatpush1.msra.mxu0 %v3011
  %3310 = vmatprep.subr.mxu0 0.0
  %3311 = vmatpush1.msra.mxu0 %v3014
  %3312 = vmatprep.subr.mxu0 0.0
  %3313 = vmatpush1.msra.mxu0 %v3017
  %3314 = vmatprep.subr.mxu0 0.0
  %3315 = vmatpush1.msra.mxu0 %v3020
  %3316 = vmatprep.subr.mxu0 0.0
  %3317 = vmatpush1.msra.mxu0 %v3023
  %3318 = vmatprep.subr.mxu0 0.0
  %3319 = vmatpush1.msra.mxu0 0.0
  %3320 = vmatprep.subr.mxu0 0.0
  %3321 = vmatpush1.msra.mxu0 0.0
  %3322 = vmatprep.subr.mxu0 0.0
  %3323 = vmatpush1.msra.mxu0 0.0
  %3324 = vmatprep.subr.mxu0 0.0
  %3325 = vmatpush1.msra.mxu0 0.0
  %3326 = vmatprep.subr.mxu0 0.0
  %3327 = vmatpush1.msra.mxu0 0.0
  %3328 = vmatprep.subr.mxu0 0.0
  %3329 = vmatpush1.msra.mxu0 0.0
  %3330 = vmatprep.subr.mxu0 0.0
  %3331 = vmatpush1.msra.mxu0 0.0
  %3332 = vmatprep.subr.mxu0 0.0
  %3333 = vmatpush1.msra.mxu0 0.0
  %3334 = vmatprep.subr.mxu0 0.0
  %3335 = vmatpush1.msra.mxu0 0.0
  %3336 = vmatprep.subr.mxu0 0.0
  %3337 = vmatpush1.msra.mxu0 0.0
  %3338 = vmatprep.subr.mxu0 0.0
  %3339 = vmatpush1.msra.mxu0 0.0
  %3340 = vmatprep.subr.mxu0 0.0
  %3341 = vmatpush1.msra.mxu0 0.0
  %3342 = vmatprep.subr.mxu0 0.0
  %3343 = vmatpush1.msra.mxu0 0.0
  %3344 = vmatprep.subr.mxu0 0.0
  %3345 = vmatpush1.msra.mxu0 0.0
  %3346 = vmatprep.subr.mxu0 0.0
  %3347 = vmatpush1.msra.mxu0 0.0
  %3348 = vmatprep.subr.mxu0 0.0
  %3349 = vmatpush1.msra.mxu0 0.0
  %3350 = vmatprep.mubr.f32.mxu0 0.0
  %3351 = vmatmul.mubr.f32.gmra.mrb[0].mxu0 %v3204
  %v3352 = vpop.f32.mrb[0].mxu0
  %v3353 = vadd.f32 %v3037, %v3352
  %v3354 = vpop.f32.mrb[0].mxu0
  %3355 = vdwg.mxu0
  %v3356 = vadd.f32 %v3211, %v3282
  %v3357 = vxor.u32 %v3356, 2147483648
  %v3358 = vmul.f32 %v3357, 1.442695
  %v3359 = vpow.pop %v3358
  %v3360 = vadd.f32 %v3359, 1.0
  %v3361 = vrcp.pop %v3360
  %v3362 = vmul.f32 1.0, %v3361
  %v3363 = vadd.f32 %v3212, %v3284
  %v3364 = vxor.u32 %v3363, 2147483648
  %v3365 = vmul.f32 %v3364, 1.442695
  %v3366 = vpow.pop %v3365
  %v3367 = vadd.f32 %v3366, 1.0
  %v3368 = vrcp.pop %v3367
  %v3369 = vmul.f32 1.0, %v3368
  %v3370 = vmul.f32 %v3362, %v3353
  %v3371 = vadd.f32 %v3213, %v3370
  %v3372 = vtanh.pop %v3371
  %v3373 = vsub.f32 1.0, %v3369
  %v3374 = vmul.f32 %v3373, %v3372
  %v3375 = vmul.f32 %v3369, %v3204
  %v3376 = vadd.f32 %v3374, %v3375
  %v3377 = vsub.f32 %v3376, %v3204
  %v3378 = vmul.f32 %v3214, %v3377
  %v3379 = vadd.f32 %v3204, %v3378
  %v3380 = vmul.f32 %v3214, %v3376
  %v3381 = vadd.f32 %v3204, %v3380
  %v3382 = vld [vmem:[#allocation3 + $0x30] sm:$0xff]
  %v3383 = vld [vmem:[#allocation3 + $0x38] sm:$0xff]
  %v3384 = vld [vmem:[#allocation3 + $0x40] sm:$0xff]
  %v3385 = vld [vmem:[#allocation3 + $0x78] sm:$0xff]
  %v3386 = vld [vmem:[#allocation3 + $0x80] sm:$0xff]
  %v3387 = vld [vmem:[#allocation3 + $0x88] sm:$0xff]
  %v3388 = vsel %vm56, %v3382, %v3385
  %v3389 = vsel %vm57, %v3383, %v3386
  %v3390 = vsel %vm58, %v3384, %v3387
  %v3391 = vld [vmem:[%s877] sm:$0xff]
  %3392 = vmatprep.subr.mxu0 %v2977
  %3393 = vmatpush1.msra.mxu0 %v2976
  %3394 = vmatprep.subr.mxu0 %v2980
  %3395 = vmatpush1.msra.mxu0 %v2979
  %3396 = vmatprep.subr.mxu0 %v2983
  %3397 = vmatpush1.msra.mxu0 %v2982
  %3398 = vmatprep.subr.mxu0 %v2986
  %3399 = vmatpush1.msra.mxu0 %v2985
  %3400 = vmatprep.subr.mxu0 %v2989
  %3401 = vmatpush1.msra.mxu0 %v2988
  %3402 = vmatprep.subr.mxu0 %v2992
  %3403 = vmatpush1.msra.mxu0 %v2991
  %3404 = vmatprep.subr.mxu0 %v2995
  %3405 = vmatpush1.msra.mxu0 %v2994
  %3406 = vmatprep.subr.mxu0 %v2998
  %3407 = vmatpush1.msra.mxu0 %v2997
  %3408 = vmatprep.subr.mxu0 %v3001
  %3409 = vmatpush1.msra.mxu0 %v3000
  %3410 = vmatprep.subr.mxu0 %v3004
  %3411 = vmatpush1.msra.mxu0 %v3003
  %3412 = vmatprep.subr.mxu0 %v3007
  %3413 = vmatpush1.msra.mxu0 %v3006
  %3414 = vmatprep.subr.mxu0 %v3010
  %3415 = vmatpush1.msra.mxu0 %v3009
  %3416 = vmatprep.subr.mxu0 %v3013
  %3417 = vmatpush1.msra.mxu0 %v3012
  %3418 = vmatprep.subr.mxu0 %v3016
  %3419 = vmatpush1.msra.mxu0 %v3015
  %3420 = vmatprep.subr.mxu0 %v3019
  %3421 = vmatpush1.msra.mxu0 %v3018
  %3422 = vmatprep.subr.mxu0 %v3022
  %3423 = vmatpush1.msra.mxu0 %v3021
  %3424 = vmatprep.subr.mxu0 0.0
  %3425 = vmatpush1.msra.mxu0 0.0
  %3426 = vmatprep.subr.mxu0 0.0
  %3427 = vmatpush1.msra.mxu0 0.0
  %3428 = vmatprep.subr.mxu0 0.0
  %3429 = vmatpush1.msra.mxu0 0.0
  %3430 = vmatprep.subr.mxu0 0.0
  %3431 = vmatpush1.msra.mxu0 0.0
  %3432 = vmatprep.subr.mxu0 0.0
  %3433 = vmatpush1.msra.mxu0 0.0
  %3434 = vmatprep.subr.mxu0 0.0
  %3435 = vmatpush1.msra.mxu0 0.0
  %3436 = vmatprep.subr.mxu0 0.0
  %3437 = vmatpush1.msra.mxu0 0.0
  %3438 = vmatprep.subr.mxu0 0.0
  %3439 = vmatpush1.msra.mxu0 0.0
  %3440 = vmatprep.subr.mxu0 0.0
  %3441 = vmatpush1.msra.mxu0 0.0
  %3442 = vmatprep.subr.mxu0 0.0
  %3443 = vmatpush1.msra.mxu0 0.0
  %3444 = vmatprep.subr.mxu0 0.0
  %3445 = vmatpush1.msra.mxu0 0.0
  %3446 = vmatprep.subr.mxu0 0.0
  %3447 = vmatpush1.msra.mxu0 0.0
  %3448 = vmatprep.subr.mxu0 0.0
  %3449 = vmatpush1.msra.mxu0 0.0
  %3450 = vmatprep.subr.mxu0 0.0
  %3451 = vmatpush1.msra.mxu0 0.0
  %3452 = vmatprep.subr.mxu0 0.0
  %3453 = vmatpush1.msra.mxu0 0.0
  %3454 = vmatprep.subr.mxu0 0.0
  %3455 = vmatpush1.msra.mxu0 0.0
  %3456 = vmatprep.mubr.f32.mxu0 0.0
  %3457 = vmatmul.mubr.f32.gmra.mrb[0].mxu0 %v3379
  %v3458 = vpop.f32.mrb[0].mxu0
  %v3459 = vadd.f32 %v3029, %v3458
  %v3460 = vpop.f32.mrb[0].mxu0
  %v3461 = vadd.f32 %v3033, %v3460
  %3462 = vdwg.mxu0
  %3463 = vmatprep.subr.mxu0 0.0
  %3464 = vmatpush1.msra.mxu0 %v2978
  %3465 = vmatprep.subr.mxu0 0.0
  %3466 = vmatpush1.msra.mxu0 %v2981
  %3467 = vmatprep.subr.mxu0 0.0
  %3468 = vmatpush1.msra.mxu0 %v2984
  %3469 = vmatprep.subr.mxu0 0.0
  %3470 = vmatpush1.msra.mxu0 %v2987
  %3471 = vmatprep.subr.mxu0 0.0
  %3472 = vmatpush1.msra.mxu0 %v2990
  %3473 = vmatprep.subr.mxu0 0.0
  %3474 = vmatpush1.msra.mxu0 %v2993
  %3475 = vmatprep.subr.mxu0 0.0
  %3476 = vmatpush1.msra.mxu0 %v2996
  %3477 = vmatprep.subr.mxu0 0.0
  %3478 = vmatpush1.msra.mxu0 %v2999
  %3479 = vmatprep.subr.mxu0 0.0
  %3480 = vmatpush1.msra.mxu0 %v3002
  %3481 = vmatprep.subr.mxu0 0.0
  %3482 = vmatpush1.msra.mxu0 %v3005
  %3483 = vmatprep.subr.mxu0 0.0
  %3484 = vmatpush1.msra.mxu0 %v3008
  %3485 = vmatprep.subr.mxu0 0.0
  %3486 = vmatpush1.msra.mxu0 %v3011
  %3487 = vmatprep.subr.mxu0 0.0
  %3488 = vmatpush1.msra.mxu0 %v3014
  %3489 = vmatprep.subr.mxu0 0.0
  %3490 = vmatpush1.msra.mxu0 %v3017
  %3491 = vmatprep.subr.mxu0 0.0
  %3492 = vmatpush1.msra.mxu0 %v3020
  %3493 = vmatprep.subr.mxu0 0.0
  %3494 = vmatpush1.msra.mxu0 %v3023
  %3495 = vmatprep.subr.mxu0 0.0
  %3496 = vmatpush1.msra.mxu0 0.0
  %3497 = vmatprep.subr.mxu0 0.0
  %3498 = vmatpush1.msra.mxu0 0.0
  %3499 = vmatprep.subr.mxu0 0.0
  %3500 = vmatpush1.msra.mxu0 0.0
  %3501 = vmatprep.subr.mxu0 0.0
  %3502 = vmatpush1.msra.mxu0 0.0
  %3503 = vmatprep.subr.mxu0 0.0
  %3504 = vmatpush1.msra.mxu0 0.0
  %3505 = vmatprep.subr.mxu0 0.0
  %3506 = vmatpush1.msra.mxu0 0.0
  %3507 = vmatprep.subr.mxu0 0.0
  %3508 = vmatpush1.msra.mxu0 0.0
  %3509 = vmatprep.subr.mxu0 0.0
  %3510 = vmatpush1.msra.mxu0 0.0
  %3511 = vmatprep.subr.mxu0 0.0
  %3512 = vmatpush1.msra.mxu0 0.0
  %3513 = vmatprep.subr.mxu0 0.0
  %3514 = vmatpush1.msra.mxu0 0.0
  %3515 = vmatprep.subr.mxu0 0.0
  %3516 = vmatpush1.msra.mxu0 0.0
  %3517 = vmatprep.subr.mxu0 0.0
  %3518 = vmatpush1.msra.mxu0 0.0
  %3519 = vmatprep.subr.mxu0 0.0
  %3520 = vmatpush1.msra.mxu0 0.0
  %3521 = vmatprep.subr.mxu0 0.0
  %3522 = vmatpush1.msra.mxu0 0.0
  %3523 = vmatprep.subr.mxu0 0.0
  %3524 = vmatpush1.msra.mxu0 0.0
  %3525 = vmatprep.subr.mxu0 0.0
  %3526 = vmatpush1.msra.mxu0 0.0
  %3527 = vmatprep.mubr.f32.mxu0 0.0
  %3528 = vmatmul.mubr.f32.gmra.mrb[0].mxu0 %v3379
  %v3529 = vpop.f32.mrb[0].mxu0
  %v3530 = vadd.f32 %v3037, %v3529
  %v3531 = vpop.f32.mrb[0].mxu0
  %3532 = vdwg.mxu0
  %v3533 = vadd.f32 %v3388, %v3459
  %v3534 = vxor.u32 %v3533, 2147483648
  %v3535 = vmul.f32 %v3534, 1.442695
  %v3536 = vpow.pop %v3535
  %v3537 = vadd.f32 %v3536, 1.0
  %v3538 = vrcp.pop %v3537
  %v3539 = vmul.f32 1.0, %v3538
  %v3540 = vadd.f32 %v3389, %v3461
  %v3541 = vxor.u32 %v3540, 2147483648
  %v3542 = vmul.f32 %v3541, 1.442695
  %v3543 = vpow.pop %v3542
  %v3544 = vadd.f32 %v3543, 1.0
  %v3545 = vrcp.pop %v3544
  %v3546 = vmul.f32 1.0, %v3545
  %v3547 = vmul.f32 %v3539, %v3530
  %v3548 = vadd.f32 %v3390, %v3547
  %v3549 = vtanh.pop %v3548
  %v3550 = vsub.f32 1.0, %v3546
  %v3551 = vmul.f32 %v3550, %v3549
  %v3552 = vmul.f32 %v3546, %v3379
  %v3553 = vadd.f32 %v3551, %v3552
  %v3554 = vsub.f32 %v3553, %v3379
  %v3555 = vmul.f32 %v3391, %v3554
  %v3556 = vadd.f32 %v3379, %v3555
  %v3557 = vmul.f32 %v3391, %v3553
  %v3558 = vadd.f32 %v3381, %v3557
  %v3559 = vld [vmem:[#allocation3 + $0x48] sm:$0xff]
  %v3560 = vld [vmem:[#allocation3 + $0x50] sm:$0xff]
  %v3561 = vld [vmem:[#allocation3 + $0x58] sm:$0xff]
  %v3562 = vld [vmem:[#allocation3 + $0x60] sm:$0xff]
  %v3563 = vld [vmem:[#allocation3 + $0x68] sm:$0xff]
  %v3564 = vld [vmem:[#allocation3 + $0x70] sm:$0xff]
  %v3565 = vsel %vm56, %v3559, %v3562
  %v3566 = vsel %vm57, %v3560, %v3563
  %v3567 = vsel %vm58, %v3561, %v3564
  %v3568 = vld [vmem:[%s1125] sm:$0xff]
  %3569 = vmatprep.subr.mxu0 %v2977
  %3570 = vmatpush1.msra.mxu0 %v2976
  %3571 = vmatprep.subr.mxu0 %v2980
  %3572 = vmatpush1.msra.mxu0 %v2979
  %3573 = vmatprep.subr.mxu0 %v2983
  %3574 = vmatpush1.msra.mxu0 %v2982
  %3575 = vmatprep.subr.mxu0 %v2986
  %3576 = vmatpush1.msra.mxu0 %v2985
  %3577 = vmatprep.subr.mxu0 %v2989
  %3578 = vmatpush1.msra.mxu0 %v2988
  %3579 = vmatprep.subr.mxu0 %v2992
  %3580 = vmatpush1.msra.mxu0 %v2991
  %3581 = vmatprep.subr.mxu0 %v2995
  %3582 = vmatpush1.msra.mxu0 %v2994
  %3583 = vmatprep.subr.mxu0 %v2998
  %3584 = vmatpush1.msra.mxu0 %v2997
  %3585 = vmatprep.subr.mxu0 %v3001
  %3586 = vmatpush1.msra.mxu0 %v3000
  %3587 = vmatprep.subr.mxu0 %v3004
  %3588 = vmatpush1.msra.mxu0 %v3003
  %3589 = vmatprep.subr.mxu0 %v3007
  %3590 = vmatpush1.msra.mxu0 %v3006
  %3591 = vmatprep.subr.mxu0 %v3010
  %3592 = vmatpush1.msra.mxu0 %v3009
  %3593 = vmatprep.subr.mxu0 %v3013
  %3594 = vmatpush1.msra.mxu0 %v3012
  %3595 = vmatprep.subr.mxu0 %v3016
  %3596 = vmatpush1.msra.mxu0 %v3015
  %3597 = vmatprep.subr.mxu0 %v3019
  %3598 = vmatpush1.msra.mxu0 %v3018
  %3599 = vmatprep.subr.mxu0 %v3022
  %3600 = vmatpush1.msra.mxu0 %v3021
  %3601 = vmatprep.subr.mxu0 0.0
  %3602 = vmatpush1.msra.mxu0 0.0
  %3603 = vmatprep.subr.mxu0 0.0
  %3604 = vmatpush1.msra.mxu0 0.0
  %3605 = vmatprep.subr.mxu0 0.0
  %3606 = vmatpush1.msra.mxu0 0.0
  %3607 = vmatprep.subr.mxu0 0.0
  %3608 = vmatpush1.msra.mxu0 0.0
  %3609 = vmatprep.subr.mxu0 0.0
  %3610 = vmatpush1.msra.mxu0 0.0
  %3611 = vmatprep.subr.mxu0 0.0
  %3612 = vmatpush1.msra.mxu0 0.0
  %3613 = vmatprep.subr.mxu0 0.0
  %3614 = vmatpush1.msra.mxu0 0.0
  %3615 = vmatprep.subr.mxu0 0.0
  %3616 = vmatpush1.msra.mxu0 0.0
  %3617 = vmatprep.subr.mxu0 0.0
  %3618 = vmatpush1.msra.mxu0 0.0
  %3619 = vmatprep.subr.mxu0 0.0
  %3620 = vmatpush1.msra.mxu0 0.0
  %3621 = vmatprep.subr.mxu0 0.0
  %3622 = vmatpush1.msra.mxu0 0.0
  %3623 = vmatprep.subr.mxu0 0.0
  %3624 = vmatpush1.msra.mxu0 0.0
  %3625 = vmatprep.subr.mxu0 0.0
  %3626 = vmatpush1.msra.mxu0 0.0
  %3627 = vmatprep.subr.mxu0 0.0
  %3628 = vmatpush1.msra.mxu0 0.0
  %3629 = vmatprep.subr.mxu0 0.0
  %3630 = vmatpush1.msra.mxu0 0.0
  %3631 = vmatprep.subr.mxu0 0.0
  %3632 = vmatpush1.msra.mxu0 0.0
  %3633 = vmatprep.mubr.f32.mxu0 0.0
  %3634 = vmatmul.mubr.f32.gmra.mrb[0].mxu0 %v3556
  %v3635 = vpop.f32.mrb[0].mxu0
  %v3636 = vadd.f32 %v3029, %v3635
  %v3637 = vpop.f32.mrb[0].mxu0
  %v3638 = vadd.f32 %v3033, %v3637
  %3639 = vdwg.mxu0
  %3640 = vmatprep.subr.mxu0 0.0
  %3641 = vmatpush1.msra.mxu0 %v2978
  %3642 = vmatprep.subr.mxu0 0.0
  %3643 = vmatpush1.msra.mxu0 %v2981
  %3644 = vmatprep.subr.mxu0 0.0
  %3645 = vmatpush1.msra.mxu0 %v2984
  %3646 = vmatprep.subr.mxu0 0.0
  %3647 = vmatpush1.msra.mxu0 %v2987
  %3648 = vmatprep.subr.mxu0 0.0
  %3649 = vmatpush1.msra.mxu0 %v2990
  %3650 = vmatprep.subr.mxu0 0.0
  %3651 = vmatpush1.msra.mxu0 %v2993
  %3652 = vmatprep.subr.mxu0 0.0
  %3653 = vmatpush1.msra.mxu0 %v2996
  %3654 = vmatprep.subr.mxu0 0.0
  %3655 = vmatpush1.msra.mxu0 %v2999
  %3656 = vmatprep.subr.mxu0 0.0
  %3657 = vmatpush1.msra.mxu0 %v3002
  %3658 = vmatprep.subr.mxu0 0.0
  %3659 = vmatpush1.msra.mxu0 %v3005
  %3660 = vmatprep.subr.mxu0 0.0
  %3661 = vmatpush1.msra.mxu0 %v3008
  %3662 = vmatprep.subr.mxu0 0.0
  %3663 = vmatpush1.msra.mxu0 %v3011
  %3664 = vmatprep.subr.mxu0 0.0
  %3665 = vmatpush1.msra.mxu0 %v3014
  %3666 = vmatprep.subr.mxu0 0.0
  %3667 = vmatpush1.msra.mxu0 %v3017
  %3668 = vmatprep.subr.mxu0 0.0
  %3669 = vmatpush1.msra.mxu0 %v3020
  %3670 = vmatprep.subr.mxu0 0.0
  %3671 = vmatpush1.msra.mxu0 %v3023
  %3672 = vmatprep.subr.mxu0 0.0
  %3673 = vmatpush1.msra.mxu0 0.0
  %3674 = vmatprep.subr.mxu0 0.0
  %3675 = vmatpush1.msra.mxu0 0.0
  %3676 = vmatprep.subr.mxu0 0.0
  %3677 = vmatpush1.msra.mxu0 0.0
  %3678 = vmatprep.subr.mxu0 0.0
  %3679 = vmatpush1.msra.mxu0 0.0
  %3680 = vmatprep.subr.mxu0 0.0
  %3681 = vmatpush1.msra.mxu0 0.0
  %3682 = vmatprep.subr.mxu0 0.0
  %3683 = vmatpush1.msra.mxu0 0.0
  %3684 = vmatprep.subr.mxu0 0.0
  %3685 = vmatpush1.msra.mxu0 0.0
  %3686 = vmatprep.subr.mxu0 0.0
  %3687 = vmatpush1.msra.mxu0 0.0
  %3688 = vmatprep.subr.mxu0 0.0
  %3689 = vmatpush1.msra.mxu0 0.0
  %3690 = vmatprep.subr.mxu0 0.0
  %3691 = vmatpush1.msra.mxu0 0.0
  %3692 = vmatprep.subr.mxu0 0.0
  %3693 = vmatpush1.msra.mxu0 0.0
  %3694 = vmatprep.subr.mxu0 0.0
  %3695 = vmatpush1.msra.mxu0 0.0
  %3696 = vmatprep.subr.mxu0 0.0
  %3697 = vmatpush1.msra.mxu0 0.0
  %3698 = vmatprep.subr.mxu0 0.0
  %3699 = vmatpush1.msra.mxu0 0.0
  %3700 = vmatprep.subr.mxu0 0.0
  %3701 = vmatpush1.msra.mxu0 0.0
  %3702 = vmatprep.subr.mxu0 0.0
  %3703 = vmatpush1.msra.mxu0 0.0
  %3704 = vmatprep.mubr.f32.mxu0 0.0
  %3705 = vmatmul.mubr.f32.gmra.mrb[0].mxu0 %v3556
  %v3706 = vpop.f32.mrb[0].mxu0
  %v3707 = vadd.f32 %v3037, %v3706
  %v3708 = vpop.f32.mrb[0].mxu0
  %3709 = vdwg.mxu0
  %v3710 = vadd.f32 %v3565, %v3636
  %v3711 = vxor.u32 %v3710, 2147483648
  %v3712 = vmul.f32 %v3711, 1.442695
  %v3713 = vpow.pop %v3712
  %v3714 = vadd.f32 %v3713, 1.0
  %v3715 = vrcp.pop %v3714
  %v3716 = vmul.f32 1.0, %v3715
  %v3717 = vadd.f32 %v3566, %v3638
  %v3718 = vxor.u32 %v3717, 2147483648
  %v3719 = vmul.f32 %v3718, 1.442695
  %v3720 = vpow.pop %v3719
  %v3721 = vadd.f32 %v3720, 1.0
  %v3722 = vrcp.pop %v3721
  %v3723 = vmul.f32 1.0, %v3722
  %v3724 = vmul.f32 %v3716, %v3707
  %v3725 = vadd.f32 %v3567, %v3724
  %v3726 = vtanh.pop %v3725
  %v3727 = vsub.f32 1.0, %v3723
  %v3728 = vmul.f32 %v3727, %v3726
  %v3729 = vmul.f32 %v3723, %v3556
  %v3730 = vadd.f32 %v3728, %v3729
  %v3731 = vsub.f32 %v3730, %v3556
  %v3732 = vmul.f32 %v3568, %v3731
  %v3733 = vadd.f32 %v3556, %v3732
  %v3734 = vmul.f32 %v3568, %v3730
  %v3735 = vadd.f32 %v3558, %v3734
  %v3736 = vsel %vm56, %v3562, %v3559
  %v3737 = vsel %vm57, %v3563, %v3560
  %v3738 = vsel %vm58, %v3564, %v3561
  %v3739 = vld [vmem:[%s1373] sm:$0xff]
  %3740 = vmatprep.subr.mxu0 %v2977
  %3741 = vmatpush1.msra.mxu0 %v2976
  %3742 = vmatprep.subr.mxu0 %v2980
  %3743 = vmatpush1.msra.mxu0 %v2979
  %3744 = vmatprep.subr.mxu0 %v2983
  %3745 = vmatpush1.msra.mxu0 %v2982
  %3746 = vmatprep.subr.mxu0 %v2986
  %3747 = vmatpush1.msra.mxu0 %v2985
  %3748 = vmatprep.subr.mxu0 %v2989
  %3749 = vmatpush1.msra.mxu0 %v2988
  %3750 = vmatprep.subr.mxu0 %v2992
  %3751 = vmatpush1.msra.mxu0 %v2991
  %3752 = vmatprep.subr.mxu0 %v2995
  %3753 = vmatpush1.msra.mxu0 %v2994
  %3754 = vmatprep.subr.mxu0 %v2998
  %3755 = vmatpush1.msra.mxu0 %v2997
  %3756 = vmatprep.subr.mxu0 %v3001
  %3757 = vmatpush1.msra.mxu0 %v3000
  %3758 = vmatprep.subr.mxu0 %v3004
  %3759 = vmatpush1.msra.mxu0 %v3003
  %3760 = vmatprep.subr.mxu0 %v3007
  %3761 = vmatpush1.msra.mxu0 %v3006
  %3762 = vmatprep.subr.mxu0 %v3010
  %3763 = vmatpush1.msra.mxu0 %v3009
  %3764 = vmatprep.subr.mxu0 %v3013
  %3765 = vmatpush1.msra.mxu0 %v3012
  %3766 = vmatprep.subr.mxu0 %v3016
  %3767 = vmatpush1.msra.mxu0 %v3015
  %3768 = vmatprep.subr.mxu0 %v3019
  %3769 = vmatpush1.msra.mxu0 %v3018
  %3770 = vmatprep.subr.mxu0 %v3022
  %3771 = vmatpush1.msra.mxu0 %v3021
  %3772 = vmatprep.subr.mxu0 0.0
  %3773 = vmatpush1.msra.mxu0 0.0
  %3774 = vmatprep.subr.mxu0 0.0
  %3775 = vmatpush1.msra.mxu0 0.0
  %3776 = vmatprep.subr.mxu0 0.0
  %3777 = vmatpush1.msra.mxu0 0.0
  %3778 = vmatprep.subr.mxu0 0.0
  %3779 = vmatpush1.msra.mxu0 0.0
  %3780 = vmatprep.subr.mxu0 0.0
  %3781 = vmatpush1.msra.mxu0 0.0
  %3782 = vmatprep.subr.mxu0 0.0
  %3783 = vmatpush1.msra.mxu0 0.0
  %3784 = vmatprep.subr.mxu0 0.0
  %3785 = vmatpush1.msra.mxu0 0.0
  %3786 = vmatprep.subr.mxu0 0.0
  %3787 = vmatpush1.msra.mxu0 0.0
  %3788 = vmatprep.subr.mxu0 0.0
  %3789 = vmatpush1.msra.mxu0 0.0
  %3790 = vmatprep.subr.mxu0 0.0
  %3791 = vmatpush1.msra.mxu0 0.0
  %3792 = vmatprep.subr.mxu0 0.0
  %3793 = vmatpush1.msra.mxu0 0.0
  %3794 = vmatprep.subr.mxu0 0.0
  %3795 = vmatpush1.msra.mxu0 0.0
  %3796 = vmatprep.subr.mxu0 0.0
  %3797 = vmatpush1.msra.mxu0 0.0
  %3798 = vmatprep.subr.mxu0 0.0
  %3799 = vmatpush1.msra.mxu0 0.0
  %3800 = vmatprep.subr.mxu0 0.0
  %3801 = vmatpush1.msra.mxu0 0.0
  %3802 = vmatprep.subr.mxu0 0.0
  %3803 = vmatpush1.msra.mxu0 0.0
  %3804 = vmatprep.mubr.f32.mxu0 0.0
  %3805 = vmatmul.mubr.f32.gmra.mrb[0].mxu0 %v3733
  %v3806 = vpop.f32.mrb[0].mxu0
  %v3807 = vadd.f32 %v3029, %v3806
  %v3808 = vpop.f32.mrb[0].mxu0
  %v3809 = vadd.f32 %v3033, %v3808
  %3810 = vdwg.mxu0
  %3811 = vmatprep.subr.mxu0 0.0
  %3812 = vmatpush1.msra.mxu0 %v2978
  %3813 = vmatprep.subr.mxu0 0.0
  %3814 = vmatpush1.msra.mxu0 %v2981
  %3815 = vmatprep.subr.mxu0 0.0
  %3816 = vmatpush1.msra.mxu0 %v2984
  %3817 = vmatprep.subr.mxu0 0.0
  %3818 = vmatpush1.msra.mxu0 %v2987
  %3819 = vmatprep.subr.mxu0 0.0
  %3820 = vmatpush1.msra.mxu0 %v2990
  %3821 = vmatprep.subr.mxu0 0.0
  %3822 = vmatpush1.msra.mxu0 %v2993
  %3823 = vmatprep.subr.mxu0 0.0
  %3824 = vmatpush1.msra.mxu0 %v2996
  %3825 = vmatprep.subr.mxu0 0.0
  %3826 = vmatpush1.msra.mxu0 %v2999
  %3827 = vmatprep.subr.mxu0 0.0
  %3828 = vmatpush1.msra.mxu0 %v3002
  %3829 = vmatprep.subr.mxu0 0.0
  %3830 = vmatpush1.msra.mxu0 %v3005
  %3831 = vmatprep.subr.mxu0 0.0
  %3832 = vmatpush1.msra.mxu0 %v3008
  %3833 = vmatprep.subr.mxu0 0.0
  %3834 = vmatpush1.msra.mxu0 %v3011
  %3835 = vmatprep.subr.mxu0 0.0
  %3836 = vmatpush1.msra.mxu0 %v3014
  %3837 = vmatprep.subr.mxu0 0.0
  %3838 = vmatpush1.msra.mxu0 %v3017
  %3839 = vmatprep.subr.mxu0 0.0
  %3840 = vmatpush1.msra.mxu0 %v3020
  %3841 = vmatprep.subr.mxu0 0.0
  %3842 = vmatpush1.msra.mxu0 %v3023
  %3843 = vmatprep.subr.mxu0 0.0
  %3844 = vmatpush1.msra.mxu0 0.0
  %3845 = vmatprep.subr.mxu0 0.0
  %3846 = vmatpush1.msra.mxu0 0.0
  %3847 = vmatprep.subr.mxu0 0.0
  %3848 = vmatpush1.msra.mxu0 0.0
  %3849 = vmatprep.subr.mxu0 0.0
  %3850 = vmatpush1.msra.mxu0 0.0
  %3851 = vmatprep.subr.mxu0 0.0
  %3852 = vmatpush1.msra.mxu0 0.0
  %3853 = vmatprep.subr.mxu0 0.0
  %3854 = vmatpush1.msra.mxu0 0.0
  %3855 = vmatprep.subr.mxu0 0.0
  %3856 = vmatpush1.msra.mxu0 0.0
  %3857 = vmatprep.subr.mxu0 0.0
  %3858 = vmatpush1.msra.mxu0 0.0
  %3859 = vmatprep.subr.mxu0 0.0
  %3860 = vmatpush1.msra.mxu0 0.0
  %3861 = vmatprep.subr.mxu0 0.0
  %3862 = vmatpush1.msra.mxu0 0.0
  %3863 = vmatprep.subr.mxu0 0.0
  %3864 = vmatpush1.msra.mxu0 0.0
  %3865 = vmatprep.subr.mxu0 0.0
  %3866 = vmatpush1.msra.mxu0 0.0
  %3867 = vmatprep.subr.mxu0 0.0
  %3868 = vmatpush1.msra.mxu0 0.0
  %3869 = vmatprep.subr.mxu0 0.0
  %3870 = vmatpush1.msra.mxu0 0.0
  %3871 = vmatprep.subr.mxu0 0.0
  %3872 = vmatpush1.msra.mxu0 0.0
  %3873 = vmatprep.subr.mxu0 0.0
  %3874 = vmatpush1.msra.mxu0 0.0
  %3875 = vmatprep.mubr.f32.mxu0 0.0
  %3876 = vmatmul.mubr.f32.gmra.mrb[0].mxu0 %v3733
  %v3877 = vpop.f32.mrb[0].mxu0
  %v3878 = vadd.f32 %v3037, %v3877
  %v3879 = vpop.f32.mrb[0].mxu0
  %3880 = vdwg.mxu0
  %v3881 = vadd.f32 %v3736, %v3807
  %v3882 = vxor.u32 %v3881, 2147483648
  %v3883 = vmul.f32 %v3882, 1.442695
  %v3884 = vpow.pop %v3883
  %v3885 = vadd.f32 %v3884, 1.0
  %v3886 = vrcp.pop %v3885
  %v3887 = vmul.f32 1.0, %v3886
  %v3888 = vadd.f32 %v3737, %v3809
  %v3889 = vxor.u32 %v3888, 2147483648
  %v3890 = vmul.f32 %v3889, 1.442695
  %v3891 = vpow.pop %v3890
  %v3892 = vadd.f32 %v3891, 1.0
  %v3893 = vrcp.pop %v3892
  %v3894 = vmul.f32 1.0, %v3893
  %v3895 = vmul.f32 %v3887, %v3878
  %v3896 = vadd.f32 %v3738, %v3895
  %v3897 = vtanh.pop %v3896
  %v3898 = vsub.f32 1.0, %v3894
  %v3899 = vmul.f32 %v3898, %v3897
  %v3900 = vmul.f32 %v3894, %v3733
  %v3901 = vadd.f32 %v3899, %v3900
  %v3902 = vsub.f32 %v3901, %v3733
  %v3903 = vmul.f32 %v3739, %v3902
  %v3904 = vadd.f32 %v3733, %v3903
  %v3905 = vmul.f32 %v3739, %v3901
  %v3906 = vadd.f32 %v3735, %v3905
  %v3907 = vsel %vm56, %v3385, %v3382
  %v3908 = vsel %vm57, %v3386, %v3383
  %v3909 = vsel %vm58, %v3387, %v3384
  %v3910 = vld [vmem:[%s1621] sm:$0xff]
  %3911 = vmatprep.subr.mxu0 %v2977
  %3912 = vmatpush1.msra.mxu0 %v2976
  %3913 = vmatprep.subr.mxu0 %v2980
  %3914 = vmatpush1.msra.mxu0 %v2979
  %3915 = vmatprep.subr.mxu0 %v2983
  %3916 = vmatpush1.msra.mxu0 %v2982
  %3917 = vmatprep.subr.mxu0 %v2986
  %3918 = vmatpush1.msra.mxu0 %v2985
  %3919 = vmatprep.subr.mxu0 %v2989
  %3920 = vmatpush1.msra.mxu0 %v2988
  %3921 = vmatprep.subr.mxu0 %v2992
  %3922 = vmatpush1.msra.mxu0 %v2991
  %3923 = vmatprep.subr.mxu0 %v2995
  %3924 = vmatpush1.msra.mxu0 %v2994
  %3925 = vmatprep.subr.mxu0 %v2998
  %3926 = vmatpush1.msra.mxu0 %v2997
  %3927 = vmatprep.subr.mxu0 %v3001
  %3928 = vmatpush1.msra.mxu0 %v3000
  %3929 = vmatprep.subr.mxu0 %v3004
  %3930 = vmatpush1.msra.mxu0 %v3003
  %3931 = vmatprep.subr.mxu0 %v3007
  %3932 = vmatpush1.msra.mxu0 %v3006
  %3933 = vmatprep.subr.mxu0 %v3010
  %3934 = vmatpush1.msra.mxu0 %v3009
  %3935 = vmatprep.subr.mxu0 %v3013
  %3936 = vmatpush1.msra.mxu0 %v3012
  %3937 = vmatprep.subr.mxu0 %v3016
  %3938 = vmatpush1.msra.mxu0 %v3015
  %3939 = vmatprep.subr.mxu0 %v3019
  %3940 = vmatpush1.msra.mxu0 %v3018
  %3941 = vmatprep.subr.mxu0 %v3022
  %3942 = vmatpush1.msra.mxu0 %v3021
  %3943 = vmatprep.subr.mxu0 0.0
  %3944 = vmatpush1.msra.mxu0 0.0
  %3945 = vmatprep.subr.mxu0 0.0
  %3946 = vmatpush1.msra.mxu0 0.0
  %3947 = vmatprep.subr.mxu0 0.0
  %3948 = vmatpush1.msra.mxu0 0.0
  %3949 = vmatprep.subr.mxu0 0.0
  %3950 = vmatpush1.msra.mxu0 0.0
  %3951 = vmatprep.subr.mxu0 0.0
  %3952 = vmatpush1.msra.mxu0 0.0
  %3953 = vmatprep.subr.mxu0 0.0
  %3954 = vmatpush1.msra.mxu0 0.0
  %3955 = vmatprep.subr.mxu0 0.0
  %3956 = vmatpush1.msra.mxu0 0.0
  %3957 = vmatprep.subr.mxu0 0.0
  %3958 = vmatpush1.msra.mxu0 0.0
  %3959 = vmatprep.subr.mxu0 0.0
  %3960 = vmatpush1.msra.mxu0 0.0
  %3961 = vmatprep.subr.mxu0 0.0
  %3962 = vmatpush1.msra.mxu0 0.0
  %3963 = vmatprep.subr.mxu0 0.0
  %3964 = vmatpush1.msra.mxu0 0.0
  %3965 = vmatprep.subr.mxu0 0.0
  %3966 = vmatpush1.msra.mxu0 0.0
  %3967 = vmatprep.subr.mxu0 0.0
  %3968 = vmatpush1.msra.mxu0 0.0
  %3969 = vmatprep.subr.mxu0 0.0
  %3970 = vmatpush1.msra.mxu0 0.0
  %3971 = vmatprep.subr.mxu0 0.0
  %3972 = vmatpush1.msra.mxu0 0.0
  %3973 = vmatprep.subr.mxu0 0.0
  %3974 = vmatpush1.msra.mxu0 0.0
  %3975 = vmatprep.mubr.f32.mxu0 0.0
  %3976 = vmatmul.mubr.f32.gmra.mrb[0].mxu0 %v3904
  %v3977 = vpop.f32.mrb[0].mxu0
  %v3978 = vadd.f32 %v3029, %v3977
  %v3979 = vpop.f32.mrb[0].mxu0
  %v3980 = vadd.f32 %v3033, %v3979
  %3981 = vdwg.mxu0
  %3982 = vmatprep.subr.mxu0 0.0
  %3983 = vmatpush1.msra.mxu0 %v2978
  %3984 = vmatprep.subr.mxu0 0.0
  %3985 = vmatpush1.msra.mxu0 %v2981
  %3986 = vmatprep.subr.mxu0 0.0
  %3987 = vmatpush1.msra.mxu0 %v2984
  %3988 = vmatprep.subr.mxu0 0.0
  %3989 = vmatpush1.msra.mxu0 %v2987
  %3990 = vmatprep.subr.mxu0 0.0
  %3991 = vmatpush1.msra.mxu0 %v2990
  %3992 = vmatprep.subr.mxu0 0.0
  %3993 = vmatpush1.msra.mxu0 %v2993
  %3994 = vmatprep.subr.mxu0 0.0
  %3995 = vmatpush1.msra.mxu0 %v2996
  %3996 = vmatprep.subr.mxu0 0.0
  %3997 = vmatpush1.msra.mxu0 %v2999
  %3998 = vmatprep.subr.mxu0 0.0
  %3999 = vmatpush1.msra.mxu0 %v3002
  %4000 = vmatprep.subr.mxu0 0.0
  %4001 = vmatpush1.msra.mxu0 %v3005
  %4002 = vmatprep.subr.mxu0 0.0
  %4003 = vmatpush1.msra.mxu0 %v3008
  %4004 = vmatprep.subr.mxu0 0.0
  %4005 = vmatpush1.msra.mxu0 %v3011
  %4006 = vmatprep.subr.mxu0 0.0
  %4007 = vmatpush1.msra.mxu0 %v3014
  %4008 = vmatprep.subr.mxu0 0.0
  %4009 = vmatpush1.msra.mxu0 %v3017
  %4010 = vmatprep.subr.mxu0 0.0
  %4011 = vmatpush1.msra.mxu0 %v3020
  %4012 = vmatprep.subr.mxu0 0.0
  %4013 = vmatpush1.msra.mxu0 %v3023
  %4014 = vmatprep.subr.mxu0 0.0
  %4015 = vmatpush1.msra.mxu0 0.0
  %4016 = vmatprep.subr.mxu0 0.0
  %4017 = vmatpush1.msra.mxu0 0.0
  %4018 = vmatprep.subr.mxu0 0.0
  %4019 = vmatpush1.msra.mxu0 0.0
  %4020 = vmatprep.subr.mxu0 0.0
  %4021 = vmatpush1.msra.mxu0 0.0
  %4022 = vmatprep.subr.mxu0 0.0
  %4023 = vmatpush1.msra.mxu0 0.0
  %4024 = vmatprep.subr.mxu0 0.0
  %4025 = vmatpush1.msra.mxu0 0.0
  %4026 = vmatprep.subr.mxu0 0.0
  %4027 = vmatpush1.msra.mxu0 0.0
  %4028 = vmatprep.subr.mxu0 0.0
  %4029 = vmatpush1.msra.mxu0 0.0
  %4030 = vmatprep.subr.mxu0 0.0
  %4031 = vmatpush1.msra.mxu0 0.0
  %4032 = vmatprep.subr.mxu0 0.0
  %4033 = vmatpush1.msra.mxu0 0.0
  %4034 = vmatprep.subr.mxu0 0.0
  %4035 = vmatpush1.msra.mxu0 0.0
  %4036 = vmatprep.subr.mxu0 0.0
  %4037 = vmatpush1.msra.mxu0 0.0
  %4038 = vmatprep.subr.mxu0 0.0
  %4039 = vmatpush1.msra.mxu0 0.0
  %4040 = vmatprep.subr.mxu0 0.0
  %4041 = vmatpush1.msra.mxu0 0.0
  %4042 = vmatprep.subr.mxu0 0.0
  %4043 = vmatpush1.msra.mxu0 0.0
  %4044 = vmatprep.subr.mxu0 0.0
  %4045 = vmatpush1.msra.mxu0 0.0
  %4046 = vmatprep.mubr.f32.mxu0 0.0
  %4047 = vmatmul.mubr.f32.gmra.mrb[0].mxu0 %v3904
  %v4048 = vpop.f32.mrb[0].mxu0
  %v4049 = vadd.f32 %v3037, %v4048
  %v4050 = vpop.f32.mrb[0].mxu0
  %4051 = vdwg.mxu0
  %v4052 = vadd.f32 %v3907, %v3978
  %v4053 = vxor.u32 %v4052, 2147483648
  %v4054 = vmul.f32 %v4053, 1.442695
  %v4055 = vpow.pop %v4054
  %v4056 = vadd.f32 %v4055, 1.0
  %v4057 = vrcp.pop %v4056
  %v4058 = vmul.f32 1.0, %v4057
  %v4059 = vadd.f32 %v3908, %v3980
  %v4060 = vxor.u32 %v4059, 2147483648
  %v4061 = vmul.f32 %v4060, 1.442695
  %v4062 = vpow.pop %v4061
  %v4063 = vadd.f32 %v4062, 1.0
  %v4064 = vrcp.pop %v4063
  %v4065 = vmul.f32 1.0, %v4064
  %v4066 = vmul.f32 %v4058, %v4049
  %v4067 = vadd.f32 %v3909, %v4066
  %v4068 = vtanh.pop %v4067
  %v4069 = vsub.f32 1.0, %v4065
  %v4070 = vmul.f32 %v4069, %v4068
  %v4071 = vmul.f32 %v4065, %v3904
  %v4072 = vadd.f32 %v4070, %v4071
  %v4073 = vsub.f32 %v4072, %v3904
  %v4074 = vmul.f32 %v3910, %v4073
  %v4075 = vadd.f32 %v3904, %v4074
  %v4076 = vmul.f32 %v3910, %v4072
  %v4077 = vadd.f32 %v3906, %v4076
  %v4078 = vsel %vm56, %v3208, %v3205
  %v4079 = vsel %vm57, %v3209, %v3206
  %v4080 = vsel %vm58, %v3210, %v3207
  %v4081 = vld [vmem:[%s1869] sm:$0xff]
  %4082 = vmatprep.subr.mxu0 %v2977
  %4083 = vmatpush1.msra.mxu0 %v2976
  %4084 = vmatprep.subr.mxu0 %v2980
  %4085 = vmatpush1.msra.mxu0 %v2979
  %4086 = vmatprep.subr.mxu0 %v2983
  %4087 = vmatpush1.msra.mxu0 %v2982
  %4088 = vmatprep.subr.mxu0 %v2986
  %4089 = vmatpush1.msra.mxu0 %v2985
  %4090 = vmatprep.subr.mxu0 %v2989
  %4091 = vmatpush1.msra.mxu0 %v2988
  %4092 = vmatprep.subr.mxu0 %v2992
  %4093 = vmatpush1.msra.mxu0 %v2991
  %4094 = vmatprep.subr.mxu0 %v2995
  %4095 = vmatpush1.msra.mxu0 %v2994
  %4096 = vmatprep.subr.mxu0 %v2998
  %4097 = vmatpush1.msra.mxu0 %v2997
  %4098 = vmatprep.subr.mxu0 %v3001
  %4099 = vmatpush1.msra.mxu0 %v3000
  %4100 = vmatprep.subr.mxu0 %v3004
  %4101 = vmatpush1.msra.mxu0 %v3003
  %4102 = vmatprep.subr.mxu0 %v3007
  %4103 = vmatpush1.msra.mxu0 %v3006
  %4104 = vmatprep.subr.mxu0 %v3010
  %4105 = vmatpush1.msra.mxu0 %v3009
  %4106 = vmatprep.subr.mxu0 %v3013
  %4107 = vmatpush1.msra.mxu0 %v3012
  %4108 = vmatprep.subr.mxu0 %v3016
  %4109 = vmatpush1.msra.mxu0 %v3015
  %4110 = vmatprep.subr.mxu0 %v3019
  %4111 = vmatpush1.msra.mxu0 %v3018
  %4112 = vmatprep.subr.mxu0 %v3022
  %4113 = vmatpush1.msra.mxu0 %v3021
  %4114 = vmatprep.subr.mxu0 0.0
  %4115 = vmatpush1.msra.mxu0 0.0
  %4116 = vmatprep.subr.mxu0 0.0
  %4117 = vmatpush1.msra.mxu0 0.0
  %4118 = vmatprep.subr.mxu0 0.0
  %4119 = vmatpush1.msra.mxu0 0.0
  %4120 = vmatprep.subr.mxu0 0.0
  %4121 = vmatpush1.msra.mxu0 0.0
  %4122 = vmatprep.subr.mxu0 0.0
  %4123 = vmatpush1.msra.mxu0 0.0
  %4124 = vmatprep.subr.mxu0 0.0
  %4125 = vmatpush1.msra.mxu0 0.0
  %4126 = vmatprep.subr.mxu0 0.0
  %4127 = vmatpush1.msra.mxu0 0.0
  %4128 = vmatprep.subr.mxu0 0.0
  %4129 = vmatpush1.msra.mxu0 0.0
  %4130 = vmatprep.subr.mxu0 0.0
  %4131 = vmatpush1.msra.mxu0 0.0
  %4132 = vmatprep.subr.mxu0 0.0
  %4133 = vmatpush1.msra.mxu0 0.0
  %4134 = vmatprep.subr.mxu0 0.0
  %4135 = vmatpush1.msra.mxu0 0.0
  %4136 = vmatprep.subr.mxu0 0.0
  %4137 = vmatpush1.msra.mxu0 0.0
  %4138 = vmatprep.subr.mxu0 0.0
  %4139 = vmatpush1.msra.mxu0 0.0
  %4140 = vmatprep.subr.mxu0 0.0
  %4141 = vmatpush1.msra.mxu0 0.0
  %4142 = vmatprep.subr.mxu0 0.0
  %4143 = vmatpush1.msra.mxu0 0.0
  %4144 = vmatprep.subr.mxu0 0.0
  %4145 = vmatpush1.msra.mxu0 0.0
  %4146 = vmatprep.mubr.f32.mxu0 0.0
  %4147 = vmatmul.mubr.f32.gmra.mrb[0].mxu0 %v4075
  %v4148 = vpop.f32.mrb[0].mxu0
  %v4149 = vadd.f32 %v3029, %v4148
  %v4150 = vpop.f32.mrb[0].mxu0
  %v4151 = vadd.f32 %v3033, %v4150
  %4152 = vdwg.mxu0
  %4153 = vmatprep.subr.mxu0 0.0
  %4154 = vmatpush1.msra.mxu0 %v2978
  %4155 = vmatprep.subr.mxu0 0.0
  %4156 = vmatpush1.msra.mxu0 %v2981
  %4157 = vmatprep.subr.mxu0 0.0
  %4158 = vmatpush1.msra.mxu0 %v2984
  %4159 = vmatprep.subr.mxu0 0.0
  %4160 = vmatpush1.msra.mxu0 %v2987
  %4161 = vmatprep.subr.mxu0 0.0
  %4162 = vmatpush1.msra.mxu0 %v2990
  %4163 = vmatprep.subr.mxu0 0.0
  %4164 = vmatpush1.msra.mxu0 %v2993
  %4165 = vmatprep.subr.mxu0 0.0
  %4166 = vmatpush1.msra.mxu0 %v2996
  %4167 = vmatprep.subr.mxu0 0.0
  %4168 = vmatpush1.msra.mxu0 %v2999
  %4169 = vmatprep.subr.mxu0 0.0
  %4170 = vmatpush1.msra.mxu0 %v3002
  %4171 = vmatprep.subr.mxu0 0.0
  %4172 = vmatpush1.msra.mxu0 %v3005
  %4173 = vmatprep.subr.mxu0 0.0
  %4174 = vmatpush1.msra.mxu0 %v3008
  %4175 = vmatprep.subr.mxu0 0.0
  %4176 = vmatpush1.msra.mxu0 %v3011
  %4177 = vmatprep.subr.mxu0 0.0
  %4178 = vmatpush1.msra.mxu0 %v3014
  %4179 = vmatprep.subr.mxu0 0.0
  %4180 = vmatpush1.msra.mxu0 %v3017
  %4181 = vmatprep.subr.mxu0 0.0
  %4182 = vmatpush1.msra.mxu0 %v3020
  %4183 = vmatprep.subr.mxu0 0.0
  %4184 = vmatpush1.msra.mxu0 %v3023
  %4185 = vmatprep.subr.mxu0 0.0
  %4186 = vmatpush1.msra.mxu0 0.0
  %4187 = vmatprep.subr.mxu0 0.0
  %4188 = vmatpush1.msra.mxu0 0.0
  %4189 = vmatprep.subr.mxu0 0.0
  %4190 = vmatpush1.msra.mxu0 0.0
  %4191 = vmatprep.subr.mxu0 0.0
  %4192 = vmatpush1.msra.mxu0 0.0
  %4193 = vmatprep.subr.mxu0 0.0
  %4194 = vmatpush1.msra.mxu0 0.0
  %4195 = vmatprep.subr.mxu0 0.0
  %4196 = vmatpush1.msra.mxu0 0.0
  %4197 = vmatprep.subr.mxu0 0.0
  %4198 = vmatpush1.msra.mxu0 0.0
  %4199 = vmatprep.subr.mxu0 0.0
  %4200 = vmatpush1.msra.mxu0 0.0
  %4201 = vmatprep.subr.mxu0 0.0
  %4202 = vmatpush1.msra.mxu0 0.0
  %4203 = vmatprep.subr.mxu0 0.0
  %4204 = vmatpush1.msra.mxu0 0.0
  %4205 = vmatprep.subr.mxu0 0.0
  %4206 = vmatpush1.msra.mxu0 0.0
  %4207 = vmatprep.subr.mxu0 0.0
  %4208 = vmatpush1.msra.mxu0 0.0
  %4209 = vmatprep.subr.mxu0 0.0
  %4210 = vmatpush1.msra.mxu0 0.0
  %4211 = vmatprep.subr.mxu0 0.0
  %4212 = vmatpush1.msra.mxu0 0.0
  %4213 = vmatprep.subr.mxu0 0.0
  %4214 = vmatpush1.msra.mxu0 0.0
  %4215 = vmatprep.subr.mxu0 0.0
  %4216 = vmatpush1.msra.mxu0 0.0
  %4217 = vmatprep.mubr.f32.mxu0 0.0
  %4218 = vmatmul.mubr.f32.gmra.mrb[0].mxu0 %v4075
  %v4219 = vpop.f32.mrb[0].mxu0
  %v4220 = vadd.f32 %v3037, %v4219
  %v4221 = vpop.f32.mrb[0].mxu0
  %4222 = vdwg.mxu0
  %v4223 = vadd.f32 %v4078, %v4149
  %v4224 = vxor.u32 %v4223, 2147483648
  %v4225 = vmul.f32 %v4224, 1.442695
  %v4226 = vpow.pop %v4225
  %v4227 = vadd.f32 %v4226, 1.0
  %v4228 = vrcp.pop %v4227
  %v4229 = vmul.f32 1.0, %v4228
  %v4230 = vadd.f32 %v4079, %v4151
  %v4231 = vxor.u32 %v4230, 2147483648
  %v4232 = vmul.f32 %v4231, 1.442695
  %v4233 = vpow.pop %v4232
  %v4234 = vadd.f32 %v4233, 1.0
  %v4235 = vrcp.pop %v4234
  %v4236 = vmul.f32 1.0, %v4235
  %v4237 = vmul.f32 %v4229, %v4220
  %v4238 = vadd.f32 %v4080, %v4237
  %v4239 = vtanh.pop %v4238
  %v4240 = vsub.f32 1.0, %v4236
  %v4241 = vmul.f32 %v4240, %v4239
  %v4242 = vmul.f32 %v4236, %v4075
  %v4243 = vadd.f32 %v4241, %v4242
  %v4244 = vsub.f32 %v4243, %v4075
  %v4245 = vmul.f32 %v4081, %v4244
  %v4246 = vadd.f32 %v4075, %v4245
  %v4247 = vmul.f32 %v4081, %v4243
  %v4248 = vadd.f32 %v4077, %v4247
  %v4249 = vsel %vm56, %v2969, %v2966
  %v4250 = vsel %vm57, %v2970, %v2967
  %v4251 = vsel %vm58, %v2971, %v2968
  %v4252 = vld [vmem:[%s2117] sm:$0xff]
  %4253 = vmatprep.subr.mxu0 %v2977
  %4254 = vmatpush1.msra.mxu0 %v2976
  %4255 = vmatprep.subr.mxu0 %v2980
  %4256 = vmatpush1.msra.mxu0 %v2979
  %4257 = vmatprep.subr.mxu0 %v2983
  %4258 = vmatpush1.msra.mxu0 %v2982
  %4259 = vmatprep.subr.mxu0 %v2986
  %4260 = vmatpush1.msra.mxu0 %v2985
  %4261 = vmatprep.subr.mxu0 %v2989
  %4262 = vmatpush1.msra.mxu0 %v2988
  %4263 = vmatprep.subr.mxu0 %v2992
  %4264 = vmatpush1.msra.mxu0 %v2991
  %4265 = vmatprep.subr.mxu0 %v2995
  %4266 = vmatpush1.msra.mxu0 %v2994
  %4267 = vmatprep.subr.mxu0 %v2998
  %4268 = vmatpush1.msra.mxu0 %v2997
  %4269 = vmatprep.subr.mxu0 %v3001
  %4270 = vmatpush1.msra.mxu0 %v3000
  %4271 = vmatprep.subr.mxu0 %v3004
  %4272 = vmatpush1.msra.mxu0 %v3003
  %4273 = vmatprep.subr.mxu0 %v3007
  %4274 = vmatpush1.msra.mxu0 %v3006
  %4275 = vmatprep.subr.mxu0 %v3010
  %4276 = vmatpush1.msra.mxu0 %v3009
  %4277 = vmatprep.subr.mxu0 %v3013
  %4278 = vmatpush1.msra.mxu0 %v3012
  %4279 = vmatprep.subr.mxu0 %v3016
  %4280 = vmatpush1.msra.mxu0 %v3015
  %4281 = vmatprep.subr.mxu0 %v3019
  %4282 = vmatpush1.msra.mxu0 %v3018
  %4283 = vmatprep.subr.mxu0 %v3022
  %4284 = vmatpush1.msra.mxu0 %v3021
  %4285 = vmatprep.subr.mxu0 0.0
  %4286 = vmatpush1.msra.mxu0 0.0
  %4287 = vmatprep.subr.mxu0 0.0
  %4288 = vmatpush1.msra.mxu0 0.0
  %4289 = vmatprep.subr.mxu0 0.0
  %4290 = vmatpush1.msra.mxu0 0.0
  %4291 = vmatprep.subr.mxu0 0.0
  %4292 = vmatpush1.msra.mxu0 0.0
  %4293 = vmatprep.subr.mxu0 0.0
  %4294 = vmatpush1.msra.mxu0 0.0
  %4295 = vmatprep.subr.mxu0 0.0
  %4296 = vmatpush1.msra.mxu0 0.0
  %4297 = vmatprep.subr.mxu0 0.0
  %4298 = vmatpush1.msra.mxu0 0.0
  %4299 = vmatprep.subr.mxu0 0.0
  %4300 = vmatpush1.msra.mxu0 0.0
  %4301 = vmatprep.subr.mxu0 0.0
  %4302 = vmatpush1.msra.mxu0 0.0
  %4303 = vmatprep.subr.mxu0 0.0
  %4304 = vmatpush1.msra.mxu0 0.0
  %4305 = vmatprep.subr.mxu0 0.0
  %4306 = vmatpush1.msra.mxu0 0.0
  %4307 = vmatprep.subr.mxu0 0.0
  %4308 = vmatpush1.msra.mxu0 0.0
  %4309 = vmatprep.subr.mxu0 0.0
  %4310 = vmatpush1.msra.mxu0 0.0
  %4311 = vmatprep.subr.mxu0 0.0
  %4312 = vmatpush1.msra.mxu0 0.0
  %4313 = vmatprep.subr.mxu0 0.0
  %4314 = vmatpush1.msra.mxu0 0.0
  %4315 = vmatprep.subr.mxu0 0.0
  %4316 = vmatpush1.msra.mxu0 0.0
  %4317 = vmatprep.mubr.f32.mxu0 0.0
  %4318 = vmatmul.mubr.f32.gmra.mrb[0].mxu0 %v4246
  %v4319 = vpop.f32.mrb[0].mxu0
  %v4320 = vadd.f32 %v3029, %v4319
  %v4321 = vpop.f32.mrb[0].mxu0
  %v4322 = vadd.f32 %v3033, %v4321
  %4323 = vdwg.mxu0
  %4324 = vmatprep.subr.mxu0 0.0
  %4325 = vmatpush1.msra.mxu0 %v2978
  %4326 = vmatprep.subr.mxu0 0.0
  %4327 = vmatpush1.msra.mxu0 %v2981
  %4328 = vmatprep.subr.mxu0 0.0
  %4329 = vmatpush1.msra.mxu0 %v2984
  %4330 = vmatprep.subr.mxu0 0.0
  %4331 = vmatpush1.msra.mxu0 %v2987
  %4332 = vmatprep.subr.mxu0 0.0
  %4333 = vmatpush1.msra.mxu0 %v2990
  %4334 = vmatprep.subr.mxu0 0.0
  %4335 = vmatpush1.msra.mxu0 %v2993
  %4336 = vmatprep.subr.mxu0 0.0
  %4337 = vmatpush1.msra.mxu0 %v2996
  %4338 = vmatprep.subr.mxu0 0.0
  %4339 = vmatpush1.msra.mxu0 %v2999
  %4340 = vmatprep.subr.mxu0 0.0
  %4341 = vmatpush1.msra.mxu0 %v3002
  %4342 = vmatprep.subr.mxu0 0.0
  %4343 = vmatpush1.msra.mxu0 %v3005
  %4344 = vmatprep.subr.mxu0 0.0
  %4345 = vmatpush1.msra.mxu0 %v3008
  %4346 = vmatprep.subr.mxu0 0.0
  %4347 = vmatpush1.msra.mxu0 %v3011
  %4348 = vmatprep.subr.mxu0 0.0
  %4349 = vmatpush1.msra.mxu0 %v3014
  %4350 = vmatprep.subr.mxu0 0.0
  %4351 = vmatpush1.msra.mxu0 %v3017
  %4352 = vmatprep.subr.mxu0 0.0
  %4353 = vmatpush1.msra.mxu0 %v3020
  %4354 = vmatprep.subr.mxu0 0.0
  %4355 = vmatpush1.msra.mxu0 %v3023
  %4356 = vmatprep.subr.mxu0 0.0
  %4357 = vmatpush1.msra.mxu0 0.0
  %4358 = vmatprep.subr.mxu0 0.0
  %4359 = vmatpush1.msra.mxu0 0.0
  %4360 = vmatprep.subr.mxu0 0.0
  %4361 = vmatpush1.msra.mxu0 0.0
  %4362 = vmatprep.subr.mxu0 0.0
  %4363 = vmatpush1.msra.mxu0 0.0
  %4364 = vmatprep.subr.mxu0 0.0
  %4365 = vmatpush1.msra.mxu0 0.0
  %4366 = vmatprep.subr.mxu0 0.0
  %4367 = vmatpush1.msra.mxu0 0.0
  %4368 = vmatprep.subr.mxu0 0.0
  %4369 = vmatpush1.msra.mxu0 0.0
  %4370 = vmatprep.subr.mxu0 0.0
  %4371 = vmatpush1.msra.mxu0 0.0
  %4372 = vmatprep.subr.mxu0 0.0
  %4373 = vmatpush1.msra.mxu0 0.0
  %4374 = vmatprep.subr.mxu0 0.0
  %4375 = vmatpush1.msra.mxu0 0.0
  %4376 = vmatprep.subr.mxu0 0.0
  %4377 = vmatpush1.msra.mxu0 0.0
  %4378 = vmatprep.subr.mxu0 0.0
  %4379 = vmatpush1.msra.mxu0 0.0
  %4380 = vmatprep.subr.mxu0 0.0
  %4381 = vmatpush1.msra.mxu0 0.0
  %4382 = vmatprep.subr.mxu0 0.0
  %4383 = vmatpush1.msra.mxu0 0.0
  %4384 = vmatprep.subr.mxu0 0.0
  %4385 = vmatpush1.msra.mxu0 0.0
  %4386 = vmatprep.subr.mxu0 0.0
  %4387 = vmatpush1.msra.mxu0 0.0
  %4388 = vmatprep.mubr.f32.mxu0 0.0
  %4389 = vmatmul.mubr.f32.gmra.mrb[0].mxu0 %v4246
  %v4390 = vpop.f32.mrb[0].mxu0
  %v4391 = vadd.f32 %v3037, %v4390
  %v4392 = vpop.f32.mrb[0].mxu0
  %4393 = vdwg.mxu0
  %v4394 = vadd.f32 %v4249, %v4320
  %v4395 = vxor.u32 %v4394, 2147483648
  %v4396 = vmul.f32 %v4395, 1.442695
  %v4397 = vpow.pop %v4396
  %v4398 = vadd.f32 %v4397, 1.0
  %v4399 = vrcp.pop %v4398
  %v4400 = vmul.f32 1.0, %v4399
  %v4401 = vadd.f32 %v4250, %v4322
  %v4402 = vxor.u32 %v4401, 2147483648
  %v4403 = vmul.f32 %v4402, 1.442695
  %v4404 = vpow.pop %v4403
  %v4405 = vadd.f32 %v4404, 1.0
  %v4406 = vrcp.pop %v4405
  %v4407 = vmul.f32 1.0, %v4406
  %v4408 = vmul.f32 %v4400, %v4391
  %v4409 = vadd.f32 %v4251, %v4408
  %v4410 = vtanh.pop %v4409
  %v4411 = vsub.f32 1.0, %v4407
  %v4412 = vmul.f32 %v4411, %v4410
  %v4413 = vmul.f32 %v4407, %v4246
  %v4414 = vadd.f32 %v4412, %v4413
  %v4415 = vmul.f32 %v4252, %v4414
  %v4416 = vadd.f32 %v4248, %v4415
  %s4417 = sld [smem:[#allocation7]]
  %v4418 = vstv %s4417
  %v4419 = vmul.f32 %v4416, %v4418
  %v4420 = vld [vmem:[%s12] sm:$0xff]
  %v4421 = vld [vmem:[%s12 + $0x8] sm:$0xff]
  %v4422 = vld [vmem:[%s12 + $0x10] sm:$0xff]
  %v4423 = vld [vmem:[%s12 + $0x18] sm:$0xff]
  %v4424 = vld [vmem:[%s12 + $0x20] sm:$0xff]
  %v4425 = vld [vmem:[%s12 + $0x28] sm:$0xff]
  %v4426 = vld [vmem:[%s12 + $0x30] sm:$0xff]
  %v4427 = vld [vmem:[%s12 + $0x38] sm:$0xff]
  %v4428 = vld [vmem:[%s12 + $0x40] sm:$0xff]
  %v4429 = vld [vmem:[%s12 + $0x48] sm:$0xff]
  %v4430 = vld [vmem:[%s12 + $0x50] sm:$0xff]
  %v4431 = vld [vmem:[%s12 + $0x58] sm:$0xff]
  %v4432 = vld [vmem:[%s12 + $0x60] sm:$0xff]
  %v4433 = vld [vmem:[%s12 + $0x68] sm:$0xff]
  %v4434 = vld [vmem:[%s12 + $0x70] sm:$0xff]
  %v4435 = vld [vmem:[%s12 + $0x78] sm:$0xff]
  %v4436 = vld [vmem:[#allocation6] sm:$0x1]
  %v4438 = vlaneseq
  %v4439 = vshrl.u32 %v4438, 7
  %v4440 = vsub.s32 0, %v4439
  %v4441 = vrot.slane %v4436, %v4440
  %4443 = vmatprep.subr.mxu0 0.0
  %4444 = vmatpush1.msra.mxu0 %v4420
  %4445 = vmatprep.subr.mxu0 0.0
  %4446 = vmatpush1.msra.mxu0 %v4421
  %4447 = vmatprep.subr.mxu0 0.0
  %4448 = vmatpush1.msra.mxu0 %v4422
  %4449 = vmatprep.subr.mxu0 0.0
  %4450 = vmatpush1.msra.mxu0 %v4423
  %4451 = vmatprep.subr.mxu0 0.0
  %4452 = vmatpush1.msra.mxu0 %v4424
  %4453 = vmatprep.subr.mxu0 0.0
  %4454 = vmatpush1.msra.mxu0 %v4425
  %4455 = vmatprep.subr.mxu0 0.0
  %4456 = vmatpush1.msra.mxu0 %v4426
  %4457 = vmatprep.subr.mxu0 0.0
  %4458 = vmatpush1.msra.mxu0 %v4427
  %4459 = vmatprep.subr.mxu0 0.0
  %4460 = vmatpush1.msra.mxu0 %v4428
  %4461 = vmatprep.subr.mxu0 0.0
  %4462 = vmatpush1.msra.mxu0 %v4429
  %4463 = vmatprep.subr.mxu0 0.0
  %4464 = vmatpush1.msra.mxu0 %v4430
  %4465 = vmatprep.subr.mxu0 0.0
  %4466 = vmatpush1.msra.mxu0 %v4431
  %4467 = vmatprep.subr.mxu0 0.0
  %4468 = vmatpush1.msra.mxu0 %v4432
  %4469 = vmatprep.subr.mxu0 0.0
  %4470 = vmatpush1.msra.mxu0 %v4433
  %4471 = vmatprep.subr.mxu0 0.0
  %4472 = vmatpush1.msra.mxu0 %v4434
  %4473 = vmatprep.subr.mxu0 0.0
  %4474 = vmatpush1.msra.mxu0 %v4435
  %4475 = vmatprep.subr.mxu0 0.0
  %4476 = vmatpush1.msra.mxu0 0.0
  %4477 = vmatprep.subr.mxu0 0.0
  %4478 = vmatpush1.msra.mxu0 0.0
  %4479 = vmatprep.subr.mxu0 0.0
  %4480 = vmatpush1.msra.mxu0 0.0
  %4481 = vmatprep.subr.mxu0 0.0
  %4482 = vmatpush1.msra.mxu0 0.0
  %4483 = vmatprep.subr.mxu0 0.0
  %4484 = vmatpush1.msra.mxu0 0.0
  %4485 = vmatprep.subr.mxu0 0.0
  %4486 = vmatpush1.msra.mxu0 0.0
  %4487 = vmatprep.subr.mxu0 0.0
  %4488 = vmatpush1.msra.mxu0 0.0
  %4489 = vmatprep.subr.mxu0 0.0
  %4490 = vmatpush1.msra.mxu0 0.0
  %4491 = vmatprep.subr.mxu0 0.0
  %4492 = vmatpush1.msra.mxu0 0.0
  %4493 = vmatprep.subr.mxu0 0.0
  %4494 = vmatpush1.msra.mxu0 0.0
  %4495 = vmatprep.subr.mxu0 0.0
  %4496 = vmatpush1.msra.mxu0 0.0
  %4497 = vmatprep.subr.mxu0 0.0
  %4498 = vmatpush1.msra.mxu0 0.0
  %4499 = vmatprep.subr.mxu0 0.0
  %4500 = vmatpush1.msra.mxu0 0.0
  %4501 = vmatprep.subr.mxu0 0.0
  %4502 = vmatpush1.msra.mxu0 0.0
  %4503 = vmatprep.subr.mxu0 0.0
  %4504 = vmatpush1.msra.mxu0 0.0
  %4505 = vmatprep.subr.mxu0 0.0
  %4506 = vmatpush1.msra.mxu0 0.0
  %4507 = vmatprep.mubr.f32.mxu0 0.0
  %4508 = vmatmul.mubr.f32.gmra.mrb[0].mxu0 %v4419
  %v4509 = vpop.f32.mrb[0].mxu0
  %v4510 = vadd.f32 %v4441, %v4509
  %v4511 = vpop.f32.mrb[0].mxu0
  %4512 = vdwg.mxu0
  %vm4513 = vcmask 7168
  %4514 = vst.msk [vmem:[%s15] sm:$0xff] %vm4513, %v4510
  // Predicated region
  $region62: #{gru_model_forward.1} parent=0 // pred_check
    _
  $region63: #{gru_model_forward.1} parent=0 // pred_check_branch
    %4516 = sbr.rel (0) target = $region65
  $region64: #{gru_model_forward.1} parent=0 // pred_region
    _
  $region65: #{gru_model_forward.1} parent=0 // pred_fallthru
    _
  // Predicated region
  $region66: #{gru_model_forward.1} parent=0 // pred_check
    _
  $region67: #{gru_model_forward.1} parent=0 // pred_check_branch
    %4518 = sbr.rel (0) target = $region69
  $region68: #{gru_model_forward.1} parent=0 // pred_region
    _
  $region69: #{gru_model_forward.1} parent=0 // pred_fallthru
    _

</llo_original>
